<compile_context>
chip_gen: v7x
topology: tpu7x:2x2x1
jax: 0.10.0
libtpu: 0.0.40
codegen_flags: <defaults>
</compile_context>

<pallas_src>
import jax
import jax.numpy as jnp
import numpy as np
from jax.experimental import pallas as pl
from jax.experimental.pallas import tpu as pltpu

NUM_PARTS = 6
EPS = 1e-5  # PyTorch BatchNorm default eps


def pcb_head_kernel(feat_ref, w1_ref, sb_ref, part_ref, pooled_ref):
    """One grid step = one body part (axis is 'parallel': no cross-step state).

    feat_ref   : (B, S, C) f32   this part's spatial slab (channels-last, S = bin*W)
    w1_ref     : (C, Nb)   bf16  per-part Linear(2048->512) weight (pre-transposed)
    sb_ref     : (2, Nb)   f32   row 0 = folded scale, row 1 = folded shift
                                 (Linear bias + eval BatchNorm1d(512) folded in wrapper)
    part_ref   : (B, Nb)   f32   part_fea[p]
    pooled_ref : (B, C)    f32   per-part pooled features (global path done in wrapper)
    """
    # AdaptiveAvgPool2d((6,1)) for this part: mean over its bin_rows*W positions.
    # Reduction is over the sublane axis (axis=1) with C on lanes -> cheap.
    pooled = jnp.mean(feat_ref[...], axis=1)                       # (B, C) f32
    pooled_ref[...] = pooled.astype(pooled_ref.dtype)

    # ClassBlock.add_block (relu=False): Linear -> BN(eval) -> Dropout(identity).
    # bf16 operands, f32 accumulation on the MXU.
    h = jnp.dot(pooled.astype(jnp.bfloat16), w1_ref[...],
                preferred_element_type=jnp.float32)                # (B, Nb)
    scale = sb_ref[0:1, :]                                         # (1, Nb)
    shift = sb_ref[1:2, :]                                         # (1, Nb)
    part_ref[...] = (h * scale + shift).astype(part_ref.dtype)


@jax.jit
def pcb_ibn_head(feat_nchw, w1_bf16, lin_bias,
                 bn1_gamma, bn1_beta, bn1_mean, bn1_var,
                 bng_gamma, bng_beta, bng_mean, bng_var):
    """feat_nchw: (B, C, H, W) backbone feature map, H divisible by 6.

    w1_bf16 : (P, C, Nb) bf16   per-part Linear weights (already transposed)
    lin_bias, bn1_*: (P, Nb)    per-part Linear bias / BatchNorm1d(512) params+stats
    bng_*: (C,)                 bnneck BatchNorm1d(2048) params + running stats
    Returns (glo_fea (B, C), part_fea (P, B, Nb)).
    """
    B, C, H, W = feat_nchw.shape
    # TODO(synk): exact AdaptiveAvgPool2d equivalence assumes H % 6 == 0 (equal bins);
    #             non-divisible H would need PyTorch's overlapping adaptive bins.
    assert H % NUM_PARTS == 0
    bin_rows = H // NUM_PARTS
    S = bin_rows * W
    Nb = w1_bf16.shape[-1]

    # NCHW -> (B, H*W, C): single tiny transpose, reshape is free. Parts are
    # selected by the BlockSpec index_map (no part-major copy through HBM).
    feat = jnp.transpose(feat_nchw, (0, 2, 3, 1)).reshape(B, H * W, C)

    # Fold Linear bias + eval-mode BatchNorm1d(512) into one scale/shift per part
    # (tiny vectors only; W1 itself is never re-processed per call).
    scale1 = bn1_gamma / jnp.sqrt(bn1_var + EPS)                    # (P, Nb)
    shift1 = bn1_beta + (lin_bias - bn1_mean) * scale1              # (P, Nb)
    sb = jnp.stack([scale1, shift1], axis=1)                        # (P, 2, Nb)

    grid_spec = pltpu.PrefetchScalarGridSpec(
        num_scalar_prefetch=0,
        grid=(NUM_PARTS,),
        in_specs=[
            pl.BlockSpec((B, S, C), lambda p: (0, p, 0)),           # part-p spatial slab
            pl.BlockSpec((None, C, Nb), lambda p: (p, 0, 0)),       # W1[p] (bf16)
            pl.BlockSpec((None, 2, Nb), lambda p: (p, 0, 0)),       # folded scale/shift[p]
        ],
        out_specs=(
            pl.BlockSpec((None, B, Nb), lambda p: (p, 0, 0)),       # part_fea[p]
            pl.BlockSpec((None, B, C), lambda p: (p, 0, 0)),        # pooled[p]
        ),
    )
    part_fea, pooled = pl.pallas_call(
        pcb_head_kernel,
        out_shape=(jax.ShapeDtypeStruct((NUM_PARTS, B, Nb), jnp.float32),
                   jax.ShapeDtypeStruct((NUM_PARTS, B, C), jnp.float32)),
        grid_spec=grid_spec,
        compiler_params=pltpu.CompilerParams(
            dimension_semantics=("parallel",)),                     # shards across v7x TCs
    )(feat, w1_bf16, sb)

    # Global path (tiny, done in XLA): AdaptiveAvgPool2d((1,1)) == mean of the six
    # equal-sized part means, then eval-mode bnneck BatchNorm1d(2048). Dropout = id.
    glo_tri = pooled.mean(axis=0)                                   # (B, C)
    g_scale = bng_gamma / jnp.sqrt(bng_var + EPS)
    g_shift = bng_beta - bng_mean * g_scale
    glo_fea = glo_tri * g_scale + g_shift
    return glo_fea, part_fea


def reference(feat_nchw, w1_f32, lin_bias,
              bn1_gamma, bn1_beta, bn1_mean, bn1_var,
              bng_gamma, bng_beta, bng_mean, bng_var):
    """Pure-JAX reference matching the PyTorch eval forward (f32 weights)."""
    B, C, H, W = feat_nchw.shape
    bin_rows = H // NUM_PARTS
    xp = feat_nchw.reshape(B, C, NUM_PARTS, bin_rows, W).mean(axis=(3, 4))  # (B, C, 6)
    glo_tri = xp.mean(axis=2)                                               # (B, C)
    glo = (glo_tri - bng_mean) / jnp.sqrt(bng_var + EPS) * bng_gamma + bng_beta
    parts = []
    for p in range(NUM_PARTS):
        pooled = xp[:, :, p]
        h = pooled @ w1_f32[p] + lin_bias[p]
        h = (h - bn1_mean[p]) / jnp.sqrt(bn1_var[p] + EPS) * bn1_gamma[p] + bn1_beta[p]
        parts.append(h)
    return glo, jnp.stack(parts, axis=0)


if __name__ == "__main__":
    # Head dims (C=2048, bottleneck=512) come from the module; batch/spatial are small.
    B, C, H, W = 2, 2048, 12, 4
    NB = 512  # num_bottleneck

    key = jax.random.PRNGKey(0)
    ks = jax.random.split(key, 7)

    feat = jax.random.normal(ks[0], (B, C, H, W), dtype=jnp.float32)

    # Params mirroring weights_init_kaiming plus non-trivial BN running stats
    # (a trained checkpoint has real running_mean/var, so they are inputs here).
    w1 = jax.random.normal(ks[1], (NUM_PARTS, C, NB), jnp.float32) * np.sqrt(2.0 / NB)
    lin_bias = jnp.zeros((NUM_PARTS, NB), jnp.float32)
    bn1_gamma = 1.0 + 0.02 * jax.random.normal(ks[2], (NUM_PARTS, NB), jnp.float32)
    bn1_beta = jnp.zeros((NUM_PARTS, NB), jnp.float32)
    bn1_mean = 0.1 * jax.random.normal(ks[3], (NUM_PARTS, NB), jnp.float32)
    bn1_var = 1.0 + 0.1 * jax.random.uniform(ks[4], (NUM_PARTS, NB), jnp.float32)

    bng_gamma = jnp.ones((C,), jnp.float32)
    bng_beta = jnp.zeros((C,), jnp.float32)
    bng_mean = 0.1 * jax.random.normal(ks[5], (C,), jnp.float32)
    bng_var = 1.0 + 0.1 * jax.random.uniform(ks[6], (C,), jnp.float32)

    # Weight streaming dominates this kernel: keep W1 in bf16 (cast once, outside jit).
    w1_bf16 = w1.astype(jnp.bfloat16)

    glo_fea, part_fea = pcb_ibn_head(feat, w1_bf16, lin_bias,
                                     bn1_gamma, bn1_beta, bn1_mean, bn1_var,
                                     bng_gamma, bng_beta, bng_mean, bng_var)
    glo_fea = jax.block_until_ready(glo_fea)
    part_fea = jax.block_until_ready(part_fea)

    glo_ref, part_ref = reference(feat, w1, lin_bias,
                                  bn1_gamma, bn1_beta, bn1_mean, bn1_var,
                                  bng_gamma, bng_beta, bng_mean, bng_var)

    # Global path is f32 end-to-end -> tight tolerance.
    np.testing.assert_allclose(np.asarray(glo_fea), np.asarray(glo_ref),
                               rtol=1e-4, atol=1e-4)
    # Part path streams bf16 weights -> ~1e-2 parity vs the f32 reference.
    np.testing.assert_allclose(np.asarray(part_fea), np.asarray(part_ref),
                               rtol=2e-2, atol=2e-2)

    print("KERNEL_OK")
</pallas_src>

<mosaic_0001>
module attributes {stable_mosaic.version = 11 : i64} {
  func.func @pcb_head_kernel(%arg0: i32, %arg1: memref<2x8x2048xf32, #tpu.memory_space<vmem>>, %arg2: memref<1x2048x512xbf16, #tpu.memory_space<vmem>>, %arg3: memref<1x2x512xf32, #tpu.memory_space<vmem>>, %arg4: memref<1x2x512xf32, #tpu.memory_space<vmem>>, %arg5: memref<1x2x2048xf32, #tpu.memory_space<vmem>>) attributes {dimension_semantics = [#tpu.dimension_semantics<parallel>], iteration_bounds = array<i64: 6>, scalar_prefetch = 0 : i64, scratch_operands = 0 : i64, tpu.core_type = #tpu.core_type<tc>, window_params = [{transform_indices = @transform_0, window_bounds = array<i64: 2, 8, 2048>}, {transform_indices = @transform_1, window_bounds = array<i64: 1, 2048, 512>}, {transform_indices = @transform_2, window_bounds = array<i64: 1, 2, 512>}, {transform_indices = @transform_3, window_bounds = array<i64: 1, 2, 512>}, {transform_indices = @transform_4, window_bounds = array<i64: 1, 2, 2048>}]} {
    %c0 = arith.constant 0 : index
    %c0_0 = arith.constant 0 : index
    %c0_1 = arith.constant 0 : index
    %0 = vector.load %arg1[%c0, %c0_0, %c0_1] : memref<2x8x2048xf32, #tpu.memory_space<vmem>>, vector<2x8x2048xf32>
    %cst = arith.constant dense<0.000000e+00> : vector<2x2048xf32>
    %1 = vector.multi_reduction <add>, %0, %cst [1] : vector<2x8x2048xf32> to vector<2x2048xf32>
    %cst_2 = arith.constant 8.000000e+00 : f32
    %2 = vector.broadcast %cst_2 : f32 to vector<2x2048xf32>
    %3 = arith.divf %1, %2 : vector<2x2048xf32>
    %c0_3 = arith.constant 0 : index
    %c0_4 = arith.constant 0 : index
    %c0_5 = arith.constant 0 : index
    %4 = vector.load %arg5[%c0_3, %c0_4, %c0_5] : memref<1x2x2048xf32, #tpu.memory_space<vmem>>, vector<1x2x2048xf32>
    %5 = vector.shape_cast %4 : vector<1x2x2048xf32> to vector<2x2048xf32>
    %6 = vector.shape_cast %3 : vector<2x2048xf32> to vector<1x2x2048xf32>
    tpu.vector_store %arg5[%c0_3, %c0_4, %c0_5], %6 {strides = array<i32>} : memref<1x2x2048xf32, #tpu.memory_space<vmem>>, vector<1x2x2048xf32>,
    %7 = arith.truncf %3 : vector<2x2048xf32> to vector<2x2048xbf16>
    %c0_6 = arith.constant 0 : index
    %c0_7 = arith.constant 0 : index
    %c0_8 = arith.constant 0 : index
    %8 = vector.load %arg2[%c0_6, %c0_7, %c0_8] : memref<1x2048x512xbf16, #tpu.memory_space<vmem>>, vector<1x2048x512xbf16>
    %9 = vector.shape_cast %8 : vector<1x2048x512xbf16> to vector<2048x512xbf16>
    %cst_9 = arith.constant dense<0.000000e+00> : vector<2x512xf32>
    %10 = tpu.matmul %7, %9, %cst_9 {dimension_numbers = #tpu.dot_dimension_numbers<[1], [0], [0], [1], [0, 0, 1, 1], [], []>} : vector<2x2048xbf16>, vector<2048x512xbf16>, vector<2x512xf32> -> vector<2x512xf32>
    %c0_10 = arith.constant 0 : index
    %c0_11 = arith.constant 0 : index
    %c0_12 = arith.constant 0 : index
    %11 = vector.load %arg3[%c0_10, %c0_11, %c0_12] : memref<1x2x512xf32, #tpu.memory_space<vmem>>, vector<1x1x512xf32>
    %12 = vector.shape_cast %11 : vector<1x1x512xf32> to vector<1x512xf32>
    %c0_13 = arith.constant 0 : index
    %c1 = arith.constant 1 : index
    %c0_14 = arith.constant 0 : index
    %13 = vector.load %arg3[%c0_13, %c1, %c0_14] : memref<1x2x512xf32, #tpu.memory_space<vmem>>, vector<1x1x512xf32>
    %14 = vector.shape_cast %13 : vector<1x1x512xf32> to vector<1x512xf32>
    %15 = vector.broadcast %12 : vector<1x512xf32> to vector<2x512xf32>
    %16 = arith.mulf %10, %15 : vector<2x512xf32>
    %17 = vector.broadcast %14 : vector<1x512xf32> to vector<2x512xf32>
    %18 = arith.addf %16, %17 : vector<2x512xf32>
    %c0_15 = arith.constant 0 : index
    %c0_16 = arith.constant 0 : index
    %c0_17 = arith.constant 0 : index
    %19 = vector.load %arg4[%c0_15, %c0_16, %c0_17] : memref<1x2x512xf32, #tpu.memory_space<vmem>>, vector<1x2x512xf32>
    %20 = vector.shape_cast %19 : vector<1x2x512xf32> to vector<2x512xf32>
    %21 = vector.shape_cast %18 : vector<2x512xf32> to vector<1x2x512xf32>
    tpu.vector_store %arg4[%c0_15, %c0_16, %c0_17], %21 {strides = array<i32>} : memref<1x2x512xf32, #tpu.memory_space<vmem>>, vector<1x2x512xf32>,
    return
  }
  func.func @transform_0(%arg0: i32) -> (i32, i32, i32) {
    %c0_i32 = arith.constant 0 : i32
    %c0_i32_0 = arith.constant 0 : i32
    %c0_i32_1 = arith.constant 0 : i32
    return %c0_i32, %arg0, %c0_i32_0 : i32, i32, i32
  }
  func.func @transform_1(%arg0: i32) -> (i32, i32, i32) {
    %c0_i32 = arith.constant 0 : i32
    %c0_i32_0 = arith.constant 0 : i32
    %c0_i32_1 = arith.constant 0 : i32
    return %arg0, %c0_i32, %c0_i32_0 : i32, i32, i32
  }
  func.func @transform_2(%arg0: i32) -> (i32, i32, i32) {
    %c0_i32 = arith.constant 0 : i32
    %c0_i32_0 = arith.constant 0 : i32
    %c0_i32_1 = arith.constant 0 : i32
    return %arg0, %c0_i32, %c0_i32_0 : i32, i32, i32
  }
  func.func @transform_3(%arg0: i32) -> (i32, i32, i32) {
    %c0_i32 = arith.constant 0 : i32
    %c0_i32_0 = arith.constant 0 : i32
    %c0_i32_1 = arith.constant 0 : i32
    return %arg0, %c0_i32, %c0_i32_0 : i32, i32, i32
  }
  func.func @transform_4(%arg0: i32) -> (i32, i32, i32) {
    %c0_i32 = arith.constant 0 : i32
    %c0_i32_0 = arith.constant 0 : i32
    %c0_i32_1 = arith.constant 0 : i32
    return %arg0, %c0_i32, %c0_i32_0 : i32, i32, i32
  }
}

</mosaic_0001>

<llo_original>
// kernel: pcb_ibn_head.1
$region0: #{pcb_ibn_head.1}
  #allocation0 [shape = 'u32[]', space=smem, size = 0x4, offset = 0x4, fixed_abs, tag = 'smem constant byte address 0x4 - core index']
  #allocation1 [shape = 'u32[144,128]{1,0:T(1,128)}', space=vmem, size = 0x12000, scoped, tag = 'internal scratch']
  %s0 = inlined_call_operand.vmem [shape: f32[2,48,2048], index: 0, kind: input, shape index: {}]
  %s1 = inlined_call_operand.hbm [shape: bf16[6,2048,512], index: 1, kind: input, shape index: {}]
  %s2 = inlined_call_operand.vmem [shape: f32[6,2,512], index: 2, kind: input, shape index: {}]
  %s3 = inlined_call_operand.hbm [shape: f32[6,2,512], index: 3, kind: output, shape index: {0}]
  %s4 = inlined_call_operand.vmem [shape: f32[6,2,2048], index: 4, kind: output, shape index: {1}]
  %5 = xla_tuple %s3, %s4
  %s6 = sld [smem:[#allocation0]]
  $region80: #{pcb_ibn_head.1} parent=0
    _
  %s8 = ssub.s32 1, %s6
  %s9 = scalar_select 0, %s8, %s6
  $region1: #{pcb_ibn_head.1} parent=0
    #allocation2 [shape = 'u8[262144]{0}', space=vmem, size = 0x40000, scoped, tag = 'input window, operand 0']
    #allocation3 [shape = 'u8[4194304]{0}', space=vmem, size = 0x400000, scoped, tag = 'input window, operand 1']
    #allocation4 [shape = 's32[2]{0}', space=sflag, size = 0x8, scoped, tag = 'scoped memory for pcb_ibn_head.1']
    #allocation5 [shape = 's32[2]{0}', space=sflag, size = 0x8, scoped, tag = 'scoped memory for pcb_ibn_head.1']
    #allocation6 [shape = 'u8[8192]{0}', space=vmem, size = 0x2000, scoped, tag = 'output window, operand 0']
    %10 = vsyncpa [#allocation4], 0
    %s11 = scalar_lea.sflag [#allocation4], 1
    %12 = vsyncpa %s11, 0
    %13 = vsyncpa [#allocation5], 0
    %s14 = scalar_lea.sflag [#allocation5], 1
    %15 = vsyncpa %s14, 0
    loop: start=0, step=1, limit=8
    $region2: #{pcb_ibn_head.1} parent=1 // loop_pre_header
      _
    $region3: #{pcb_ibn_head.1} parent=1 // loop_header
      %s17 = sphi 0, %s21
      %p18 = scmp.ge.s32.totalorder %s17, 8
      %s27 = sphi 0, %s29
      %s30 = sphi 0, %s27
      %s31 = sphi 0, %s30
      %s47 = sphi 0, %s31
      %s53 = sphi 0, %s55
      %s56 = sphi 0, %s53
      %s57 = sphi 0, %s56
      %s73 = sphi 0, %s57
      %s79 = sphi 0, %s81
      %s82 = sphi 0, %s79
      %s83 = sphi 0, %s82
      %s99 = sphi 0, %s83
      %s105 = sphi 0, %s107
      %s108 = sphi 0, %s105
      %s109 = sphi 0, %s108
      %s125 = sphi 0, %s109
      %s131 = sphi 0, %s133
      %s134 = sphi 0, %s131
      %s135 = sphi 0, %s134
      %s151 = sphi 0, %s135
    $region4: #{pcb_ibn_head.1} parent=1 // loop_header_branch
      %20 = sbr.rel (%p18) target = $region8
    $region5: #{pcb_ibn_head.1} parent=1 // loop_body
      %s22 = ssub.s32 %s17, 1
      %s23 = ssub.s32 %s17, 2
      %s24 = sadd.s32 %s17, 1
      %s25 = ssub.s32 %s17, %s24
      %p26 = scmp.eq.s32.totalorder %s25, 0
      %s28 = sadd.s32 %s27, 1
      %s29 = scalar_select %p26, %s27, %s28
      %p32 = pneg %p26
      %p33 = scmp.eq.s32.totalorder %s17, 5
      %p34 = por %p32, %p33
      %p35 = scmp.ne.s32.totalorder %s27, %s30
      %p36 = scmp.eq.s32.totalorder %s17, 0
      %p37 = por %p35, %p36
      %p38 = scmp.ne.s32.totalorder %s27, %s30
      %p39 = scmp.eq.s32.totalorder %s22, 5
      %p40 = por %p38, %p39
      %p41 = scmp.ne.s32.totalorder %s30, %s31
      %p42 = scmp.eq.s32.totalorder %s22, 0
      %p43 = por %p41, %p42
      %p44 = scmp.ne.s32.totalorder %s30, %s31
      %p45 = scmp.eq.s32.totalorder %s23, 5
      %p46 = por %p44, %p45
      %p48 = scmp.ne.s32.totalorder %s31, %s47
      %p49 = scmp.eq.s32.totalorder %s23, 0
      %p50 = por %p48, %p49
      %s51 = ssub.s32 %s17, %s24
      %p52 = scmp.eq.s32.totalorder %s51, 0
      %s54 = sadd.s32 %s53, 1
      %s55 = scalar_select %p52, %s53, %s54
      %p58 = pneg %p52
      %p59 = scmp.eq.s32.totalorder %s17, 5
      %p60 = por %p58, %p59
      %p61 = scmp.ne.s32.totalorder %s53, %s56
      %p62 = scmp.eq.s32.totalorder %s17, 0
      %p63 = por %p61, %p62
      %p64 = scmp.ne.s32.totalorder %s53, %s56
      %p65 = scmp.eq.s32.totalorder %s22, 5
      %p66 = por %p64, %p65
      %p67 = scmp.ne.s32.totalorder %s56, %s57
      %p68 = scmp.eq.s32.totalorder %s22, 0
      %p69 = por %p67, %p68
      %p70 = scmp.ne.s32.totalorder %s56, %s57
      %p71 = scmp.eq.s32.totalorder %s23, 5
      %p72 = por %p70, %p71
      %p74 = scmp.ne.s32.totalorder %s57, %s73
      %p75 = scmp.eq.s32.totalorder %s23, 0
      %p76 = por %p74, %p75
      %s77 = ssub.s32 %s17, %s24
      %p78 = scmp.eq.s32.totalorder %s77, 0
      %s80 = sadd.s32 %s79, 1
      %s81 = scalar_select %p78, %s79, %s80
      %p84 = pneg %p78
      %p85 = scmp.eq.s32.totalorder %s17, 5
      %p86 = por %p84, %p85
      %p87 = scmp.ne.s32.totalorder %s79, %s82
      %p88 = scmp.eq.s32.totalorder %s17, 0
      %p89 = por %p87, %p88
      %p90 = scmp.ne.s32.totalorder %s79, %s82
      %p91 = scmp.eq.s32.totalorder %s22, 5
      %p92 = por %p90, %p91
      %p93 = scmp.ne.s32.totalorder %s82, %s83
      %p94 = scmp.eq.s32.totalorder %s22, 0
      %p95 = por %p93, %p94
      %p96 = scmp.ne.s32.totalorder %s82, %s83
      %p97 = scmp.eq.s32.totalorder %s23, 5
      %p98 = por %p96, %p97
      %p100 = scmp.ne.s32.totalorder %s83, %s99
      %p101 = scmp.eq.s32.totalorder %s23, 0
      %p102 = por %p100, %p101
      %s103 = ssub.s32 %s17, %s24
      %p104 = scmp.eq.s32.totalorder %s103, 0
      %s106 = sadd.s32 %s105, 1
      %s107 = scalar_select %p104, %s105, %s106
      %p110 = pneg %p104
      %p111 = scmp.eq.s32.totalorder %s17, 5
      %p112 = por %p110, %p111
      %p113 = scmp.ne.s32.totalorder %s105, %s108
      %p114 = scmp.eq.s32.totalorder %s17, 0
      %p115 = por %p113, %p114
      %p116 = scmp.ne.s32.totalorder %s105, %s108
      %p117 = scmp.eq.s32.totalorder %s22, 5
      %p118 = por %p116, %p117
      %p119 = scmp.ne.s32.totalorder %s108, %s109
      %p120 = scmp.eq.s32.totalorder %s22, 0
      %p121 = por %p119, %p120
      %p122 = scmp.ne.s32.totalorder %s108, %s109
      %p123 = scmp.eq.s32.totalorder %s23, 5
      %p124 = por %p122, %p123
      %p126 = scmp.ne.s32.totalorder %s109, %s125
      %p127 = scmp.eq.s32.totalorder %s23, 0
      %p128 = por %p126, %p127
      %s129 = ssub.s32 %s17, %s24
      %p130 = scmp.eq.s32.totalorder %s129, 0
      %s132 = sadd.s32 %s131, 1
      %s133 = scalar_select %p130, %s131, %s132
      %p136 = pneg %p130
      %p137 = scmp.eq.s32.totalorder %s17, 5
      %p138 = por %p136, %p137
      %p139 = scmp.ne.s32.totalorder %s131, %s134
      %p140 = scmp.eq.s32.totalorder %s17, 0
      %p141 = por %p139, %p140
      %p142 = scmp.ne.s32.totalorder %s131, %s134
      %p143 = scmp.eq.s32.totalorder %s22, 5
      %p144 = por %p142, %p143
      %p145 = scmp.ne.s32.totalorder %s134, %s135
      %p146 = scmp.eq.s32.totalorder %s22, 0
      %p147 = por %p145, %p146
      %p148 = scmp.ne.s32.totalorder %s134, %s135
      %p149 = scmp.eq.s32.totalorder %s23, 5
      %p150 = por %p148, %p149
      %p152 = scmp.ne.s32.totalorder %s135, %s151
      %p153 = scmp.eq.s32.totalorder %s23, 0
      %p154 = por %p152, %p153
      %p155 = scmp.le.s32.totalorder 1, %s17
      %p156 = scmp.lt.s32.totalorder %s17, 7
      %p157 = pnand %p155, %p156
      %p158 = pneg %p157
      // Predicated region
      $region9: #{pcb_ibn_head.1} parent=5 // pred_check
        _
      $region10: #{pcb_ibn_head.1} parent=5 // pred_check_branch
        %160 = sbr.rel (%p157) target = $region12
      $region11: #{pcb_ibn_head.1} parent=5 // pred_region
        %s161 = ssub.s32 %s17, 1
      $region12: #{pcb_ibn_head.1} parent=5 // pred_fallthru
        _
      %p162 = scmp.lt.s32.totalorder %s17, 6
      // Predicated region
      $region13: #{pcb_ibn_head.1} parent=5 // pred_check
        %p163 = pneg %p162
      $region14: #{pcb_ibn_head.1} parent=5 // pred_check_branch
        %165 = sbr.rel (%p163) target = $region16
      $region15: #{pcb_ibn_head.1} parent=5 // pred_region
        // Predicated region
        $region17: #{pcb_ibn_head.1} parent=15 // pred_check
          %p166 = pneg %p37
        $region18: #{pcb_ibn_head.1} parent=15 // pred_check_branch
          %168 = sbr.rel (%p166) target = $region20
        $region19: #{pcb_ibn_head.1} parent=15 // pred_region
          %s169 = sand.u32 %s27, 1
          %s170 = sand.u32 %s27, 1
          %s171 = smul.addr %s170, 256
          %s172 = scalar_lea.vmem [#allocation2], %s171
          %s173 = smul.addr %s17, 16
          %s174 = smul.addr %s173, 8
          %s175 = scalar_lea.vmem %s0, %s174
          // Predicated region
          $region21: #{pcb_ibn_head.1} parent=19 // pred_check
            _
          $region22: #{pcb_ibn_head.1} parent=19 // pred_check_branch
            %177 = sbr.rel (0) target = $region24
          $region23: #{pcb_ibn_head.1} parent=19 // pred_region
            // Predicated region
            $region25: #{pcb_ibn_head.1} parent=23 // pred_check
              _
            $region26: #{pcb_ibn_head.1} parent=23 // pred_check_branch
              %179 = sbr.rel (0) target = $region28
            $region27: #{pcb_ibn_head.1} parent=23 // pred_region
              loop: start=0, step=1, limit=1
              $region29: #{pcb_ibn_head.1} parent=27 // loop_pre_header
                _
              $region30: #{pcb_ibn_head.1} parent=27 // loop_header
                %s181 = sphi 0, %s185
                %p182 = scmp.ge.s32.totalorder %s181, 1
                %s186 = sphi %s175, %s175
                %s187 = sphi %s172, %s172
              $region31: #{pcb_ibn_head.1} parent=27 // loop_header_branch
                %184 = sbr.rel (%p182) target = $region35
              $region32: #{pcb_ibn_head.1} parent=27 // loop_body
                %v188 = vld [vmem:[%s186] sm:$0xff]
                %189 = vst [vmem:[%s187] sm:$0xff] %v188
                %v190 = vld [vmem:[%s186 + $0x8] sm:$0xff]
                %191 = vst [vmem:[%s187 + $0x8] sm:$0xff] %v190
                %v192 = vld [vmem:[%s186 + $0x10] sm:$0xff]
                %193 = vst [vmem:[%s187 + $0x10] sm:$0xff] %v192
                %v194 = vld [vmem:[%s186 + $0x18] sm:$0xff]
                %195 = vst [vmem:[%s187 + $0x18] sm:$0xff] %v194
                %v196 = vld [vmem:[%s186 + $0x20] sm:$0xff]
                %197 = vst [vmem:[%s187 + $0x20] sm:$0xff] %v196
                %v198 = vld [vmem:[%s186 + $0x28] sm:$0xff]
                %199 = vst [vmem:[%s187 + $0x28] sm:$0xff] %v198
                %v200 = vld [vmem:[%s186 + $0x30] sm:$0xff]
                %201 = vst [vmem:[%s187 + $0x30] sm:$0xff] %v200
                %v202 = vld [vmem:[%s186 + $0x38] sm:$0xff]
                %203 = vst [vmem:[%s187 + $0x38] sm:$0xff] %v202
                %v204 = vld [vmem:[%s186 + $0x40] sm:$0xff]
                %205 = vst [vmem:[%s187 + $0x40] sm:$0xff] %v204
                %v206 = vld [vmem:[%s186 + $0x48] sm:$0xff]
                %207 = vst [vmem:[%s187 + $0x48] sm:$0xff] %v206
                %v208 = vld [vmem:[%s186 + $0x50] sm:$0xff]
                %209 = vst [vmem:[%s187 + $0x50] sm:$0xff] %v208
                %v210 = vld [vmem:[%s186 + $0x58] sm:$0xff]
                %211 = vst [vmem:[%s187 + $0x58] sm:$0xff] %v210
                %v212 = vld [vmem:[%s186 + $0x60] sm:$0xff]
                %213 = vst [vmem:[%s187 + $0x60] sm:$0xff] %v212
                %v214 = vld [vmem:[%s186 + $0x68] sm:$0xff]
                %215 = vst [vmem:[%s187 + $0x68] sm:$0xff] %v214
                %v216 = vld [vmem:[%s186 + $0x70] sm:$0xff]
                %217 = vst [vmem:[%s187 + $0x70] sm:$0xff] %v216
                %v218 = vld [vmem:[%s186 + $0x78] sm:$0xff]
                %219 = vst [vmem:[%s187 + $0x78] sm:$0xff] %v218
                %v220 = vld [vmem:[%s186 + $0x300] sm:$0xff]
                %221 = vst [vmem:[%s187 + $0x80] sm:$0xff] %v220
                %v222 = vld [vmem:[%s186 + $0x308] sm:$0xff]
                %223 = vst [vmem:[%s187 + $0x88] sm:$0xff] %v222
                %v224 = vld [vmem:[%s186 + $0x310] sm:$0xff]
                %225 = vst [vmem:[%s187 + $0x90] sm:$0xff] %v224
                %v226 = vld [vmem:[%s186 + $0x318] sm:$0xff]
                %227 = vst [vmem:[%s187 + $0x98] sm:$0xff] %v226
                %v228 = vld [vmem:[%s186 + $0x320] sm:$0xff]
                %229 = vst [vmem:[%s187 + $0xa0] sm:$0xff] %v228
                %v230 = vld [vmem:[%s186 + $0x328] sm:$0xff]
                %231 = vst [vmem:[%s187 + $0xa8] sm:$0xff] %v230
                %v232 = vld [vmem:[%s186 + $0x330] sm:$0xff]
                %233 = vst [vmem:[%s187 + $0xb0] sm:$0xff] %v232
                %v234 = vld [vmem:[%s186 + $0x338] sm:$0xff]
                %235 = vst [vmem:[%s187 + $0xb8] sm:$0xff] %v234
                %v236 = vld [vmem:[%s186 + $0x340] sm:$0xff]
                %237 = vst [vmem:[%s187 + $0xc0] sm:$0xff] %v236
                %v238 = vld [vmem:[%s186 + $0x348] sm:$0xff]
                %239 = vst [vmem:[%s187 + $0xc8] sm:$0xff] %v238
                %v240 = vld [vmem:[%s186 + $0x350] sm:$0xff]
                %241 = vst [vmem:[%s187 + $0xd0] sm:$0xff] %v240
                %v242 = vld [vmem:[%s186 + $0x358] sm:$0xff]
                %243 = vst [vmem:[%s187 + $0xd8] sm:$0xff] %v242
                %v244 = vld [vmem:[%s186 + $0x360] sm:$0xff]
                %245 = vst [vmem:[%s187 + $0xe0] sm:$0xff] %v244
                %v246 = vld [vmem:[%s186 + $0x368] sm:$0xff]
                %247 = vst [vmem:[%s187 + $0xe8] sm:$0xff] %v246
                %v248 = vld [vmem:[%s186 + $0x370] sm:$0xff]
                %249 = vst [vmem:[%s187 + $0xf0] sm:$0xff] %v248
                %v250 = vld [vmem:[%s186 + $0x378] sm:$0xff]
                %251 = vst [vmem:[%s187 + $0xf8] sm:$0xff] %v250
              $region33: #{pcb_ibn_head.1} parent=27 // loop_footer
                %s185 = sadd.s32 1, %s181
              $region34: #{pcb_ibn_head.1} parent=27 // loop_footer_branch
                %180 = sbr.rel target = $region30
              $region35: #{pcb_ibn_head.1} parent=27 // loop_exit
                _
            $region28: #{pcb_ibn_head.1} parent=23 // pred_fallthru
              _
            // Predicated region
            $region36: #{pcb_ibn_head.1} parent=23 // pred_check
              _
            $region37: #{pcb_ibn_head.1} parent=23 // pred_check_branch
              %253 = sbr.rel target = $region39
            $region38: #{pcb_ibn_head.1} parent=23 // pred_region
              _
            $region39: #{pcb_ibn_head.1} parent=23 // pred_fallthru
              _
          $region24: #{pcb_ibn_head.1} parent=19 // pred_fallthru
            _
          %254 = vnop
        $region20: #{pcb_ibn_head.1} parent=15 // pred_fallthru
          _
        // Predicated region
        $region40: #{pcb_ibn_head.1} parent=15 // pred_check
          %p255 = pneg %p63
        $region41: #{pcb_ibn_head.1} parent=15 // pred_check_branch
          %257 = sbr.rel (%p255) target = $region43
        $region42: #{pcb_ibn_head.1} parent=15 // pred_region
          %s258 = sand.u32 %s53, 1
          %s259 = scalar_lea.sflag [#allocation4], %s258
          %s260 = sand.u32 %s53, 1
          %s261 = smul.addr %s260, 4096
          %s262 = scalar_lea.vmem [#allocation3], %s261
          %s264 = ssub.s32 65536, 65536
          %265 = vsyncadd %s259, %s264
          %s266 = smul.addr %s17, 1024
          %s267 = smul.addr %s266, 64
          %s268 = scalar_lea.hbm %s1, %s267
          %s269 = sshll.u32 %s262, 4
          %s270 = int_to_ptr.vmem [resolvable:$true] %s269
          %275 = dma.hbm_to_vmem [thread:$0]  %s268, 65536, %s270, %s259, 256, 256, 16
        $region43: #{pcb_ibn_head.1} parent=15 // pred_fallthru
          _
        // Predicated region
        $region44: #{pcb_ibn_head.1} parent=15 // pred_check
          %p276 = pneg %p89
        $region45: #{pcb_ibn_head.1} parent=15 // pred_check_branch
          %278 = sbr.rel (%p276) target = $region47
        $region46: #{pcb_ibn_head.1} parent=15 // pred_region
          %p279 = scmp.lt.s32.totalorder %s17, 5
          %s280 = scalar_select %p279, %s17, 5
          %s281 = smul.addr %s280, 4
          %s282 = smul.addr %s281, 2
          %s283 = scalar_lea.vmem %s2, %s282
        $region47: #{pcb_ibn_head.1} parent=15 // pred_fallthru
          _
      $region16: #{pcb_ibn_head.1} parent=5 // pred_fallthru
        _
      %p284 = scmp.le.s32.totalorder 1, %s17
      %p285 = scmp.lt.s32.totalorder %s17, 7
      %p286 = pnand %p284, %p285
      %p287 = pneg %p286
      // Predicated region
      $region48: #{pcb_ibn_head.1} parent=5 // pred_check
        _
      $region49: #{pcb_ibn_head.1} parent=5 // pred_check_branch
        %289 = sbr.rel (%p286) target = $region51
      $region50: #{pcb_ibn_head.1} parent=5 // pred_region
        %s290 = ssub.s32 %s17, 1
        %s291 = sand.u32 %s30, 1
        %s292 = sand.u32 %s30, 1
        %s293 = smul.addr %s292, 256
        %s294 = scalar_lea.vmem [#allocation2], %s293
        // Predicated region
        $region52: #{pcb_ibn_head.1} parent=50 // pred_check
          %p295 = pneg %p43
        $region53: #{pcb_ibn_head.1} parent=50 // pred_check_branch
          %297 = sbr.rel (%p295) target = $region55
        $region54: #{pcb_ibn_head.1} parent=50 // pred_region
          _
        $region55: #{pcb_ibn_head.1} parent=50 // pred_fallthru
          _
        %s298 = sand.u32 %s56, 1
        %s299 = scalar_lea.sflag [#allocation4], %s298
        %s300 = sand.u32 %s56, 1
        %s301 = smul.addr %s300, 4096
        %s302 = scalar_lea.vmem [#allocation3], %s301
        // Predicated region
        $region56: #{pcb_ibn_head.1} parent=50 // pred_check
          %p303 = pneg %p69
        $region57: #{pcb_ibn_head.1} parent=50 // pred_check_branch
          %305 = sbr.rel (%p303) target = $region59
        $region58: #{pcb_ibn_head.1} parent=50 // pred_region
          %306 = dma.done %s299, 65536
        $region59: #{pcb_ibn_head.1} parent=50 // pred_fallthru
          _
        %s307 = sand.u32 %s30, 1
        %s308 = sand.u32 %s30, 1
        %s309 = smul.addr %s308, 256
        %s310 = scalar_lea.vmem [#allocation2], %s309
        %p311 = pneg %p43
        %p312 = pneg %p40
        %s313 = sand.u32 %s56, 1
        %s314 = scalar_lea.sflag [#allocation4], %s313
        %s315 = sand.u32 %s56, 1
        %s316 = smul.addr %s315, 4096
        %s317 = scalar_lea.vmem [#allocation3], %s316
        %p318 = pneg %p69
        %p319 = pneg %p66
        %p320 = scmp.lt.s32.totalorder %s22, 5
        %s321 = scalar_select %p320, %s22, 5
        %s322 = smul.addr %s321, 4
        %s323 = smul.addr %s322, 2
        %s324 = scalar_lea.vmem %s2, %s323
        %p325 = pneg %p95
        %p326 = pneg %p92
        %p327 = pneg %p121
        %p328 = pneg %p118
        %s329 = sand.u32 %s108, 1
        %s330 = scalar_lea.sflag [#allocation5], %s329
        %s331 = sand.u32 %s108, 1
        %s332 = smul.addr %s331, 8
        %s333 = scalar_lea.vmem [#allocation6], %s332
        %p334 = pneg %p147
        %p335 = pneg %p144
        %p336 = scmp.lt.s32.totalorder %s22, 5
        %s337 = scalar_select %p336, %s22, 5
        %s338 = smul.addr %s337, 16
        %s339 = smul.addr %s338, 2
        %s340 = scalar_lea.vmem %s4, %s339
        %p341 = scmp.lt.s32.totalorder %s22, 5
        %s342 = scalar_select %p341, %s22, 5
        %s343 = smul.addr %s342, 4
        %s344 = smul.addr %s343, 2
        %s345 = scalar_lea.vmem %s2, %s344
        %p346 = scmp.lt.s32.totalorder %s22, 5
        %s347 = scalar_select %p346, %s22, 5
        %s348 = smul.addr %s347, 16
        %s349 = smul.addr %s348, 2
        %s350 = scalar_lea.vmem %s4, %s349
        %v351 = vld [vmem:[%s294] sm:$0xff]
        %v352 = vld [vmem:[%s294 + $0x8] sm:$0xff]
        %v353 = vld [vmem:[%s294 + $0x10] sm:$0xff]
        %v354 = vld [vmem:[%s294 + $0x18] sm:$0xff]
        %v355 = vld [vmem:[%s294 + $0x20] sm:$0xff]
        %v356 = vld [vmem:[%s294 + $0x28] sm:$0xff]
        %v357 = vld [vmem:[%s294 + $0x30] sm:$0xff]
        %v358 = vld [vmem:[%s294 + $0x38] sm:$0xff]
        %v359 = vld [vmem:[%s294 + $0x40] sm:$0xff]
        %v360 = vld [vmem:[%s294 + $0x48] sm:$0xff]
        %v361 = vld [vmem:[%s294 + $0x50] sm:$0xff]
        %v362 = vld [vmem:[%s294 + $0x58] sm:$0xff]
        %v363 = vld [vmem:[%s294 + $0x60] sm:$0xff]
        %v364 = vld [vmem:[%s294 + $0x68] sm:$0xff]
        %v365 = vld [vmem:[%s294 + $0x70] sm:$0xff]
        %v366 = vld [vmem:[%s294 + $0x78] sm:$0xff]
        %v367 = vld [vmem:[%s294 + $0x80] sm:$0xff]
        %v368 = vld [vmem:[%s294 + $0x88] sm:$0xff]
        %v369 = vld [vmem:[%s294 + $0x90] sm:$0xff]
        %v370 = vld [vmem:[%s294 + $0x98] sm:$0xff]
        %v371 = vld [vmem:[%s294 + $0xa0] sm:$0xff]
        %v372 = vld [vmem:[%s294 + $0xa8] sm:$0xff]
        %v373 = vld [vmem:[%s294 + $0xb0] sm:$0xff]
        %v374 = vld [vmem:[%s294 + $0xb8] sm:$0xff]
        %v375 = vld [vmem:[%s294 + $0xc0] sm:$0xff]
        %v376 = vld [vmem:[%s294 + $0xc8] sm:$0xff]
        %v377 = vld [vmem:[%s294 + $0xd0] sm:$0xff]
        %v378 = vld [vmem:[%s294 + $0xd8] sm:$0xff]
        %v379 = vld [vmem:[%s294 + $0xe0] sm:$0xff]
        %v380 = vld [vmem:[%s294 + $0xe8] sm:$0xff]
        %v381 = vld [vmem:[%s294 + $0xf0] sm:$0xff]
        %v382 = vld [vmem:[%s294 + $0xf8] sm:$0xff]
        %v383 = vrot.slane %v351, 4
        %v384 = vadd.f32 %v351, %v383
        %v385 = vrot.slane %v384, 2
        %v386 = vadd.f32 %v384, %v385
        %v387 = vrot.slane %v386, 1
        %v388 = vadd.f32 %v386, %v387
        %v389 = vrot.slane %v352, 4
        %v390 = vadd.f32 %v352, %v389
        %v391 = vrot.slane %v390, 2
        %v392 = vadd.f32 %v390, %v391
        %v393 = vrot.slane %v392, 1
        %v394 = vadd.f32 %v392, %v393
        %v395 = vrot.slane %v353, 4
        %v396 = vadd.f32 %v353, %v395
        %v397 = vrot.slane %v396, 2
        %v398 = vadd.f32 %v396, %v397
        %v399 = vrot.slane %v398, 1
        %v400 = vadd.f32 %v398, %v399
        %v401 = vrot.slane %v354, 4
        %v402 = vadd.f32 %v354, %v401
        %v403 = vrot.slane %v402, 2
        %v404 = vadd.f32 %v402, %v403
        %v405 = vrot.slane %v404, 1
        %v406 = vadd.f32 %v404, %v405
        %v407 = vrot.slane %v355, 4
        %v408 = vadd.f32 %v355, %v407
        %v409 = vrot.slane %v408, 2
        %v410 = vadd.f32 %v408, %v409
        %v411 = vrot.slane %v410, 1
        %v412 = vadd.f32 %v410, %v411
        %v413 = vrot.slane %v356, 4
        %v414 = vadd.f32 %v356, %v413
        %v415 = vrot.slane %v414, 2
        %v416 = vadd.f32 %v414, %v415
        %v417 = vrot.slane %v416, 1
        %v418 = vadd.f32 %v416, %v417
        %v419 = vrot.slane %v357, 4
        %v420 = vadd.f32 %v357, %v419
        %v421 = vrot.slane %v420, 2
        %v422 = vadd.f32 %v420, %v421
        %v423 = vrot.slane %v422, 1
        %v424 = vadd.f32 %v422, %v423
        %v425 = vrot.slane %v358, 4
        %v426 = vadd.f32 %v358, %v425
        %v427 = vrot.slane %v426, 2
        %v428 = vadd.f32 %v426, %v427
        %v429 = vrot.slane %v428, 1
        %v430 = vadd.f32 %v428, %v429
        %v431 = vrot.slane %v359, 4
        %v432 = vadd.f32 %v359, %v431
        %v433 = vrot.slane %v432, 2
        %v434 = vadd.f32 %v432, %v433
        %v435 = vrot.slane %v434, 1
        %v436 = vadd.f32 %v434, %v435
        %v437 = vrot.slane %v360, 4
        %v438 = vadd.f32 %v360, %v437
        %v439 = vrot.slane %v438, 2
        %v440 = vadd.f32 %v438, %v439
        %v441 = vrot.slane %v440, 1
        %v442 = vadd.f32 %v440, %v441
        %v443 = vrot.slane %v361, 4
        %v444 = vadd.f32 %v361, %v443
        %v445 = vrot.slane %v444, 2
        %v446 = vadd.f32 %v444, %v445
        %v447 = vrot.slane %v446, 1
        %v448 = vadd.f32 %v446, %v447
        %v449 = vrot.slane %v362, 4
        %v450 = vadd.f32 %v362, %v449
        %v451 = vrot.slane %v450, 2
        %v452 = vadd.f32 %v450, %v451
        %v453 = vrot.slane %v452, 1
        %v454 = vadd.f32 %v452, %v453
        %v455 = vrot.slane %v363, 4
        %v456 = vadd.f32 %v363, %v455
        %v457 = vrot.slane %v456, 2
        %v458 = vadd.f32 %v456, %v457
        %v459 = vrot.slane %v458, 1
        %v460 = vadd.f32 %v458, %v459
        %v461 = vrot.slane %v364, 4
        %v462 = vadd.f32 %v364, %v461
        %v463 = vrot.slane %v462, 2
        %v464 = vadd.f32 %v462, %v463
        %v465 = vrot.slane %v464, 1
        %v466 = vadd.f32 %v464, %v465
        %v467 = vrot.slane %v365, 4
        %v468 = vadd.f32 %v365, %v467
        %v469 = vrot.slane %v468, 2
        %v470 = vadd.f32 %v468, %v469
        %v471 = vrot.slane %v470, 1
        %v472 = vadd.f32 %v470, %v471
        %v473 = vrot.slane %v366, 4
        %v474 = vadd.f32 %v366, %v473
        %v475 = vrot.slane %v474, 2
        %v476 = vadd.f32 %v474, %v475
        %v477 = vrot.slane %v476, 1
        %v478 = vadd.f32 %v476, %v477
        %v479 = vrot.slane %v367, 4
        %v480 = vadd.f32 %v367, %v479
        %v481 = vrot.slane %v480, 2
        %v482 = vadd.f32 %v480, %v481
        %v483 = vrot.slane %v482, 1
        %v484 = vadd.f32 %v482, %v483
        %v485 = vrot.slane %v368, 4
        %v486 = vadd.f32 %v368, %v485
        %v487 = vrot.slane %v486, 2
        %v488 = vadd.f32 %v486, %v487
        %v489 = vrot.slane %v488, 1
        %v490 = vadd.f32 %v488, %v489
        %v491 = vrot.slane %v369, 4
        %v492 = vadd.f32 %v369, %v491
        %v493 = vrot.slane %v492, 2
        %v494 = vadd.f32 %v492, %v493
        %v495 = vrot.slane %v494, 1
        %v496 = vadd.f32 %v494, %v495
        %v497 = vrot.slane %v370, 4
        %v498 = vadd.f32 %v370, %v497
        %v499 = vrot.slane %v498, 2
        %v500 = vadd.f32 %v498, %v499
        %v501 = vrot.slane %v500, 1
        %v502 = vadd.f32 %v500, %v501
        %v503 = vrot.slane %v371, 4
        %v504 = vadd.f32 %v371, %v503
        %v505 = vrot.slane %v504, 2
        %v506 = vadd.f32 %v504, %v505
        %v507 = vrot.slane %v506, 1
        %v508 = vadd.f32 %v506, %v507
        %v509 = vrot.slane %v372, 4
        %v510 = vadd.f32 %v372, %v509
        %v511 = vrot.slane %v510, 2
        %v512 = vadd.f32 %v510, %v511
        %v513 = vrot.slane %v512, 1
        %v514 = vadd.f32 %v512, %v513
        %v515 = vrot.slane %v373, 4
        %v516 = vadd.f32 %v373, %v515
        %v517 = vrot.slane %v516, 2
        %v518 = vadd.f32 %v516, %v517
        %v519 = vrot.slane %v518, 1
        %v520 = vadd.f32 %v518, %v519
        %v521 = vrot.slane %v374, 4
        %v522 = vadd.f32 %v374, %v521
        %v523 = vrot.slane %v522, 2
        %v524 = vadd.f32 %v522, %v523
        %v525 = vrot.slane %v524, 1
        %v526 = vadd.f32 %v524, %v525
        %v527 = vrot.slane %v375, 4
        %v528 = vadd.f32 %v375, %v527
        %v529 = vrot.slane %v528, 2
        %v530 = vadd.f32 %v528, %v529
        %v531 = vrot.slane %v530, 1
        %v532 = vadd.f32 %v530, %v531
        %v533 = vrot.slane %v376, 4
        %v534 = vadd.f32 %v376, %v533
        %v535 = vrot.slane %v534, 2
        %v536 = vadd.f32 %v534, %v535
        %v537 = vrot.slane %v536, 1
        %v538 = vadd.f32 %v536, %v537
        %v539 = vrot.slane %v377, 4
        %v540 = vadd.f32 %v377, %v539
        %v541 = vrot.slane %v540, 2
        %v542 = vadd.f32 %v540, %v541
        %v543 = vrot.slane %v542, 1
        %v544 = vadd.f32 %v542, %v543
        %v545 = vrot.slane %v378, 4
        %v546 = vadd.f32 %v378, %v545
        %v547 = vrot.slane %v546, 2
        %v548 = vadd.f32 %v546, %v547
        %v549 = vrot.slane %v548, 1
        %v550 = vadd.f32 %v548, %v549
        %v551 = vrot.slane %v379, 4
        %v552 = vadd.f32 %v379, %v551
        %v553 = vrot.slane %v552, 2
        %v554 = vadd.f32 %v552, %v553
        %v555 = vrot.slane %v554, 1
        %v556 = vadd.f32 %v554, %v555
        %v557 = vrot.slane %v380, 4
        %v558 = vadd.f32 %v380, %v557
        %v559 = vrot.slane %v558, 2
        %v560 = vadd.f32 %v558, %v559
        %v561 = vrot.slane %v560, 1
        %v562 = vadd.f32 %v560, %v561
        %v563 = vrot.slane %v381, 4
        %v564 = vadd.f32 %v381, %v563
        %v565 = vrot.slane %v564, 2
        %v566 = vadd.f32 %v564, %v565
        %v567 = vrot.slane %v566, 1
        %v568 = vadd.f32 %v566, %v567
        %v569 = vrot.slane %v382, 4
        %v570 = vadd.f32 %v382, %v569
        %v571 = vrot.slane %v570, 2
        %v572 = vadd.f32 %v570, %v571
        %v573 = vrot.slane %v572, 1
        %v574 = vadd.f32 %v572, %v573
        %v575 = vrcp.pop 8.0
        %v576 = vmul.f32 %v388, %v575
        %v577 = vmul.f32 %v394, %v575
        %v578 = vmul.f32 %v400, %v575
        %v579 = vmul.f32 %v406, %v575
        %v580 = vmul.f32 %v412, %v575
        %v581 = vmul.f32 %v418, %v575
        %v582 = vmul.f32 %v424, %v575
        %v583 = vmul.f32 %v430, %v575
        %v584 = vmul.f32 %v436, %v575
        %v585 = vmul.f32 %v442, %v575
        %v586 = vmul.f32 %v448, %v575
        %v587 = vmul.f32 %v454, %v575
        %v588 = vmul.f32 %v460, %v575
        %v589 = vmul.f32 %v466, %v575
        %v590 = vmul.f32 %v472, %v575
        %v591 = vmul.f32 %v478, %v575
        %v592 = vmul.f32 %v484, %v575
        %v593 = vmul.f32 %v490, %v575
        %v594 = vmul.f32 %v496, %v575
        %v595 = vmul.f32 %v502, %v575
        %v596 = vmul.f32 %v508, %v575
        %v597 = vmul.f32 %v514, %v575
        %v598 = vmul.f32 %v520, %v575
        %v599 = vmul.f32 %v526, %v575
        %v600 = vmul.f32 %v532, %v575
        %v601 = vmul.f32 %v538, %v575
        %v602 = vmul.f32 %v544, %v575
        %v603 = vmul.f32 %v550, %v575
        %v604 = vmul.f32 %v556, %v575
        %v605 = vmul.f32 %v562, %v575
        %v606 = vmul.f32 %v568, %v575
        %v607 = vmul.f32 %v574, %v575
        %v640 = vcombine.low %v576, %v577
        %v641 = vcombine.low %v578, %v579
        %v643 = vunpack.c.l.s4 1983009808
        %v644 = vunpack.c.0.s8 %v643
        %v645 = vlaneseq
        %v646 = vshrl.u32 %v645, 7
        %v647 = vsub.s32 %v644, %v646
        %v648 = vrot.slane %v640, %v647
        %v650 = vunpack.c.l.s4 1983009808
        %v651 = vunpack.c.0.s8 %v650
        %v652 = vlaneseq
        %v653 = vshrl.u32 %v652, 7
        %v654 = vsub.s32 %v651, %v653
        %v655 = vrot.slane %v641, %v654
        %v656 = vcombine.low %v648, %v655
        %v657 = vcombine.low %v580, %v581
        %v658 = vcombine.low %v582, %v583
        %v660 = vunpack.c.l.s4 1983009808
        %v661 = vunpack.c.0.s8 %v660
        %v662 = vlaneseq
        %v663 = vshrl.u32 %v662, 7
        %v664 = vsub.s32 %v661, %v663
        %v665 = vrot.slane %v657, %v664
        %v667 = vunpack.c.l.s4 1983009808
        %v668 = vunpack.c.0.s8 %v667
        %v669 = vlaneseq
        %v670 = vshrl.u32 %v669, 7
        %v671 = vsub.s32 %v668, %v670
        %v672 = vrot.slane %v658, %v671
        %v673 = vcombine.low %v665, %v672
        %v674 = vcombine.low %v584, %v585
        %v675 = vcombine.low %v586, %v587
        %v677 = vunpack.c.l.s4 1983009808
        %v678 = vunpack.c.0.s8 %v677
        %v679 = vlaneseq
        %v680 = vshrl.u32 %v679, 7
        %v681 = vsub.s32 %v678, %v680
        %v682 = vrot.slane %v674, %v681
        %v684 = vunpack.c.l.s4 1983009808
        %v685 = vunpack.c.0.s8 %v684
        %v686 = vlaneseq
        %v687 = vshrl.u32 %v686, 7
        %v688 = vsub.s32 %v685, %v687
        %v689 = vrot.slane %v675, %v688
        %v690 = vcombine.low %v682, %v689
        %v691 = vcombine.low %v588, %v589
        %v692 = vcombine.low %v590, %v591
        %v694 = vunpack.c.l.s4 1983009808
        %v695 = vunpack.c.0.s8 %v694
        %v696 = vlaneseq
        %v697 = vshrl.u32 %v696, 7
        %v698 = vsub.s32 %v695, %v697
        %v699 = vrot.slane %v691, %v698
        %v701 = vunpack.c.l.s4 1983009808
        %v702 = vunpack.c.0.s8 %v701
        %v703 = vlaneseq
        %v704 = vshrl.u32 %v703, 7
        %v705 = vsub.s32 %v702, %v704
        %v706 = vrot.slane %v692, %v705
        %v707 = vcombine.low %v699, %v706
        %v708 = vcombine.low %v592, %v593
        %v709 = vcombine.low %v594, %v595
        %v711 = vunpack.c.l.s4 1983009808
        %v712 = vunpack.c.0.s8 %v711
        %v713 = vlaneseq
        %v714 = vshrl.u32 %v713, 7
        %v715 = vsub.s32 %v712, %v714
        %v716 = vrot.slane %v708, %v715
        %v718 = vunpack.c.l.s4 1983009808
        %v719 = vunpack.c.0.s8 %v718
        %v720 = vlaneseq
        %v721 = vshrl.u32 %v720, 7
        %v722 = vsub.s32 %v719, %v721
        %v723 = vrot.slane %v709, %v722
        %v724 = vcombine.low %v716, %v723
        %v725 = vcombine.low %v596, %v597
        %v726 = vcombine.low %v598, %v599
        %v728 = vunpack.c.l.s4 1983009808
        %v729 = vunpack.c.0.s8 %v728
        %v730 = vlaneseq
        %v731 = vshrl.u32 %v730, 7
        %v732 = vsub.s32 %v729, %v731
        %v733 = vrot.slane %v725, %v732
        %v735 = vunpack.c.l.s4 1983009808
        %v736 = vunpack.c.0.s8 %v735
        %v737 = vlaneseq
        %v738 = vshrl.u32 %v737, 7
        %v739 = vsub.s32 %v736, %v738
        %v740 = vrot.slane %v726, %v739
        %v741 = vcombine.low %v733, %v740
        %v742 = vcombine.low %v600, %v601
        %v743 = vcombine.low %v602, %v603
        %v745 = vunpack.c.l.s4 1983009808
        %v746 = vunpack.c.0.s8 %v745
        %v747 = vlaneseq
        %v748 = vshrl.u32 %v747, 7
        %v749 = vsub.s32 %v746, %v748
        %v750 = vrot.slane %v742, %v749
        %v752 = vunpack.c.l.s4 1983009808
        %v753 = vunpack.c.0.s8 %v752
        %v754 = vlaneseq
        %v755 = vshrl.u32 %v754, 7
        %v756 = vsub.s32 %v753, %v755
        %v757 = vrot.slane %v743, %v756
        %v758 = vcombine.low %v750, %v757
        %v759 = vcombine.low %v604, %v605
        %v760 = vcombine.low %v606, %v607
        %v762 = vunpack.c.l.s4 1983009808
        %v763 = vunpack.c.0.s8 %v762
        %v764 = vlaneseq
        %v765 = vshrl.u32 %v764, 7
        %v766 = vsub.s32 %v763, %v765
        %v767 = vrot.slane %v759, %v766
        %v769 = vunpack.c.l.s4 1983009808
        %v770 = vunpack.c.0.s8 %v769
        %v771 = vlaneseq
        %v772 = vshrl.u32 %v771, 7
        %v773 = vsub.s32 %v770, %v772
        %v774 = vrot.slane %v760, %v773
        %v775 = vcombine.low %v767, %v774
        %vm776 = vcmask 1044484
        %v777 = vsel %vm776, %v656, %v656
        %vm778 = vcmask 1046534
        %v779 = vsel %vm778, %v656, %v777
        %v780 = vrot.slane %v724, 7
        %vm781 = vcmask 1041409
        %v782 = vsel %vm781, %v780, %v779
        %vm783 = vcmask 1043459
        %v784 = vsel %vm783, %v780, %v782
        %vm785 = vcmask 1045509
        %v786 = vsel %vm785, %v780, %v784
        %vm787 = vcmask 1047559
        %v788 = vsel %vm787, %v780, %v786
        %v789 = vsel %vm776, %v673, %v673
        %v790 = vsel %vm778, %v673, %v789
        %v791 = vrot.slane %v741, 7
        %v792 = vsel %vm781, %v791, %v790
        %v793 = vsel %vm783, %v791, %v792
        %v794 = vsel %vm785, %v791, %v793
        %v795 = vsel %vm787, %v791, %v794
        %v796 = vsel %vm776, %v690, %v690
        %v797 = vsel %vm778, %v690, %v796
        %v798 = vrot.slane %v758, 7
        %v799 = vsel %vm781, %v798, %v797
        %v800 = vsel %vm783, %v798, %v799
        %v801 = vsel %vm785, %v798, %v800
        %v802 = vsel %vm787, %v798, %v801
        %v803 = vsel %vm776, %v707, %v707
        %v804 = vsel %vm778, %v707, %v803
        %v805 = vrot.slane %v775, 7
        %v806 = vsel %vm781, %v805, %v804
        %v807 = vsel %vm783, %v805, %v806
        %v808 = vsel %vm785, %v805, %v807
        %v809 = vsel %vm787, %v805, %v808
        %814 = vst [vmem:[%s350] sm:$0xff] %v788
        %815 = vst [vmem:[%s350 + $0x8] sm:$0xff] %v795
        %816 = vst [vmem:[%s350 + $0x10] sm:$0xff] %v802
        %817 = vst [vmem:[%s350 + $0x18] sm:$0xff] %v809
        %v818 = vpack.c.bf16 %v576, %v576
        %v819 = vpack.c.bf16 %v577, %v577
        %v820 = vpack.c.bf16 %v578, %v578
        %v821 = vpack.c.bf16 %v579, %v579
        %v822 = vpack.c.bf16 %v580, %v580
        %v823 = vpack.c.bf16 %v581, %v581
        %v824 = vpack.c.bf16 %v582, %v582
        %v825 = vpack.c.bf16 %v583, %v583
        %v826 = vpack.c.bf16 %v584, %v584
        %v827 = vpack.c.bf16 %v585, %v585
        %v828 = vpack.c.bf16 %v586, %v586
        %v829 = vpack.c.bf16 %v587, %v587
        %v830 = vpack.c.bf16 %v588, %v588
        %v831 = vpack.c.bf16 %v589, %v589
        %v832 = vpack.c.bf16 %v590, %v590
        %v833 = vpack.c.bf16 %v591, %v591
        %v834 = vpack.c.bf16 %v592, %v592
        %v835 = vpack.c.bf16 %v593, %v593
        %v836 = vpack.c.bf16 %v594, %v594
        %v837 = vpack.c.bf16 %v595, %v595
        %v838 = vpack.c.bf16 %v596, %v596
        %v839 = vpack.c.bf16 %v597, %v597
        %v840 = vpack.c.bf16 %v598, %v598
        %v841 = vpack.c.bf16 %v599, %v599
        %v842 = vpack.c.bf16 %v600, %v600
        %v843 = vpack.c.bf16 %v601, %v601
        %v844 = vpack.c.bf16 %v602, %v602
        %v845 = vpack.c.bf16 %v603, %v603
        %v846 = vpack.c.bf16 %v604, %v604
        %v847 = vpack.c.bf16 %v605, %v605
        %v848 = vpack.c.bf16 %v606, %v606
        %v849 = vpack.c.bf16 %v607, %v607
        %v850 = vld [vmem:[%s302] sm:$0xff]
        %v851 = vld [vmem:[%s302 + $0x8] sm:$0xff]
        %v852 = vld [vmem:[%s302 + $0x10] sm:$0xff]
        %v853 = vld [vmem:[%s302 + $0x18] sm:$0xff]
        %v854 = vld [vmem:[%s302 + $0x20] sm:$0xff]
        %v855 = vld [vmem:[%s302 + $0x28] sm:$0xff]
        %v856 = vld [vmem:[%s302 + $0x30] sm:$0xff]
        %v857 = vld [vmem:[%s302 + $0x38] sm:$0xff]
        %v858 = vld [vmem:[%s302 + $0x40] sm:$0xff]
        %v859 = vld [vmem:[%s302 + $0x48] sm:$0xff]
        %v860 = vld [vmem:[%s302 + $0x50] sm:$0xff]
        %v861 = vld [vmem:[%s302 + $0x58] sm:$0xff]
        %v862 = vld [vmem:[%s302 + $0x60] sm:$0xff]
        %v863 = vld [vmem:[%s302 + $0x68] sm:$0xff]
        %v864 = vld [vmem:[%s302 + $0x70] sm:$0xff]
        %v865 = vld [vmem:[%s302 + $0x78] sm:$0xff]
        %v866 = vld [vmem:[%s302 + $0x80] sm:$0xff]
        %v867 = vld [vmem:[%s302 + $0x88] sm:$0xff]
        %v868 = vld [vmem:[%s302 + $0x90] sm:$0xff]
        %v869 = vld [vmem:[%s302 + $0x98] sm:$0xff]
        %v870 = vld [vmem:[%s302 + $0xa0] sm:$0xff]
        %v871 = vld [vmem:[%s302 + $0xa8] sm:$0xff]
        %v872 = vld [vmem:[%s302 + $0xb0] sm:$0xff]
        %v873 = vld [vmem:[%s302 + $0xb8] sm:$0xff]
        %v874 = vld [vmem:[%s302 + $0xc0] sm:$0xff]
        %v875 = vld [vmem:[%s302 + $0xc8] sm:$0xff]
        %v876 = vld [vmem:[%s302 + $0xd0] sm:$0xff]
        %v877 = vld [vmem:[%s302 + $0xd8] sm:$0xff]
        %v878 = vld [vmem:[%s302 + $0xe0] sm:$0xff]
        %v879 = vld [vmem:[%s302 + $0xe8] sm:$0xff]
        %v880 = vld [vmem:[%s302 + $0xf0] sm:$0xff]
        %v881 = vld [vmem:[%s302 + $0xf8] sm:$0xff]
        %v882 = vld [vmem:[%s302 + $0x100] sm:$0xff]
        %v883 = vld [vmem:[%s302 + $0x108] sm:$0xff]
        %v884 = vld [vmem:[%s302 + $0x110] sm:$0xff]
        %v885 = vld [vmem:[%s302 + $0x118] sm:$0xff]
        %v886 = vld [vmem:[%s302 + $0x120] sm:$0xff]
        %v887 = vld [vmem:[%s302 + $0x128] sm:$0xff]
        %v888 = vld [vmem:[%s302 + $0x130] sm:$0xff]
        %v889 = vld [vmem:[%s302 + $0x138] sm:$0xff]
        %v890 = vld [vmem:[%s302 + $0x140] sm:$0xff]
        %v891 = vld [vmem:[%s302 + $0x148] sm:$0xff]
        %v892 = vld [vmem:[%s302 + $0x150] sm:$0xff]
        %v893 = vld [vmem:[%s302 + $0x158] sm:$0xff]
        %v894 = vld [vmem:[%s302 + $0x160] sm:$0xff]
        %v895 = vld [vmem:[%s302 + $0x168] sm:$0xff]
        %v896 = vld [vmem:[%s302 + $0x170] sm:$0xff]
        %v897 = vld [vmem:[%s302 + $0x178] sm:$0xff]
        %v898 = vld [vmem:[%s302 + $0x180] sm:$0xff]
        %v899 = vld [vmem:[%s302 + $0x188] sm:$0xff]
        %v900 = vld [vmem:[%s302 + $0x190] sm:$0xff]
        %v901 = vld [vmem:[%s302 + $0x198] sm:$0xff]
        %v902 = vld [vmem:[%s302 + $0x1a0] sm:$0xff]
        %v903 = vld [vmem:[%s302 + $0x1a8] sm:$0xff]
        %v904 = vld [vmem:[%s302 + $0x1b0] sm:$0xff]
        %v905 = vld [vmem:[%s302 + $0x1b8] sm:$0xff]
        %v906 = vld [vmem:[%s302 + $0x1c0] sm:$0xff]
        %v907 = vld [vmem:[%s302 + $0x1c8] sm:$0xff]
        %v908 = vld [vmem:[%s302 + $0x1d0] sm:$0xff]
        %v909 = vld [vmem:[%s302 + $0x1d8] sm:$0xff]
        %v910 = vld [vmem:[%s302 + $0x1e0] sm:$0xff]
        %v911 = vld [vmem:[%s302 + $0x1e8] sm:$0xff]
        %v912 = vld [vmem:[%s302 + $0x1f0] sm:$0xff]
        %v913 = vld [vmem:[%s302 + $0x1f8] sm:$0xff]
        %v914 = vld [vmem:[%s302 + $0x200] sm:$0xff]
        %v915 = vld [vmem:[%s302 + $0x208] sm:$0xff]
        %v916 = vld [vmem:[%s302 + $0x210] sm:$0xff]
        %v917 = vld [vmem:[%s302 + $0x218] sm:$0xff]
        %v918 = vld [vmem:[%s302 + $0x220] sm:$0xff]
        %v919 = vld [vmem:[%s302 + $0x228] sm:$0xff]
        %v920 = vld [vmem:[%s302 + $0x230] sm:$0xff]
        %v921 = vld [vmem:[%s302 + $0x238] sm:$0xff]
        %v922 = vld [vmem:[%s302 + $0x240] sm:$0xff]
        %v923 = vld [vmem:[%s302 + $0x248] sm:$0xff]
        %v924 = vld [vmem:[%s302 + $0x250] sm:$0xff]
        %v925 = vld [vmem:[%s302 + $0x258] sm:$0xff]
        %v926 = vld [vmem:[%s302 + $0x260] sm:$0xff]
        %v927 = vld [vmem:[%s302 + $0x268] sm:$0xff]
        %v928 = vld [vmem:[%s302 + $0x270] sm:$0xff]
        %v929 = vld [vmem:[%s302 + $0x278] sm:$0xff]
        %v930 = vld [vmem:[%s302 + $0x280] sm:$0xff]
        %v931 = vld [vmem:[%s302 + $0x288] sm:$0xff]
        %v932 = vld [vmem:[%s302 + $0x290] sm:$0xff]
        %v933 = vld [vmem:[%s302 + $0x298] sm:$0xff]
        %v934 = vld [vmem:[%s302 + $0x2a0] sm:$0xff]
        %v935 = vld [vmem:[%s302 + $0x2a8] sm:$0xff]
        %v936 = vld [vmem:[%s302 + $0x2b0] sm:$0xff]
        %v937 = vld [vmem:[%s302 + $0x2b8] sm:$0xff]
        %v938 = vld [vmem:[%s302 + $0x2c0] sm:$0xff]
        %v939 = vld [vmem:[%s302 + $0x2c8] sm:$0xff]
        %v940 = vld [vmem:[%s302 + $0x2d0] sm:$0xff]
        %v941 = vld [vmem:[%s302 + $0x2d8] sm:$0xff]
        %v942 = vld [vmem:[%s302 + $0x2e0] sm:$0xff]
        %v943 = vld [vmem:[%s302 + $0x2e8] sm:$0xff]
        %v944 = vld [vmem:[%s302 + $0x2f0] sm:$0xff]
        %v945 = vld [vmem:[%s302 + $0x2f8] sm:$0xff]
        %v946 = vld [vmem:[%s302 + $0x300] sm:$0xff]
        %v947 = vld [vmem:[%s302 + $0x308] sm:$0xff]
        %v948 = vld [vmem:[%s302 + $0x310] sm:$0xff]
        %v949 = vld [vmem:[%s302 + $0x318] sm:$0xff]
        %v950 = vld [vmem:[%s302 + $0x320] sm:$0xff]
        %v951 = vld [vmem:[%s302 + $0x328] sm:$0xff]
        %v952 = vld [vmem:[%s302 + $0x330] sm:$0xff]
        %v953 = vld [vmem:[%s302 + $0x338] sm:$0xff]
        %v954 = vld [vmem:[%s302 + $0x340] sm:$0xff]
        %v955 = vld [vmem:[%s302 + $0x348] sm:$0xff]
        %v956 = vld [vmem:[%s302 + $0x350] sm:$0xff]
        %v957 = vld [vmem:[%s302 + $0x358] sm:$0xff]
        %v958 = vld [vmem:[%s302 + $0x360] sm:$0xff]
        %v959 = vld [vmem:[%s302 + $0x368] sm:$0xff]
        %v960 = vld [vmem:[%s302 + $0x370] sm:$0xff]
        %v961 = vld [vmem:[%s302 + $0x378] sm:$0xff]
        %v962 = vld [vmem:[%s302 + $0x380] sm:$0xff]
        %v963 = vld [vmem:[%s302 + $0x388] sm:$0xff]
        %v964 = vld [vmem:[%s302 + $0x390] sm:$0xff]
        %v965 = vld [vmem:[%s302 + $0x398] sm:$0xff]
        %v966 = vld [vmem:[%s302 + $0x3a0] sm:$0xff]
        %v967 = vld [vmem:[%s302 + $0x3a8] sm:$0xff]
        %v968 = vld [vmem:[%s302 + $0x3b0] sm:$0xff]
        %v969 = vld [vmem:[%s302 + $0x3b8] sm:$0xff]
        %v970 = vld [vmem:[%s302 + $0x3c0] sm:$0xff]
        %v971 = vld [vmem:[%s302 + $0x3c8] sm:$0xff]
        %v972 = vld [vmem:[%s302 + $0x3d0] sm:$0xff]
        %v973 = vld [vmem:[%s302 + $0x3d8] sm:$0xff]
        %v974 = vld [vmem:[%s302 + $0x3e0] sm:$0xff]
        %v975 = vld [vmem:[%s302 + $0x3e8] sm:$0xff]
        %v976 = vld [vmem:[%s302 + $0x3f0] sm:$0xff]
        %v977 = vld [vmem:[%s302 + $0x3f8] sm:$0xff]
        %v978 = vld [vmem:[%s302 + $0x400] sm:$0xff]
        %v979 = vld [vmem:[%s302 + $0x408] sm:$0xff]
        %v980 = vld [vmem:[%s302 + $0x410] sm:$0xff]
        %v981 = vld [vmem:[%s302 + $0x418] sm:$0xff]
        %v982 = vld [vmem:[%s302 + $0x420] sm:$0xff]
        %v983 = vld [vmem:[%s302 + $0x428] sm:$0xff]
        %v984 = vld [vmem:[%s302 + $0x430] sm:$0xff]
        %v985 = vld [vmem:[%s302 + $0x438] sm:$0xff]
        %v986 = vld [vmem:[%s302 + $0x440] sm:$0xff]
        %v987 = vld [vmem:[%s302 + $0x448] sm:$0xff]
        %v988 = vld [vmem:[%s302 + $0x450] sm:$0xff]
        %v989 = vld [vmem:[%s302 + $0x458] sm:$0xff]
        %v990 = vld [vmem:[%s302 + $0x460] sm:$0xff]
        %v991 = vld [vmem:[%s302 + $0x468] sm:$0xff]
        %v992 = vld [vmem:[%s302 + $0x470] sm:$0xff]
        %v993 = vld [vmem:[%s302 + $0x478] sm:$0xff]
        %v994 = vld [vmem:[%s302 + $0x480] sm:$0xff]
        %v995 = vld [vmem:[%s302 + $0x488] sm:$0xff]
        %v996 = vld [vmem:[%s302 + $0x490] sm:$0xff]
        %v997 = vld [vmem:[%s302 + $0x498] sm:$0xff]
        %v998 = vld [vmem:[%s302 + $0x4a0] sm:$0xff]
        %v999 = vld [vmem:[%s302 + $0x4a8] sm:$0xff]
        %v1000 = vld [vmem:[%s302 + $0x4b0] sm:$0xff]
        %v1001 = vld [vmem:[%s302 + $0x4b8] sm:$0xff]
        %v1002 = vld [vmem:[%s302 + $0x4c0] sm:$0xff]
        %v1003 = vld [vmem:[%s302 + $0x4c8] sm:$0xff]
        %v1004 = vld [vmem:[%s302 + $0x4d0] sm:$0xff]
        %v1005 = vld [vmem:[%s302 + $0x4d8] sm:$0xff]
        %v1006 = vld [vmem:[%s302 + $0x4e0] sm:$0xff]
        %v1007 = vld [vmem:[%s302 + $0x4e8] sm:$0xff]
        %v1008 = vld [vmem:[%s302 + $0x4f0] sm:$0xff]
        %v1009 = vld [vmem:[%s302 + $0x4f8] sm:$0xff]
        %v1010 = vld [vmem:[%s302 + $0x500] sm:$0xff]
        %v1011 = vld [vmem:[%s302 + $0x508] sm:$0xff]
        %v1012 = vld [vmem:[%s302 + $0x510] sm:$0xff]
        %v1013 = vld [vmem:[%s302 + $0x518] sm:$0xff]
        %v1014 = vld [vmem:[%s302 + $0x520] sm:$0xff]
        %v1015 = vld [vmem:[%s302 + $0x528] sm:$0xff]
        %v1016 = vld [vmem:[%s302 + $0x530] sm:$0xff]
        %v1017 = vld [vmem:[%s302 + $0x538] sm:$0xff]
        %v1018 = vld [vmem:[%s302 + $0x540] sm:$0xff]
        %v1019 = vld [vmem:[%s302 + $0x548] sm:$0xff]
        %v1020 = vld [vmem:[%s302 + $0x550] sm:$0xff]
        %v1021 = vld [vmem:[%s302 + $0x558] sm:$0xff]
        %v1022 = vld [vmem:[%s302 + $0x560] sm:$0xff]
        %v1023 = vld [vmem:[%s302 + $0x568] sm:$0xff]
        %v1024 = vld [vmem:[%s302 + $0x570] sm:$0xff]
        %v1025 = vld [vmem:[%s302 + $0x578] sm:$0xff]
        %v1026 = vld [vmem:[%s302 + $0x580] sm:$0xff]
        %v1027 = vld [vmem:[%s302 + $0x588] sm:$0xff]
        %v1028 = vld [vmem:[%s302 + $0x590] sm:$0xff]
        %v1029 = vld [vmem:[%s302 + $0x598] sm:$0xff]
        %v1030 = vld [vmem:[%s302 + $0x5a0] sm:$0xff]
        %v1031 = vld [vmem:[%s302 + $0x5a8] sm:$0xff]
        %v1032 = vld [vmem:[%s302 + $0x5b0] sm:$0xff]
        %v1033 = vld [vmem:[%s302 + $0x5b8] sm:$0xff]
        %v1034 = vld [vmem:[%s302 + $0x5c0] sm:$0xff]
        %v1035 = vld [vmem:[%s302 + $0x5c8] sm:$0xff]
        %v1036 = vld [vmem:[%s302 + $0x5d0] sm:$0xff]
        %v1037 = vld [vmem:[%s302 + $0x5d8] sm:$0xff]
        %v1038 = vld [vmem:[%s302 + $0x5e0] sm:$0xff]
        %v1039 = vld [vmem:[%s302 + $0x5e8] sm:$0xff]
        %v1040 = vld [vmem:[%s302 + $0x5f0] sm:$0xff]
        %v1041 = vld [vmem:[%s302 + $0x5f8] sm:$0xff]
        %v1042 = vld [vmem:[%s302 + $0x600] sm:$0xff]
        %v1043 = vld [vmem:[%s302 + $0x608] sm:$0xff]
        %v1044 = vld [vmem:[%s302 + $0x610] sm:$0xff]
        %v1045 = vld [vmem:[%s302 + $0x618] sm:$0xff]
        %v1046 = vld [vmem:[%s302 + $0x620] sm:$0xff]
        %v1047 = vld [vmem:[%s302 + $0x628] sm:$0xff]
        %v1048 = vld [vmem:[%s302 + $0x630] sm:$0xff]
        %v1049 = vld [vmem:[%s302 + $0x638] sm:$0xff]
        %v1050 = vld [vmem:[%s302 + $0x640] sm:$0xff]
        %v1051 = vld [vmem:[%s302 + $0x648] sm:$0xff]
        %v1052 = vld [vmem:[%s302 + $0x650] sm:$0xff]
        %v1053 = vld [vmem:[%s302 + $0x658] sm:$0xff]
        %v1054 = vld [vmem:[%s302 + $0x660] sm:$0xff]
        %v1055 = vld [vmem:[%s302 + $0x668] sm:$0xff]
        %v1056 = vld [vmem:[%s302 + $0x670] sm:$0xff]
        %v1057 = vld [vmem:[%s302 + $0x678] sm:$0xff]
        %v1058 = vld [vmem:[%s302 + $0x680] sm:$0xff]
        %v1059 = vld [vmem:[%s302 + $0x688] sm:$0xff]
        %v1060 = vld [vmem:[%s302 + $0x690] sm:$0xff]
        %v1061 = vld [vmem:[%s302 + $0x698] sm:$0xff]
        %v1062 = vld [vmem:[%s302 + $0x6a0] sm:$0xff]
        %v1063 = vld [vmem:[%s302 + $0x6a8] sm:$0xff]
        %v1064 = vld [vmem:[%s302 + $0x6b0] sm:$0xff]
        %v1065 = vld [vmem:[%s302 + $0x6b8] sm:$0xff]
        %v1066 = vld [vmem:[%s302 + $0x6c0] sm:$0xff]
        %v1067 = vld [vmem:[%s302 + $0x6c8] sm:$0xff]
        %v1068 = vld [vmem:[%s302 + $0x6d0] sm:$0xff]
        %v1069 = vld [vmem:[%s302 + $0x6d8] sm:$0xff]
        %v1070 = vld [vmem:[%s302 + $0x6e0] sm:$0xff]
        %v1071 = vld [vmem:[%s302 + $0x6e8] sm:$0xff]
        %v1072 = vld [vmem:[%s302 + $0x6f0] sm:$0xff]
        %v1073 = vld [vmem:[%s302 + $0x6f8] sm:$0xff]
        %v1074 = vld [vmem:[%s302 + $0x700] sm:$0xff]
        %v1075 = vld [vmem:[%s302 + $0x708] sm:$0xff]
        %v1076 = vld [vmem:[%s302 + $0x710] sm:$0xff]
        %v1077 = vld [vmem:[%s302 + $0x718] sm:$0xff]
        %v1078 = vld [vmem:[%s302 + $0x720] sm:$0xff]
        %v1079 = vld [vmem:[%s302 + $0x728] sm:$0xff]
        %v1080 = vld [vmem:[%s302 + $0x730] sm:$0xff]
        %v1081 = vld [vmem:[%s302 + $0x738] sm:$0xff]
        %v1082 = vld [vmem:[%s302 + $0x740] sm:$0xff]
        %v1083 = vld [vmem:[%s302 + $0x748] sm:$0xff]
        %v1084 = vld [vmem:[%s302 + $0x750] sm:$0xff]
        %v1085 = vld [vmem:[%s302 + $0x758] sm:$0xff]
        %v1086 = vld [vmem:[%s302 + $0x760] sm:$0xff]
        %v1087 = vld [vmem:[%s302 + $0x768] sm:$0xff]
        %v1088 = vld [vmem:[%s302 + $0x770] sm:$0xff]
        %v1089 = vld [vmem:[%s302 + $0x778] sm:$0xff]
        %v1090 = vld [vmem:[%s302 + $0x780] sm:$0xff]
        %v1091 = vld [vmem:[%s302 + $0x788] sm:$0xff]
        %v1092 = vld [vmem:[%s302 + $0x790] sm:$0xff]
        %v1093 = vld [vmem:[%s302 + $0x798] sm:$0xff]
        %v1094 = vld [vmem:[%s302 + $0x7a0] sm:$0xff]
        %v1095 = vld [vmem:[%s302 + $0x7a8] sm:$0xff]
        %v1096 = vld [vmem:[%s302 + $0x7b0] sm:$0xff]
        %v1097 = vld [vmem:[%s302 + $0x7b8] sm:$0xff]
        %v1098 = vld [vmem:[%s302 + $0x7c0] sm:$0xff]
        %v1099 = vld [vmem:[%s302 + $0x7c8] sm:$0xff]
        %v1100 = vld [vmem:[%s302 + $0x7d0] sm:$0xff]
        %v1101 = vld [vmem:[%s302 + $0x7d8] sm:$0xff]
        %v1102 = vld [vmem:[%s302 + $0x7e0] sm:$0xff]
        %v1103 = vld [vmem:[%s302 + $0x7e8] sm:$0xff]
        %v1104 = vld [vmem:[%s302 + $0x7f0] sm:$0xff]
        %v1105 = vld [vmem:[%s302 + $0x7f8] sm:$0xff]
        %v1106 = vld [vmem:[%s302 + $0x800] sm:$0xff]
        %v1107 = vld [vmem:[%s302 + $0x808] sm:$0xff]
        %v1108 = vld [vmem:[%s302 + $0x810] sm:$0xff]
        %v1109 = vld [vmem:[%s302 + $0x818] sm:$0xff]
        %v1110 = vld [vmem:[%s302 + $0x820] sm:$0xff]
        %v1111 = vld [vmem:[%s302 + $0x828] sm:$0xff]
        %v1112 = vld [vmem:[%s302 + $0x830] sm:$0xff]
        %v1113 = vld [vmem:[%s302 + $0x838] sm:$0xff]
        %v1114 = vld [vmem:[%s302 + $0x840] sm:$0xff]
        %v1115 = vld [vmem:[%s302 + $0x848] sm:$0xff]
        %v1116 = vld [vmem:[%s302 + $0x850] sm:$0xff]
        %v1117 = vld [vmem:[%s302 + $0x858] sm:$0xff]
        %v1118 = vld [vmem:[%s302 + $0x860] sm:$0xff]
        %v1119 = vld [vmem:[%s302 + $0x868] sm:$0xff]
        %v1120 = vld [vmem:[%s302 + $0x870] sm:$0xff]
        %v1121 = vld [vmem:[%s302 + $0x878] sm:$0xff]
        %v1122 = vld [vmem:[%s302 + $0x880] sm:$0xff]
        %v1123 = vld [vmem:[%s302 + $0x888] sm:$0xff]
        %v1124 = vld [vmem:[%s302 + $0x890] sm:$0xff]
        %v1125 = vld [vmem:[%s302 + $0x898] sm:$0xff]
        %v1126 = vld [vmem:[%s302 + $0x8a0] sm:$0xff]
        %v1127 = vld [vmem:[%s302 + $0x8a8] sm:$0xff]
        %v1128 = vld [vmem:[%s302 + $0x8b0] sm:$0xff]
        %v1129 = vld [vmem:[%s302 + $0x8b8] sm:$0xff]
        %v1130 = vld [vmem:[%s302 + $0x8c0] sm:$0xff]
        %v1131 = vld [vmem:[%s302 + $0x8c8] sm:$0xff]
        %v1132 = vld [vmem:[%s302 + $0x8d0] sm:$0xff]
        %v1133 = vld [vmem:[%s302 + $0x8d8] sm:$0xff]
        %v1134 = vld [vmem:[%s302 + $0x8e0] sm:$0xff]
        %v1135 = vld [vmem:[%s302 + $0x8e8] sm:$0xff]
        %v1136 = vld [vmem:[%s302 + $0x8f0] sm:$0xff]
        %v1137 = vld [vmem:[%s302 + $0x8f8] sm:$0xff]
        %v1138 = vld [vmem:[%s302 + $0x900] sm:$0xff]
        %v1139 = vld [vmem:[%s302 + $0x908] sm:$0xff]
        %v1140 = vld [vmem:[%s302 + $0x910] sm:$0xff]
        %v1141 = vld [vmem:[%s302 + $0x918] sm:$0xff]
        %v1142 = vld [vmem:[%s302 + $0x920] sm:$0xff]
        %v1143 = vld [vmem:[%s302 + $0x928] sm:$0xff]
        %v1144 = vld [vmem:[%s302 + $0x930] sm:$0xff]
        %v1145 = vld [vmem:[%s302 + $0x938] sm:$0xff]
        %v1146 = vld [vmem:[%s302 + $0x940] sm:$0xff]
        %v1147 = vld [vmem:[%s302 + $0x948] sm:$0xff]
        %v1148 = vld [vmem:[%s302 + $0x950] sm:$0xff]
        %v1149 = vld [vmem:[%s302 + $0x958] sm:$0xff]
        %v1150 = vld [vmem:[%s302 + $0x960] sm:$0xff]
        %v1151 = vld [vmem:[%s302 + $0x968] sm:$0xff]
        %v1152 = vld [vmem:[%s302 + $0x970] sm:$0xff]
        %v1153 = vld [vmem:[%s302 + $0x978] sm:$0xff]
        %v1154 = vld [vmem:[%s302 + $0x980] sm:$0xff]
        %v1155 = vld [vmem:[%s302 + $0x988] sm:$0xff]
        %v1156 = vld [vmem:[%s302 + $0x990] sm:$0xff]
        %v1157 = vld [vmem:[%s302 + $0x998] sm:$0xff]
        %v1158 = vld [vmem:[%s302 + $0x9a0] sm:$0xff]
        %v1159 = vld [vmem:[%s302 + $0x9a8] sm:$0xff]
        %v1160 = vld [vmem:[%s302 + $0x9b0] sm:$0xff]
        %v1161 = vld [vmem:[%s302 + $0x9b8] sm:$0xff]
        %v1162 = vld [vmem:[%s302 + $0x9c0] sm:$0xff]
        %v1163 = vld [vmem:[%s302 + $0x9c8] sm:$0xff]
        %v1164 = vld [vmem:[%s302 + $0x9d0] sm:$0xff]
        %v1165 = vld [vmem:[%s302 + $0x9d8] sm:$0xff]
        %v1166 = vld [vmem:[%s302 + $0x9e0] sm:$0xff]
        %v1167 = vld [vmem:[%s302 + $0x9e8] sm:$0xff]
        %v1168 = vld [vmem:[%s302 + $0x9f0] sm:$0xff]
        %v1169 = vld [vmem:[%s302 + $0x9f8] sm:$0xff]
        %v1170 = vld [vmem:[%s302 + $0xa00] sm:$0xff]
        %v1171 = vld [vmem:[%s302 + $0xa08] sm:$0xff]
        %v1172 = vld [vmem:[%s302 + $0xa10] sm:$0xff]
        %v1173 = vld [vmem:[%s302 + $0xa18] sm:$0xff]
        %v1174 = vld [vmem:[%s302 + $0xa20] sm:$0xff]
        %v1175 = vld [vmem:[%s302 + $0xa28] sm:$0xff]
        %v1176 = vld [vmem:[%s302 + $0xa30] sm:$0xff]
        %v1177 = vld [vmem:[%s302 + $0xa38] sm:$0xff]
        %v1178 = vld [vmem:[%s302 + $0xa40] sm:$0xff]
        %v1179 = vld [vmem:[%s302 + $0xa48] sm:$0xff]
        %v1180 = vld [vmem:[%s302 + $0xa50] sm:$0xff]
        %v1181 = vld [vmem:[%s302 + $0xa58] sm:$0xff]
        %v1182 = vld [vmem:[%s302 + $0xa60] sm:$0xff]
        %v1183 = vld [vmem:[%s302 + $0xa68] sm:$0xff]
        %v1184 = vld [vmem:[%s302 + $0xa70] sm:$0xff]
        %v1185 = vld [vmem:[%s302 + $0xa78] sm:$0xff]
        %v1186 = vld [vmem:[%s302 + $0xa80] sm:$0xff]
        %v1187 = vld [vmem:[%s302 + $0xa88] sm:$0xff]
        %v1188 = vld [vmem:[%s302 + $0xa90] sm:$0xff]
        %v1189 = vld [vmem:[%s302 + $0xa98] sm:$0xff]
        %v1190 = vld [vmem:[%s302 + $0xaa0] sm:$0xff]
        %v1191 = vld [vmem:[%s302 + $0xaa8] sm:$0xff]
        %v1192 = vld [vmem:[%s302 + $0xab0] sm:$0xff]
        %v1193 = vld [vmem:[%s302 + $0xab8] sm:$0xff]
        %v1194 = vld [vmem:[%s302 + $0xac0] sm:$0xff]
        %v1195 = vld [vmem:[%s302 + $0xac8] sm:$0xff]
        %v1196 = vld [vmem:[%s302 + $0xad0] sm:$0xff]
        %v1197 = vld [vmem:[%s302 + $0xad8] sm:$0xff]
        %v1198 = vld [vmem:[%s302 + $0xae0] sm:$0xff]
        %v1199 = vld [vmem:[%s302 + $0xae8] sm:$0xff]
        %v1200 = vld [vmem:[%s302 + $0xaf0] sm:$0xff]
        %v1201 = vld [vmem:[%s302 + $0xaf8] sm:$0xff]
        %v1202 = vld [vmem:[%s302 + $0xb00] sm:$0xff]
        %v1203 = vld [vmem:[%s302 + $0xb08] sm:$0xff]
        %v1204 = vld [vmem:[%s302 + $0xb10] sm:$0xff]
        %v1205 = vld [vmem:[%s302 + $0xb18] sm:$0xff]
        %v1206 = vld [vmem:[%s302 + $0xb20] sm:$0xff]
        %v1207 = vld [vmem:[%s302 + $0xb28] sm:$0xff]
        %v1208 = vld [vmem:[%s302 + $0xb30] sm:$0xff]
        %v1209 = vld [vmem:[%s302 + $0xb38] sm:$0xff]
        %v1210 = vld [vmem:[%s302 + $0xb40] sm:$0xff]
        %v1211 = vld [vmem:[%s302 + $0xb48] sm:$0xff]
        %v1212 = vld [vmem:[%s302 + $0xb50] sm:$0xff]
        %v1213 = vld [vmem:[%s302 + $0xb58] sm:$0xff]
        %v1214 = vld [vmem:[%s302 + $0xb60] sm:$0xff]
        %v1215 = vld [vmem:[%s302 + $0xb68] sm:$0xff]
        %v1216 = vld [vmem:[%s302 + $0xb70] sm:$0xff]
        %v1217 = vld [vmem:[%s302 + $0xb78] sm:$0xff]
        %v1218 = vld [vmem:[%s302 + $0xb80] sm:$0xff]
        %v1219 = vld [vmem:[%s302 + $0xb88] sm:$0xff]
        %v1220 = vld [vmem:[%s302 + $0xb90] sm:$0xff]
        %v1221 = vld [vmem:[%s302 + $0xb98] sm:$0xff]
        %v1222 = vld [vmem:[%s302 + $0xba0] sm:$0xff]
        %v1223 = vld [vmem:[%s302 + $0xba8] sm:$0xff]
        %v1224 = vld [vmem:[%s302 + $0xbb0] sm:$0xff]
        %v1225 = vld [vmem:[%s302 + $0xbb8] sm:$0xff]
        %v1226 = vld [vmem:[%s302 + $0xbc0] sm:$0xff]
        %v1227 = vld [vmem:[%s302 + $0xbc8] sm:$0xff]
        %v1228 = vld [vmem:[%s302 + $0xbd0] sm:$0xff]
        %v1229 = vld [vmem:[%s302 + $0xbd8] sm:$0xff]
        %v1230 = vld [vmem:[%s302 + $0xbe0] sm:$0xff]
        %v1231 = vld [vmem:[%s302 + $0xbe8] sm:$0xff]
        %v1232 = vld [vmem:[%s302 + $0xbf0] sm:$0xff]
        %v1233 = vld [vmem:[%s302 + $0xbf8] sm:$0xff]
        %v1234 = vld [vmem:[%s302 + $0xc00] sm:$0xff]
        %v1235 = vld [vmem:[%s302 + $0xc08] sm:$0xff]
        %v1236 = vld [vmem:[%s302 + $0xc10] sm:$0xff]
        %v1237 = vld [vmem:[%s302 + $0xc18] sm:$0xff]
        %v1238 = vld [vmem:[%s302 + $0xc20] sm:$0xff]
        %v1239 = vld [vmem:[%s302 + $0xc28] sm:$0xff]
        %v1240 = vld [vmem:[%s302 + $0xc30] sm:$0xff]
        %v1241 = vld [vmem:[%s302 + $0xc38] sm:$0xff]
        %v1242 = vld [vmem:[%s302 + $0xc40] sm:$0xff]
        %v1243 = vld [vmem:[%s302 + $0xc48] sm:$0xff]
        %v1244 = vld [vmem:[%s302 + $0xc50] sm:$0xff]
        %v1245 = vld [vmem:[%s302 + $0xc58] sm:$0xff]
        %v1246 = vld [vmem:[%s302 + $0xc60] sm:$0xff]
        %v1247 = vld [vmem:[%s302 + $0xc68] sm:$0xff]
        %v1248 = vld [vmem:[%s302 + $0xc70] sm:$0xff]
        %v1249 = vld [vmem:[%s302 + $0xc78] sm:$0xff]
        %v1250 = vld [vmem:[%s302 + $0xc80] sm:$0xff]
        %v1251 = vld [vmem:[%s302 + $0xc88] sm:$0xff]
        %v1252 = vld [vmem:[%s302 + $0xc90] sm:$0xff]
        %v1253 = vld [vmem:[%s302 + $0xc98] sm:$0xff]
        %v1254 = vld [vmem:[%s302 + $0xca0] sm:$0xff]
        %v1255 = vld [vmem:[%s302 + $0xca8] sm:$0xff]
        %v1256 = vld [vmem:[%s302 + $0xcb0] sm:$0xff]
        %v1257 = vld [vmem:[%s302 + $0xcb8] sm:$0xff]
        %v1258 = vld [vmem:[%s302 + $0xcc0] sm:$0xff]
        %v1259 = vld [vmem:[%s302 + $0xcc8] sm:$0xff]
        %v1260 = vld [vmem:[%s302 + $0xcd0] sm:$0xff]
        %v1261 = vld [vmem:[%s302 + $0xcd8] sm:$0xff]
        %v1262 = vld [vmem:[%s302 + $0xce0] sm:$0xff]
        %v1263 = vld [vmem:[%s302 + $0xce8] sm:$0xff]
        %v1264 = vld [vmem:[%s302 + $0xcf0] sm:$0xff]
        %v1265 = vld [vmem:[%s302 + $0xcf8] sm:$0xff]
        %v1266 = vld [vmem:[%s302 + $0xd00] sm:$0xff]
        %v1267 = vld [vmem:[%s302 + $0xd08] sm:$0xff]
        %v1268 = vld [vmem:[%s302 + $0xd10] sm:$0xff]
        %v1269 = vld [vmem:[%s302 + $0xd18] sm:$0xff]
        %v1270 = vld [vmem:[%s302 + $0xd20] sm:$0xff]
        %v1271 = vld [vmem:[%s302 + $0xd28] sm:$0xff]
        %v1272 = vld [vmem:[%s302 + $0xd30] sm:$0xff]
        %v1273 = vld [vmem:[%s302 + $0xd38] sm:$0xff]
        %v1274 = vld [vmem:[%s302 + $0xd40] sm:$0xff]
        %v1275 = vld [vmem:[%s302 + $0xd48] sm:$0xff]
        %v1276 = vld [vmem:[%s302 + $0xd50] sm:$0xff]
        %v1277 = vld [vmem:[%s302 + $0xd58] sm:$0xff]
        %v1278 = vld [vmem:[%s302 + $0xd60] sm:$0xff]
        %v1279 = vld [vmem:[%s302 + $0xd68] sm:$0xff]
        %v1280 = vld [vmem:[%s302 + $0xd70] sm:$0xff]
        %v1281 = vld [vmem:[%s302 + $0xd78] sm:$0xff]
        %v1282 = vld [vmem:[%s302 + $0xd80] sm:$0xff]
        %v1283 = vld [vmem:[%s302 + $0xd88] sm:$0xff]
        %v1284 = vld [vmem:[%s302 + $0xd90] sm:$0xff]
        %v1285 = vld [vmem:[%s302 + $0xd98] sm:$0xff]
        %v1286 = vld [vmem:[%s302 + $0xda0] sm:$0xff]
        %v1287 = vld [vmem:[%s302 + $0xda8] sm:$0xff]
        %v1288 = vld [vmem:[%s302 + $0xdb0] sm:$0xff]
        %v1289 = vld [vmem:[%s302 + $0xdb8] sm:$0xff]
        %v1290 = vld [vmem:[%s302 + $0xdc0] sm:$0xff]
        %v1291 = vld [vmem:[%s302 + $0xdc8] sm:$0xff]
        %v1292 = vld [vmem:[%s302 + $0xdd0] sm:$0xff]
        %v1293 = vld [vmem:[%s302 + $0xdd8] sm:$0xff]
        %v1294 = vld [vmem:[%s302 + $0xde0] sm:$0xff]
        %v1295 = vld [vmem:[%s302 + $0xde8] sm:$0xff]
        %v1296 = vld [vmem:[%s302 + $0xdf0] sm:$0xff]
        %v1297 = vld [vmem:[%s302 + $0xdf8] sm:$0xff]
        %v1298 = vld [vmem:[%s302 + $0xe00] sm:$0xff]
        %v1299 = vld [vmem:[%s302 + $0xe08] sm:$0xff]
        %v1300 = vld [vmem:[%s302 + $0xe10] sm:$0xff]
        %v1301 = vld [vmem:[%s302 + $0xe18] sm:$0xff]
        %v1302 = vld [vmem:[%s302 + $0xe20] sm:$0xff]
        %v1303 = vld [vmem:[%s302 + $0xe28] sm:$0xff]
        %v1304 = vld [vmem:[%s302 + $0xe30] sm:$0xff]
        %v1305 = vld [vmem:[%s302 + $0xe38] sm:$0xff]
        %v1306 = vld [vmem:[%s302 + $0xe40] sm:$0xff]
        %v1307 = vld [vmem:[%s302 + $0xe48] sm:$0xff]
        %v1308 = vld [vmem:[%s302 + $0xe50] sm:$0xff]
        %v1309 = vld [vmem:[%s302 + $0xe58] sm:$0xff]
        %v1310 = vld [vmem:[%s302 + $0xe60] sm:$0xff]
        %v1311 = vld [vmem:[%s302 + $0xe68] sm:$0xff]
        %v1312 = vld [vmem:[%s302 + $0xe70] sm:$0xff]
        %v1313 = vld [vmem:[%s302 + $0xe78] sm:$0xff]
        %v1314 = vld [vmem:[%s302 + $0xe80] sm:$0xff]
        %v1315 = vld [vmem:[%s302 + $0xe88] sm:$0xff]
        %v1316 = vld [vmem:[%s302 + $0xe90] sm:$0xff]
        %v1317 = vld [vmem:[%s302 + $0xe98] sm:$0xff]
        %v1318 = vld [vmem:[%s302 + $0xea0] sm:$0xff]
        %v1319 = vld [vmem:[%s302 + $0xea8] sm:$0xff]
        %v1320 = vld [vmem:[%s302 + $0xeb0] sm:$0xff]
        %v1321 = vld [vmem:[%s302 + $0xeb8] sm:$0xff]
        %v1322 = vld [vmem:[%s302 + $0xec0] sm:$0xff]
        %v1323 = vld [vmem:[%s302 + $0xec8] sm:$0xff]
        %v1324 = vld [vmem:[%s302 + $0xed0] sm:$0xff]
        %v1325 = vld [vmem:[%s302 + $0xed8] sm:$0xff]
        %v1326 = vld [vmem:[%s302 + $0xee0] sm:$0xff]
        %v1327 = vld [vmem:[%s302 + $0xee8] sm:$0xff]
        %v1328 = vld [vmem:[%s302 + $0xef0] sm:$0xff]
        %v1329 = vld [vmem:[%s302 + $0xef8] sm:$0xff]
        %v1330 = vld [vmem:[%s302 + $0xf00] sm:$0xff]
        %v1331 = vld [vmem:[%s302 + $0xf08] sm:$0xff]
        %v1332 = vld [vmem:[%s302 + $0xf10] sm:$0xff]
        %v1333 = vld [vmem:[%s302 + $0xf18] sm:$0xff]
        %v1334 = vld [vmem:[%s302 + $0xf20] sm:$0xff]
        %v1335 = vld [vmem:[%s302 + $0xf28] sm:$0xff]
        %v1336 = vld [vmem:[%s302 + $0xf30] sm:$0xff]
        %v1337 = vld [vmem:[%s302 + $0xf38] sm:$0xff]
        %v1338 = vld [vmem:[%s302 + $0xf40] sm:$0xff]
        %v1339 = vld [vmem:[%s302 + $0xf48] sm:$0xff]
        %v1340 = vld [vmem:[%s302 + $0xf50] sm:$0xff]
        %v1341 = vld [vmem:[%s302 + $0xf58] sm:$0xff]
        %v1342 = vld [vmem:[%s302 + $0xf60] sm:$0xff]
        %v1343 = vld [vmem:[%s302 + $0xf68] sm:$0xff]
        %v1344 = vld [vmem:[%s302 + $0xf70] sm:$0xff]
        %v1345 = vld [vmem:[%s302 + $0xf78] sm:$0xff]
        %v1346 = vld [vmem:[%s302 + $0xf80] sm:$0xff]
        %v1347 = vld [vmem:[%s302 + $0xf88] sm:$0xff]
        %v1348 = vld [vmem:[%s302 + $0xf90] sm:$0xff]
        %v1349 = vld [vmem:[%s302 + $0xf98] sm:$0xff]
        %v1350 = vld [vmem:[%s302 + $0xfa0] sm:$0xff]
        %v1351 = vld [vmem:[%s302 + $0xfa8] sm:$0xff]
        %v1352 = vld [vmem:[%s302 + $0xfb0] sm:$0xff]
        %v1353 = vld [vmem:[%s302 + $0xfb8] sm:$0xff]
        %v1354 = vld [vmem:[%s302 + $0xfc0] sm:$0xff]
        %v1355 = vld [vmem:[%s302 + $0xfc8] sm:$0xff]
        %v1356 = vld [vmem:[%s302 + $0xfd0] sm:$0xff]
        %v1357 = vld [vmem:[%s302 + $0xfd8] sm:$0xff]
        %v1358 = vld [vmem:[%s302 + $0xfe0] sm:$0xff]
        %v1359 = vld [vmem:[%s302 + $0xfe8] sm:$0xff]
        %v1360 = vld [vmem:[%s302 + $0xff0] sm:$0xff]
        %v1361 = vld [vmem:[%s302 + $0xff8] sm:$0xff]
        %v1394 = vunpack.c.l.b16 %v818
        %v1395 = vunpack.c.l.b16 %v819
        %v1396 = vunpack.c.l.b16 %v820
        %v1397 = vunpack.c.l.b16 %v821
        %v1398 = vunpack.c.l.b16 %v822
        %v1399 = vunpack.c.l.b16 %v823
        %v1400 = vunpack.c.l.b16 %v824
        %v1401 = vunpack.c.l.b16 %v825
        %v1402 = vunpack.c.l.b16 %v826
        %v1403 = vunpack.c.l.b16 %v827
        %v1404 = vunpack.c.l.b16 %v828
        %v1405 = vunpack.c.l.b16 %v829
        %v1406 = vunpack.c.l.b16 %v830
        %v1407 = vunpack.c.l.b16 %v831
        %v1408 = vunpack.c.l.b16 %v832
        %v1409 = vunpack.c.l.b16 %v833
        %v1410 = vunpack.c.l.b16 %v834
        %v1411 = vunpack.c.l.b16 %v835
        %v1412 = vunpack.c.l.b16 %v836
        %v1413 = vunpack.c.l.b16 %v837
        %v1414 = vunpack.c.l.b16 %v838
        %v1415 = vunpack.c.l.b16 %v839
        %v1416 = vunpack.c.l.b16 %v840
        %v1417 = vunpack.c.l.b16 %v841
        %v1418 = vunpack.c.l.b16 %v842
        %v1419 = vunpack.c.l.b16 %v843
        %v1420 = vunpack.c.l.b16 %v844
        %v1421 = vunpack.c.l.b16 %v845
        %v1422 = vunpack.c.l.b16 %v846
        %v1423 = vunpack.c.l.b16 %v847
        %v1424 = vunpack.c.l.b16 %v848
        %v1425 = vunpack.c.l.b16 %v849
        %v1426 = vsel %vm781, %v1410, %v1394
        %v1427 = vsel %vm781, %v1411, %v1395
        %v1428 = vsel %vm781, %v1412, %v1396
        %v1429 = vsel %vm781, %v1413, %v1397
        %v1430 = vsel %vm781, %v1414, %v1398
        %v1431 = vsel %vm781, %v1415, %v1399
        %v1432 = vsel %vm781, %v1416, %v1400
        %v1433 = vsel %vm781, %v1417, %v1401
        %v1434 = vsel %vm781, %v1418, %v1402
        %v1435 = vsel %vm781, %v1419, %v1403
        %v1436 = vsel %vm781, %v1420, %v1404
        %v1437 = vsel %vm781, %v1421, %v1405
        %v1438 = vsel %vm781, %v1422, %v1406
        %v1439 = vsel %vm781, %v1423, %v1407
        %v1440 = vsel %vm781, %v1424, %v1408
        %v1441 = vsel %vm781, %v1425, %v1409
        %v1442 = vpack.c.b16 %v1426, %v1426
        %v1443 = vpack.c.b16 %v1427, %v1427
        %v1444 = vpack.c.b16 %v1428, %v1428
        %v1445 = vpack.c.b16 %v1429, %v1429
        %v1446 = vpack.c.b16 %v1430, %v1430
        %v1447 = vpack.c.b16 %v1431, %v1431
        %v1448 = vpack.c.b16 %v1432, %v1432
        %v1449 = vpack.c.b16 %v1433, %v1433
        %v1450 = vpack.c.b16 %v1434, %v1434
        %v1451 = vpack.c.b16 %v1435, %v1435
        %v1452 = vpack.c.b16 %v1436, %v1436
        %v1453 = vpack.c.b16 %v1437, %v1437
        %v1454 = vpack.c.b16 %v1438, %v1438
        %v1455 = vpack.c.b16 %v1439, %v1439
        %v1456 = vpack.c.b16 %v1440, %v1440
        %v1457 = vpack.c.b16 %v1441, %v1441
        %v1986 = vunpack.c.l.b16 %v850
        %v1987 = vunpack.c.h.b16 %v850
        %v1988 = vunpack.c.l.b16 %v851
        %v1989 = vunpack.c.h.b16 %v851
        %v1990 = vunpack.c.l.b16 %v852
        %v1991 = vunpack.c.h.b16 %v852
        %v1992 = vunpack.c.l.b16 %v853
        %v1993 = vunpack.c.h.b16 %v853
        %v1994 = vunpack.c.l.b16 %v854
        %v1995 = vunpack.c.h.b16 %v854
        %v1996 = vunpack.c.l.b16 %v855
        %v1997 = vunpack.c.h.b16 %v855
        %v1998 = vunpack.c.l.b16 %v856
        %v1999 = vunpack.c.h.b16 %v856
        %v2000 = vunpack.c.l.b16 %v857
        %v2001 = vunpack.c.h.b16 %v857
        %v2002 = vunpack.c.l.b16 %v858
        %v2003 = vunpack.c.h.b16 %v858
        %v2004 = vunpack.c.l.b16 %v859
        %v2005 = vunpack.c.h.b16 %v859
        %v2006 = vunpack.c.l.b16 %v860
        %v2007 = vunpack.c.h.b16 %v860
        %v2008 = vunpack.c.l.b16 %v861
        %v2009 = vunpack.c.h.b16 %v861
        %v2010 = vunpack.c.l.b16 %v862
        %v2011 = vunpack.c.h.b16 %v862
        %v2012 = vunpack.c.l.b16 %v863
        %v2013 = vunpack.c.h.b16 %v863
        %v2014 = vunpack.c.l.b16 %v864
        %v2015 = vunpack.c.h.b16 %v864
        %v2016 = vunpack.c.l.b16 %v865
        %v2017 = vunpack.c.h.b16 %v865
        %v2018 = vunpack.c.l.b16 %v866
        %v2019 = vunpack.c.h.b16 %v866
        %v2020 = vunpack.c.l.b16 %v867
        %v2021 = vunpack.c.h.b16 %v867
        %v2022 = vunpack.c.l.b16 %v868
        %v2023 = vunpack.c.h.b16 %v868
        %v2024 = vunpack.c.l.b16 %v869
        %v2025 = vunpack.c.h.b16 %v869
        %v2026 = vunpack.c.l.b16 %v870
        %v2027 = vunpack.c.h.b16 %v870
        %v2028 = vunpack.c.l.b16 %v871
        %v2029 = vunpack.c.h.b16 %v871
        %v2030 = vunpack.c.l.b16 %v872
        %v2031 = vunpack.c.h.b16 %v872
        %v2032 = vunpack.c.l.b16 %v873
        %v2033 = vunpack.c.h.b16 %v873
        %v2034 = vunpack.c.l.b16 %v874
        %v2035 = vunpack.c.h.b16 %v874
        %v2036 = vunpack.c.l.b16 %v875
        %v2037 = vunpack.c.h.b16 %v875
        %v2038 = vunpack.c.l.b16 %v876
        %v2039 = vunpack.c.h.b16 %v876
        %v2040 = vunpack.c.l.b16 %v877
        %v2041 = vunpack.c.h.b16 %v877
        %v2042 = vunpack.c.l.b16 %v878
        %v2043 = vunpack.c.h.b16 %v878
        %v2044 = vunpack.c.l.b16 %v879
        %v2045 = vunpack.c.h.b16 %v879
        %v2046 = vunpack.c.l.b16 %v880
        %v2047 = vunpack.c.h.b16 %v880
        %v2048 = vunpack.c.l.b16 %v881
        %v2049 = vunpack.c.h.b16 %v881
        %v2050 = vunpack.c.l.b16 %v882
        %v2051 = vunpack.c.h.b16 %v882
        %v2052 = vunpack.c.l.b16 %v883
        %v2053 = vunpack.c.h.b16 %v883
        %v2054 = vunpack.c.l.b16 %v884
        %v2055 = vunpack.c.h.b16 %v884
        %v2056 = vunpack.c.l.b16 %v885
        %v2057 = vunpack.c.h.b16 %v885
        %v2058 = vunpack.c.l.b16 %v886
        %v2059 = vunpack.c.h.b16 %v886
        %v2060 = vunpack.c.l.b16 %v887
        %v2061 = vunpack.c.h.b16 %v887
        %v2062 = vunpack.c.l.b16 %v888
        %v2063 = vunpack.c.h.b16 %v888
        %v2064 = vunpack.c.l.b16 %v889
        %v2065 = vunpack.c.h.b16 %v889
        %v2066 = vunpack.c.l.b16 %v890
        %v2067 = vunpack.c.h.b16 %v890
        %v2068 = vunpack.c.l.b16 %v891
        %v2069 = vunpack.c.h.b16 %v891
        %v2070 = vunpack.c.l.b16 %v892
        %v2071 = vunpack.c.h.b16 %v892
        %v2072 = vunpack.c.l.b16 %v893
        %v2073 = vunpack.c.h.b16 %v893
        %v2074 = vunpack.c.l.b16 %v894
        %v2075 = vunpack.c.h.b16 %v894
        %v2076 = vunpack.c.l.b16 %v895
        %v2077 = vunpack.c.h.b16 %v895
        %v2078 = vunpack.c.l.b16 %v896
        %v2079 = vunpack.c.h.b16 %v896
        %v2080 = vunpack.c.l.b16 %v897
        %v2081 = vunpack.c.h.b16 %v897
        %v2082 = vunpack.c.l.b16 %v898
        %v2083 = vunpack.c.h.b16 %v898
        %v2084 = vunpack.c.l.b16 %v899
        %v2085 = vunpack.c.h.b16 %v899
        %v2086 = vunpack.c.l.b16 %v900
        %v2087 = vunpack.c.h.b16 %v900
        %v2088 = vunpack.c.l.b16 %v901
        %v2089 = vunpack.c.h.b16 %v901
        %v2090 = vunpack.c.l.b16 %v902
        %v2091 = vunpack.c.h.b16 %v902
        %v2092 = vunpack.c.l.b16 %v903
        %v2093 = vunpack.c.h.b16 %v903
        %v2094 = vunpack.c.l.b16 %v904
        %v2095 = vunpack.c.h.b16 %v904
        %v2096 = vunpack.c.l.b16 %v905
        %v2097 = vunpack.c.h.b16 %v905
        %v2098 = vunpack.c.l.b16 %v906
        %v2099 = vunpack.c.h.b16 %v906
        %v2100 = vunpack.c.l.b16 %v907
        %v2101 = vunpack.c.h.b16 %v907
        %v2102 = vunpack.c.l.b16 %v908
        %v2103 = vunpack.c.h.b16 %v908
        %v2104 = vunpack.c.l.b16 %v909
        %v2105 = vunpack.c.h.b16 %v909
        %v2106 = vunpack.c.l.b16 %v910
        %v2107 = vunpack.c.h.b16 %v910
        %v2108 = vunpack.c.l.b16 %v911
        %v2109 = vunpack.c.h.b16 %v911
        %v2110 = vunpack.c.l.b16 %v912
        %v2111 = vunpack.c.h.b16 %v912
        %v2112 = vunpack.c.l.b16 %v913
        %v2113 = vunpack.c.h.b16 %v913
        %v2114 = vunpack.c.l.b16 %v914
        %v2115 = vunpack.c.h.b16 %v914
        %v2116 = vunpack.c.l.b16 %v915
        %v2117 = vunpack.c.h.b16 %v915
        %v2118 = vunpack.c.l.b16 %v916
        %v2119 = vunpack.c.h.b16 %v916
        %v2120 = vunpack.c.l.b16 %v917
        %v2121 = vunpack.c.h.b16 %v917
        %v2122 = vunpack.c.l.b16 %v918
        %v2123 = vunpack.c.h.b16 %v918
        %v2124 = vunpack.c.l.b16 %v919
        %v2125 = vunpack.c.h.b16 %v919
        %v2126 = vunpack.c.l.b16 %v920
        %v2127 = vunpack.c.h.b16 %v920
        %v2128 = vunpack.c.l.b16 %v921
        %v2129 = vunpack.c.h.b16 %v921
        %v2130 = vunpack.c.l.b16 %v922
        %v2131 = vunpack.c.h.b16 %v922
        %v2132 = vunpack.c.l.b16 %v923
        %v2133 = vunpack.c.h.b16 %v923
        %v2134 = vunpack.c.l.b16 %v924
        %v2135 = vunpack.c.h.b16 %v924
        %v2136 = vunpack.c.l.b16 %v925
        %v2137 = vunpack.c.h.b16 %v925
        %v2138 = vunpack.c.l.b16 %v926
        %v2139 = vunpack.c.h.b16 %v926
        %v2140 = vunpack.c.l.b16 %v927
        %v2141 = vunpack.c.h.b16 %v927
        %v2142 = vunpack.c.l.b16 %v928
        %v2143 = vunpack.c.h.b16 %v928
        %v2144 = vunpack.c.l.b16 %v929
        %v2145 = vunpack.c.h.b16 %v929
        %v2146 = vunpack.c.l.b16 %v930
        %v2147 = vunpack.c.h.b16 %v930
        %v2148 = vunpack.c.l.b16 %v931
        %v2149 = vunpack.c.h.b16 %v931
        %v2150 = vunpack.c.l.b16 %v932
        %v2151 = vunpack.c.h.b16 %v932
        %v2152 = vunpack.c.l.b16 %v933
        %v2153 = vunpack.c.h.b16 %v933
        %v2154 = vunpack.c.l.b16 %v934
        %v2155 = vunpack.c.h.b16 %v934
        %v2156 = vunpack.c.l.b16 %v935
        %v2157 = vunpack.c.h.b16 %v935
        %v2158 = vunpack.c.l.b16 %v936
        %v2159 = vunpack.c.h.b16 %v936
        %v2160 = vunpack.c.l.b16 %v937
        %v2161 = vunpack.c.h.b16 %v937
        %v2162 = vunpack.c.l.b16 %v938
        %v2163 = vunpack.c.h.b16 %v938
        %v2164 = vunpack.c.l.b16 %v939
        %v2165 = vunpack.c.h.b16 %v939
        %v2166 = vunpack.c.l.b16 %v940
        %v2167 = vunpack.c.h.b16 %v940
        %v2168 = vunpack.c.l.b16 %v941
        %v2169 = vunpack.c.h.b16 %v941
        %v2170 = vunpack.c.l.b16 %v942
        %v2171 = vunpack.c.h.b16 %v942
        %v2172 = vunpack.c.l.b16 %v943
        %v2173 = vunpack.c.h.b16 %v943
        %v2174 = vunpack.c.l.b16 %v944
        %v2175 = vunpack.c.h.b16 %v944
        %v2176 = vunpack.c.l.b16 %v945
        %v2177 = vunpack.c.h.b16 %v945
        %v2178 = vunpack.c.l.b16 %v946
        %v2179 = vunpack.c.h.b16 %v946
        %v2180 = vunpack.c.l.b16 %v947
        %v2181 = vunpack.c.h.b16 %v947
        %v2182 = vunpack.c.l.b16 %v948
        %v2183 = vunpack.c.h.b16 %v948
        %v2184 = vunpack.c.l.b16 %v949
        %v2185 = vunpack.c.h.b16 %v949
        %v2186 = vunpack.c.l.b16 %v950
        %v2187 = vunpack.c.h.b16 %v950
        %v2188 = vunpack.c.l.b16 %v951
        %v2189 = vunpack.c.h.b16 %v951
        %v2190 = vunpack.c.l.b16 %v952
        %v2191 = vunpack.c.h.b16 %v952
        %v2192 = vunpack.c.l.b16 %v953
        %v2193 = vunpack.c.h.b16 %v953
        %v2194 = vunpack.c.l.b16 %v954
        %v2195 = vunpack.c.h.b16 %v954
        %v2196 = vunpack.c.l.b16 %v955
        %v2197 = vunpack.c.h.b16 %v955
        %v2198 = vunpack.c.l.b16 %v956
        %v2199 = vunpack.c.h.b16 %v956
        %v2200 = vunpack.c.l.b16 %v957
        %v2201 = vunpack.c.h.b16 %v957
        %v2202 = vunpack.c.l.b16 %v958
        %v2203 = vunpack.c.h.b16 %v958
        %v2204 = vunpack.c.l.b16 %v959
        %v2205 = vunpack.c.h.b16 %v959
        %v2206 = vunpack.c.l.b16 %v960
        %v2207 = vunpack.c.h.b16 %v960
        %v2208 = vunpack.c.l.b16 %v961
        %v2209 = vunpack.c.h.b16 %v961
        %v2210 = vunpack.c.l.b16 %v962
        %v2211 = vunpack.c.h.b16 %v962
        %v2212 = vunpack.c.l.b16 %v963
        %v2213 = vunpack.c.h.b16 %v963
        %v2214 = vunpack.c.l.b16 %v964
        %v2215 = vunpack.c.h.b16 %v964
        %v2216 = vunpack.c.l.b16 %v965
        %v2217 = vunpack.c.h.b16 %v965
        %v2218 = vunpack.c.l.b16 %v966
        %v2219 = vunpack.c.h.b16 %v966
        %v2220 = vunpack.c.l.b16 %v967
        %v2221 = vunpack.c.h.b16 %v967
        %v2222 = vunpack.c.l.b16 %v968
        %v2223 = vunpack.c.h.b16 %v968
        %v2224 = vunpack.c.l.b16 %v969
        %v2225 = vunpack.c.h.b16 %v969
        %v2226 = vunpack.c.l.b16 %v970
        %v2227 = vunpack.c.h.b16 %v970
        %v2228 = vunpack.c.l.b16 %v971
        %v2229 = vunpack.c.h.b16 %v971
        %v2230 = vunpack.c.l.b16 %v972
        %v2231 = vunpack.c.h.b16 %v972
        %v2232 = vunpack.c.l.b16 %v973
        %v2233 = vunpack.c.h.b16 %v973
        %v2234 = vunpack.c.l.b16 %v974
        %v2235 = vunpack.c.h.b16 %v974
        %v2236 = vunpack.c.l.b16 %v975
        %v2237 = vunpack.c.h.b16 %v975
        %v2238 = vunpack.c.l.b16 %v976
        %v2239 = vunpack.c.h.b16 %v976
        %v2240 = vunpack.c.l.b16 %v977
        %v2241 = vunpack.c.h.b16 %v977
        %v2242 = vunpack.c.l.b16 %v978
        %v2243 = vunpack.c.h.b16 %v978
        %v2244 = vunpack.c.l.b16 %v979
        %v2245 = vunpack.c.h.b16 %v979
        %v2246 = vunpack.c.l.b16 %v980
        %v2247 = vunpack.c.h.b16 %v980
        %v2248 = vunpack.c.l.b16 %v981
        %v2249 = vunpack.c.h.b16 %v981
        %v2250 = vunpack.c.l.b16 %v982
        %v2251 = vunpack.c.h.b16 %v982
        %v2252 = vunpack.c.l.b16 %v983
        %v2253 = vunpack.c.h.b16 %v983
        %v2254 = vunpack.c.l.b16 %v984
        %v2255 = vunpack.c.h.b16 %v984
        %v2256 = vunpack.c.l.b16 %v985
        %v2257 = vunpack.c.h.b16 %v985
        %v2258 = vunpack.c.l.b16 %v986
        %v2259 = vunpack.c.h.b16 %v986
        %v2260 = vunpack.c.l.b16 %v987
        %v2261 = vunpack.c.h.b16 %v987
        %v2262 = vunpack.c.l.b16 %v988
        %v2263 = vunpack.c.h.b16 %v988
        %v2264 = vunpack.c.l.b16 %v989
        %v2265 = vunpack.c.h.b16 %v989
        %v2266 = vunpack.c.l.b16 %v990
        %v2267 = vunpack.c.h.b16 %v990
        %v2268 = vunpack.c.l.b16 %v991
        %v2269 = vunpack.c.h.b16 %v991
        %v2270 = vunpack.c.l.b16 %v992
        %v2271 = vunpack.c.h.b16 %v992
        %v2272 = vunpack.c.l.b16 %v993
        %v2273 = vunpack.c.h.b16 %v993
        %v2274 = vunpack.c.l.b16 %v994
        %v2275 = vunpack.c.h.b16 %v994
        %v2276 = vunpack.c.l.b16 %v995
        %v2277 = vunpack.c.h.b16 %v995
        %v2278 = vunpack.c.l.b16 %v996
        %v2279 = vunpack.c.h.b16 %v996
        %v2280 = vunpack.c.l.b16 %v997
        %v2281 = vunpack.c.h.b16 %v997
        %v2282 = vunpack.c.l.b16 %v998
        %v2283 = vunpack.c.h.b16 %v998
        %v2284 = vunpack.c.l.b16 %v999
        %v2285 = vunpack.c.h.b16 %v999
        %v2286 = vunpack.c.l.b16 %v1000
        %v2287 = vunpack.c.h.b16 %v1000
        %v2288 = vunpack.c.l.b16 %v1001
        %v2289 = vunpack.c.h.b16 %v1001
        %v2290 = vunpack.c.l.b16 %v1002
        %v2291 = vunpack.c.h.b16 %v1002
        %v2292 = vunpack.c.l.b16 %v1003
        %v2293 = vunpack.c.h.b16 %v1003
        %v2294 = vunpack.c.l.b16 %v1004
        %v2295 = vunpack.c.h.b16 %v1004
        %v2296 = vunpack.c.l.b16 %v1005
        %v2297 = vunpack.c.h.b16 %v1005
        %v2298 = vunpack.c.l.b16 %v1006
        %v2299 = vunpack.c.h.b16 %v1006
        %v2300 = vunpack.c.l.b16 %v1007
        %v2301 = vunpack.c.h.b16 %v1007
        %v2302 = vunpack.c.l.b16 %v1008
        %v2303 = vunpack.c.h.b16 %v1008
        %v2304 = vunpack.c.l.b16 %v1009
        %v2305 = vunpack.c.h.b16 %v1009
        %v2306 = vunpack.c.l.b16 %v1010
        %v2307 = vunpack.c.h.b16 %v1010
        %v2308 = vunpack.c.l.b16 %v1011
        %v2309 = vunpack.c.h.b16 %v1011
        %v2310 = vunpack.c.l.b16 %v1012
        %v2311 = vunpack.c.h.b16 %v1012
        %v2312 = vunpack.c.l.b16 %v1013
        %v2313 = vunpack.c.h.b16 %v1013
        %v2314 = vunpack.c.l.b16 %v1014
        %v2315 = vunpack.c.h.b16 %v1014
        %v2316 = vunpack.c.l.b16 %v1015
        %v2317 = vunpack.c.h.b16 %v1015
        %v2318 = vunpack.c.l.b16 %v1016
        %v2319 = vunpack.c.h.b16 %v1016
        %v2320 = vunpack.c.l.b16 %v1017
        %v2321 = vunpack.c.h.b16 %v1017
        %v2322 = vunpack.c.l.b16 %v1018
        %v2323 = vunpack.c.h.b16 %v1018
        %v2324 = vunpack.c.l.b16 %v1019
        %v2325 = vunpack.c.h.b16 %v1019
        %v2326 = vunpack.c.l.b16 %v1020
        %v2327 = vunpack.c.h.b16 %v1020
        %v2328 = vunpack.c.l.b16 %v1021
        %v2329 = vunpack.c.h.b16 %v1021
        %v2330 = vunpack.c.l.b16 %v1022
        %v2331 = vunpack.c.h.b16 %v1022
        %v2332 = vunpack.c.l.b16 %v1023
        %v2333 = vunpack.c.h.b16 %v1023
        %v2334 = vunpack.c.l.b16 %v1024
        %v2335 = vunpack.c.h.b16 %v1024
        %v2336 = vunpack.c.l.b16 %v1025
        %v2337 = vunpack.c.h.b16 %v1025
        %v2338 = vunpack.c.l.b16 %v1026
        %v2339 = vunpack.c.h.b16 %v1026
        %v2340 = vunpack.c.l.b16 %v1027
        %v2341 = vunpack.c.h.b16 %v1027
        %v2342 = vunpack.c.l.b16 %v1028
        %v2343 = vunpack.c.h.b16 %v1028
        %v2344 = vunpack.c.l.b16 %v1029
        %v2345 = vunpack.c.h.b16 %v1029
        %v2346 = vunpack.c.l.b16 %v1030
        %v2347 = vunpack.c.h.b16 %v1030
        %v2348 = vunpack.c.l.b16 %v1031
        %v2349 = vunpack.c.h.b16 %v1031
        %v2350 = vunpack.c.l.b16 %v1032
        %v2351 = vunpack.c.h.b16 %v1032
        %v2352 = vunpack.c.l.b16 %v1033
        %v2353 = vunpack.c.h.b16 %v1033
        %v2354 = vunpack.c.l.b16 %v1034
        %v2355 = vunpack.c.h.b16 %v1034
        %v2356 = vunpack.c.l.b16 %v1035
        %v2357 = vunpack.c.h.b16 %v1035
        %v2358 = vunpack.c.l.b16 %v1036
        %v2359 = vunpack.c.h.b16 %v1036
        %v2360 = vunpack.c.l.b16 %v1037
        %v2361 = vunpack.c.h.b16 %v1037
        %v2362 = vunpack.c.l.b16 %v1038
        %v2363 = vunpack.c.h.b16 %v1038
        %v2364 = vunpack.c.l.b16 %v1039
        %v2365 = vunpack.c.h.b16 %v1039
        %v2366 = vunpack.c.l.b16 %v1040
        %v2367 = vunpack.c.h.b16 %v1040
        %v2368 = vunpack.c.l.b16 %v1041
        %v2369 = vunpack.c.h.b16 %v1041
        %v2370 = vunpack.c.l.b16 %v1042
        %v2371 = vunpack.c.h.b16 %v1042
        %v2372 = vunpack.c.l.b16 %v1043
        %v2373 = vunpack.c.h.b16 %v1043
        %v2374 = vunpack.c.l.b16 %v1044
        %v2375 = vunpack.c.h.b16 %v1044
        %v2376 = vunpack.c.l.b16 %v1045
        %v2377 = vunpack.c.h.b16 %v1045
        %v2378 = vunpack.c.l.b16 %v1046
        %v2379 = vunpack.c.h.b16 %v1046
        %v2380 = vunpack.c.l.b16 %v1047
        %v2381 = vunpack.c.h.b16 %v1047
        %v2382 = vunpack.c.l.b16 %v1048
        %v2383 = vunpack.c.h.b16 %v1048
        %v2384 = vunpack.c.l.b16 %v1049
        %v2385 = vunpack.c.h.b16 %v1049
        %v2386 = vunpack.c.l.b16 %v1050
        %v2387 = vunpack.c.h.b16 %v1050
        %v2388 = vunpack.c.l.b16 %v1051
        %v2389 = vunpack.c.h.b16 %v1051
        %v2390 = vunpack.c.l.b16 %v1052
        %v2391 = vunpack.c.h.b16 %v1052
        %v2392 = vunpack.c.l.b16 %v1053
        %v2393 = vunpack.c.h.b16 %v1053
        %v2394 = vunpack.c.l.b16 %v1054
        %v2395 = vunpack.c.h.b16 %v1054
        %v2396 = vunpack.c.l.b16 %v1055
        %v2397 = vunpack.c.h.b16 %v1055
        %v2398 = vunpack.c.l.b16 %v1056
        %v2399 = vunpack.c.h.b16 %v1056
        %v2400 = vunpack.c.l.b16 %v1057
        %v2401 = vunpack.c.h.b16 %v1057
        %v2402 = vunpack.c.l.b16 %v1058
        %v2403 = vunpack.c.h.b16 %v1058
        %v2404 = vunpack.c.l.b16 %v1059
        %v2405 = vunpack.c.h.b16 %v1059
        %v2406 = vunpack.c.l.b16 %v1060
        %v2407 = vunpack.c.h.b16 %v1060
        %v2408 = vunpack.c.l.b16 %v1061
        %v2409 = vunpack.c.h.b16 %v1061
        %v2410 = vunpack.c.l.b16 %v1062
        %v2411 = vunpack.c.h.b16 %v1062
        %v2412 = vunpack.c.l.b16 %v1063
        %v2413 = vunpack.c.h.b16 %v1063
        %v2414 = vunpack.c.l.b16 %v1064
        %v2415 = vunpack.c.h.b16 %v1064
        %v2416 = vunpack.c.l.b16 %v1065
        %v2417 = vunpack.c.h.b16 %v1065
        %v2418 = vunpack.c.l.b16 %v1066
        %v2419 = vunpack.c.h.b16 %v1066
        %v2420 = vunpack.c.l.b16 %v1067
        %v2421 = vunpack.c.h.b16 %v1067
        %v2422 = vunpack.c.l.b16 %v1068
        %v2423 = vunpack.c.h.b16 %v1068
        %v2424 = vunpack.c.l.b16 %v1069
        %v2425 = vunpack.c.h.b16 %v1069
        %v2426 = vunpack.c.l.b16 %v1070
        %v2427 = vunpack.c.h.b16 %v1070
        %v2428 = vunpack.c.l.b16 %v1071
        %v2429 = vunpack.c.h.b16 %v1071
        %v2430 = vunpack.c.l.b16 %v1072
        %v2431 = vunpack.c.h.b16 %v1072
        %v2432 = vunpack.c.l.b16 %v1073
        %v2433 = vunpack.c.h.b16 %v1073
        %v2434 = vunpack.c.l.b16 %v1074
        %v2435 = vunpack.c.h.b16 %v1074
        %v2436 = vunpack.c.l.b16 %v1075
        %v2437 = vunpack.c.h.b16 %v1075
        %v2438 = vunpack.c.l.b16 %v1076
        %v2439 = vunpack.c.h.b16 %v1076
        %v2440 = vunpack.c.l.b16 %v1077
        %v2441 = vunpack.c.h.b16 %v1077
        %v2442 = vunpack.c.l.b16 %v1078
        %v2443 = vunpack.c.h.b16 %v1078
        %v2444 = vunpack.c.l.b16 %v1079
        %v2445 = vunpack.c.h.b16 %v1079
        %v2446 = vunpack.c.l.b16 %v1080
        %v2447 = vunpack.c.h.b16 %v1080
        %v2448 = vunpack.c.l.b16 %v1081
        %v2449 = vunpack.c.h.b16 %v1081
        %v2450 = vunpack.c.l.b16 %v1082
        %v2451 = vunpack.c.h.b16 %v1082
        %v2452 = vunpack.c.l.b16 %v1083
        %v2453 = vunpack.c.h.b16 %v1083
        %v2454 = vunpack.c.l.b16 %v1084
        %v2455 = vunpack.c.h.b16 %v1084
        %v2456 = vunpack.c.l.b16 %v1085
        %v2457 = vunpack.c.h.b16 %v1085
        %v2458 = vunpack.c.l.b16 %v1086
        %v2459 = vunpack.c.h.b16 %v1086
        %v2460 = vunpack.c.l.b16 %v1087
        %v2461 = vunpack.c.h.b16 %v1087
        %v2462 = vunpack.c.l.b16 %v1088
        %v2463 = vunpack.c.h.b16 %v1088
        %v2464 = vunpack.c.l.b16 %v1089
        %v2465 = vunpack.c.h.b16 %v1089
        %v2466 = vunpack.c.l.b16 %v1090
        %v2467 = vunpack.c.h.b16 %v1090
        %v2468 = vunpack.c.l.b16 %v1091
        %v2469 = vunpack.c.h.b16 %v1091
        %v2470 = vunpack.c.l.b16 %v1092
        %v2471 = vunpack.c.h.b16 %v1092
        %v2472 = vunpack.c.l.b16 %v1093
        %v2473 = vunpack.c.h.b16 %v1093
        %v2474 = vunpack.c.l.b16 %v1094
        %v2475 = vunpack.c.h.b16 %v1094
        %v2476 = vunpack.c.l.b16 %v1095
        %v2477 = vunpack.c.h.b16 %v1095
        %v2478 = vunpack.c.l.b16 %v1096
        %v2479 = vunpack.c.h.b16 %v1096
        %v2480 = vunpack.c.l.b16 %v1097
        %v2481 = vunpack.c.h.b16 %v1097
        %v2482 = vunpack.c.l.b16 %v1098
        %v2483 = vunpack.c.h.b16 %v1098
        %v2484 = vunpack.c.l.b16 %v1099
        %v2485 = vunpack.c.h.b16 %v1099
        %v2486 = vunpack.c.l.b16 %v1100
        %v2487 = vunpack.c.h.b16 %v1100
        %v2488 = vunpack.c.l.b16 %v1101
        %v2489 = vunpack.c.h.b16 %v1101
        %v2490 = vunpack.c.l.b16 %v1102
        %v2491 = vunpack.c.h.b16 %v1102
        %v2492 = vunpack.c.l.b16 %v1103
        %v2493 = vunpack.c.h.b16 %v1103
        %v2494 = vunpack.c.l.b16 %v1104
        %v2495 = vunpack.c.h.b16 %v1104
        %v2496 = vunpack.c.l.b16 %v1105
        %v2497 = vunpack.c.h.b16 %v1105
        %v2498 = vunpack.c.l.b16 %v1106
        %v2499 = vunpack.c.h.b16 %v1106
        %v2500 = vunpack.c.l.b16 %v1107
        %v2501 = vunpack.c.h.b16 %v1107
        %v2502 = vunpack.c.l.b16 %v1108
        %v2503 = vunpack.c.h.b16 %v1108
        %v2504 = vunpack.c.l.b16 %v1109
        %v2505 = vunpack.c.h.b16 %v1109
        %v2506 = vunpack.c.l.b16 %v1110
        %v2507 = vunpack.c.h.b16 %v1110
        %v2508 = vunpack.c.l.b16 %v1111
        %v2509 = vunpack.c.h.b16 %v1111
        %v2510 = vunpack.c.l.b16 %v1112
        %v2511 = vunpack.c.h.b16 %v1112
        %v2512 = vunpack.c.l.b16 %v1113
        %v2513 = vunpack.c.h.b16 %v1113
        %v2514 = vunpack.c.l.b16 %v1114
        %v2515 = vunpack.c.h.b16 %v1114
        %v2516 = vunpack.c.l.b16 %v1115
        %v2517 = vunpack.c.h.b16 %v1115
        %v2518 = vunpack.c.l.b16 %v1116
        %v2519 = vunpack.c.h.b16 %v1116
        %v2520 = vunpack.c.l.b16 %v1117
        %v2521 = vunpack.c.h.b16 %v1117
        %v2522 = vunpack.c.l.b16 %v1118
        %v2523 = vunpack.c.h.b16 %v1118
        %v2524 = vunpack.c.l.b16 %v1119
        %v2525 = vunpack.c.h.b16 %v1119
        %v2526 = vunpack.c.l.b16 %v1120
        %v2527 = vunpack.c.h.b16 %v1120
        %v2528 = vunpack.c.l.b16 %v1121
        %v2529 = vunpack.c.h.b16 %v1121
        %v2530 = vunpack.c.l.b16 %v1122
        %v2531 = vunpack.c.h.b16 %v1122
        %v2532 = vunpack.c.l.b16 %v1123
        %v2533 = vunpack.c.h.b16 %v1123
        %v2534 = vunpack.c.l.b16 %v1124
        %v2535 = vunpack.c.h.b16 %v1124
        %v2536 = vunpack.c.l.b16 %v1125
        %v2537 = vunpack.c.h.b16 %v1125
        %v2538 = vunpack.c.l.b16 %v1126
        %v2539 = vunpack.c.h.b16 %v1126
        %v2540 = vunpack.c.l.b16 %v1127
        %v2541 = vunpack.c.h.b16 %v1127
        %v2542 = vunpack.c.l.b16 %v1128
        %v2543 = vunpack.c.h.b16 %v1128
        %v2544 = vunpack.c.l.b16 %v1129
        %v2545 = vunpack.c.h.b16 %v1129
        %v2546 = vunpack.c.l.b16 %v1130
        %v2547 = vunpack.c.h.b16 %v1130
        %v2548 = vunpack.c.l.b16 %v1131
        %v2549 = vunpack.c.h.b16 %v1131
        %v2550 = vunpack.c.l.b16 %v1132
        %v2551 = vunpack.c.h.b16 %v1132
        %v2552 = vunpack.c.l.b16 %v1133
        %v2553 = vunpack.c.h.b16 %v1133
        %v2554 = vunpack.c.l.b16 %v1134
        %v2555 = vunpack.c.h.b16 %v1134
        %v2556 = vunpack.c.l.b16 %v1135
        %v2557 = vunpack.c.h.b16 %v1135
        %v2558 = vunpack.c.l.b16 %v1136
        %v2559 = vunpack.c.h.b16 %v1136
        %v2560 = vunpack.c.l.b16 %v1137
        %v2561 = vunpack.c.h.b16 %v1137
        %v2562 = vunpack.c.l.b16 %v1138
        %v2563 = vunpack.c.h.b16 %v1138
        %v2564 = vunpack.c.l.b16 %v1139
        %v2565 = vunpack.c.h.b16 %v1139
        %v2566 = vunpack.c.l.b16 %v1140
        %v2567 = vunpack.c.h.b16 %v1140
        %v2568 = vunpack.c.l.b16 %v1141
        %v2569 = vunpack.c.h.b16 %v1141
        %v2570 = vunpack.c.l.b16 %v1142
        %v2571 = vunpack.c.h.b16 %v1142
        %v2572 = vunpack.c.l.b16 %v1143
        %v2573 = vunpack.c.h.b16 %v1143
        %v2574 = vunpack.c.l.b16 %v1144
        %v2575 = vunpack.c.h.b16 %v1144
        %v2576 = vunpack.c.l.b16 %v1145
        %v2577 = vunpack.c.h.b16 %v1145
        %v2578 = vunpack.c.l.b16 %v1146
        %v2579 = vunpack.c.h.b16 %v1146
        %v2580 = vunpack.c.l.b16 %v1147
        %v2581 = vunpack.c.h.b16 %v1147
        %v2582 = vunpack.c.l.b16 %v1148
        %v2583 = vunpack.c.h.b16 %v1148
        %v2584 = vunpack.c.l.b16 %v1149
        %v2585 = vunpack.c.h.b16 %v1149
        %v2586 = vunpack.c.l.b16 %v1150
        %v2587 = vunpack.c.h.b16 %v1150
        %v2588 = vunpack.c.l.b16 %v1151
        %v2589 = vunpack.c.h.b16 %v1151
        %v2590 = vunpack.c.l.b16 %v1152
        %v2591 = vunpack.c.h.b16 %v1152
        %v2592 = vunpack.c.l.b16 %v1153
        %v2593 = vunpack.c.h.b16 %v1153
        %v2594 = vunpack.c.l.b16 %v1154
        %v2595 = vunpack.c.h.b16 %v1154
        %v2596 = vunpack.c.l.b16 %v1155
        %v2597 = vunpack.c.h.b16 %v1155
        %v2598 = vunpack.c.l.b16 %v1156
        %v2599 = vunpack.c.h.b16 %v1156
        %v2600 = vunpack.c.l.b16 %v1157
        %v2601 = vunpack.c.h.b16 %v1157
        %v2602 = vunpack.c.l.b16 %v1158
        %v2603 = vunpack.c.h.b16 %v1158
        %v2604 = vunpack.c.l.b16 %v1159
        %v2605 = vunpack.c.h.b16 %v1159
        %v2606 = vunpack.c.l.b16 %v1160
        %v2607 = vunpack.c.h.b16 %v1160
        %v2608 = vunpack.c.l.b16 %v1161
        %v2609 = vunpack.c.h.b16 %v1161
        %v2610 = vunpack.c.l.b16 %v1162
        %v2611 = vunpack.c.h.b16 %v1162
        %v2612 = vunpack.c.l.b16 %v1163
        %v2613 = vunpack.c.h.b16 %v1163
        %v2614 = vunpack.c.l.b16 %v1164
        %v2615 = vunpack.c.h.b16 %v1164
        %v2616 = vunpack.c.l.b16 %v1165
        %v2617 = vunpack.c.h.b16 %v1165
        %v2618 = vunpack.c.l.b16 %v1166
        %v2619 = vunpack.c.h.b16 %v1166
        %v2620 = vunpack.c.l.b16 %v1167
        %v2621 = vunpack.c.h.b16 %v1167
        %v2622 = vunpack.c.l.b16 %v1168
        %v2623 = vunpack.c.h.b16 %v1168
        %v2624 = vunpack.c.l.b16 %v1169
        %v2625 = vunpack.c.h.b16 %v1169
        %v2626 = vunpack.c.l.b16 %v1170
        %v2627 = vunpack.c.h.b16 %v1170
        %v2628 = vunpack.c.l.b16 %v1171
        %v2629 = vunpack.c.h.b16 %v1171
        %v2630 = vunpack.c.l.b16 %v1172
        %v2631 = vunpack.c.h.b16 %v1172
        %v2632 = vunpack.c.l.b16 %v1173
        %v2633 = vunpack.c.h.b16 %v1173
        %v2634 = vunpack.c.l.b16 %v1174
        %v2635 = vunpack.c.h.b16 %v1174
        %v2636 = vunpack.c.l.b16 %v1175
        %v2637 = vunpack.c.h.b16 %v1175
        %v2638 = vunpack.c.l.b16 %v1176
        %v2639 = vunpack.c.h.b16 %v1176
        %v2640 = vunpack.c.l.b16 %v1177
        %v2641 = vunpack.c.h.b16 %v1177
        %v2642 = vunpack.c.l.b16 %v1178
        %v2643 = vunpack.c.h.b16 %v1178
        %v2644 = vunpack.c.l.b16 %v1179
        %v2645 = vunpack.c.h.b16 %v1179
        %v2646 = vunpack.c.l.b16 %v1180
        %v2647 = vunpack.c.h.b16 %v1180
        %v2648 = vunpack.c.l.b16 %v1181
        %v2649 = vunpack.c.h.b16 %v1181
        %v2650 = vunpack.c.l.b16 %v1182
        %v2651 = vunpack.c.h.b16 %v1182
        %v2652 = vunpack.c.l.b16 %v1183
        %v2653 = vunpack.c.h.b16 %v1183
        %v2654 = vunpack.c.l.b16 %v1184
        %v2655 = vunpack.c.h.b16 %v1184
        %v2656 = vunpack.c.l.b16 %v1185
        %v2657 = vunpack.c.h.b16 %v1185
        %v2658 = vunpack.c.l.b16 %v1186
        %v2659 = vunpack.c.h.b16 %v1186
        %v2660 = vunpack.c.l.b16 %v1187
        %v2661 = vunpack.c.h.b16 %v1187
        %v2662 = vunpack.c.l.b16 %v1188
        %v2663 = vunpack.c.h.b16 %v1188
        %v2664 = vunpack.c.l.b16 %v1189
        %v2665 = vunpack.c.h.b16 %v1189
        %v2666 = vunpack.c.l.b16 %v1190
        %v2667 = vunpack.c.h.b16 %v1190
        %v2668 = vunpack.c.l.b16 %v1191
        %v2669 = vunpack.c.h.b16 %v1191
        %v2670 = vunpack.c.l.b16 %v1192
        %v2671 = vunpack.c.h.b16 %v1192
        %v2672 = vunpack.c.l.b16 %v1193
        %v2673 = vunpack.c.h.b16 %v1193
        %v2674 = vunpack.c.l.b16 %v1194
        %v2675 = vunpack.c.h.b16 %v1194
        %v2676 = vunpack.c.l.b16 %v1195
        %v2677 = vunpack.c.h.b16 %v1195
        %v2678 = vunpack.c.l.b16 %v1196
        %v2679 = vunpack.c.h.b16 %v1196
        %v2680 = vunpack.c.l.b16 %v1197
        %v2681 = vunpack.c.h.b16 %v1197
        %v2682 = vunpack.c.l.b16 %v1198
        %v2683 = vunpack.c.h.b16 %v1198
        %v2684 = vunpack.c.l.b16 %v1199
        %v2685 = vunpack.c.h.b16 %v1199
        %v2686 = vunpack.c.l.b16 %v1200
        %v2687 = vunpack.c.h.b16 %v1200
        %v2688 = vunpack.c.l.b16 %v1201
        %v2689 = vunpack.c.h.b16 %v1201
        %v2690 = vunpack.c.l.b16 %v1202
        %v2691 = vunpack.c.h.b16 %v1202
        %v2692 = vunpack.c.l.b16 %v1203
        %v2693 = vunpack.c.h.b16 %v1203
        %v2694 = vunpack.c.l.b16 %v1204
        %v2695 = vunpack.c.h.b16 %v1204
        %v2696 = vunpack.c.l.b16 %v1205
        %v2697 = vunpack.c.h.b16 %v1205
        %v2698 = vunpack.c.l.b16 %v1206
        %v2699 = vunpack.c.h.b16 %v1206
        %v2700 = vunpack.c.l.b16 %v1207
        %v2701 = vunpack.c.h.b16 %v1207
        %v2702 = vunpack.c.l.b16 %v1208
        %v2703 = vunpack.c.h.b16 %v1208
        %v2704 = vunpack.c.l.b16 %v1209
        %v2705 = vunpack.c.h.b16 %v1209
        %v2706 = vunpack.c.l.b16 %v1210
        %v2707 = vunpack.c.h.b16 %v1210
        %v2708 = vunpack.c.l.b16 %v1211
        %v2709 = vunpack.c.h.b16 %v1211
        %v2710 = vunpack.c.l.b16 %v1212
        %v2711 = vunpack.c.h.b16 %v1212
        %v2712 = vunpack.c.l.b16 %v1213
        %v2713 = vunpack.c.h.b16 %v1213
        %v2714 = vunpack.c.l.b16 %v1214
        %v2715 = vunpack.c.h.b16 %v1214
        %v2716 = vunpack.c.l.b16 %v1215
        %v2717 = vunpack.c.h.b16 %v1215
        %v2718 = vunpack.c.l.b16 %v1216
        %v2719 = vunpack.c.h.b16 %v1216
        %v2720 = vunpack.c.l.b16 %v1217
        %v2721 = vunpack.c.h.b16 %v1217
        %v2722 = vunpack.c.l.b16 %v1218
        %v2723 = vunpack.c.h.b16 %v1218
        %v2724 = vunpack.c.l.b16 %v1219
        %v2725 = vunpack.c.h.b16 %v1219
        %v2726 = vunpack.c.l.b16 %v1220
        %v2727 = vunpack.c.h.b16 %v1220
        %v2728 = vunpack.c.l.b16 %v1221
        %v2729 = vunpack.c.h.b16 %v1221
        %v2730 = vunpack.c.l.b16 %v1222
        %v2731 = vunpack.c.h.b16 %v1222
        %v2732 = vunpack.c.l.b16 %v1223
        %v2733 = vunpack.c.h.b16 %v1223
        %v2734 = vunpack.c.l.b16 %v1224
        %v2735 = vunpack.c.h.b16 %v1224
        %v2736 = vunpack.c.l.b16 %v1225
        %v2737 = vunpack.c.h.b16 %v1225
        %v2738 = vunpack.c.l.b16 %v1226
        %v2739 = vunpack.c.h.b16 %v1226
        %v2740 = vunpack.c.l.b16 %v1227
        %v2741 = vunpack.c.h.b16 %v1227
        %v2742 = vunpack.c.l.b16 %v1228
        %v2743 = vunpack.c.h.b16 %v1228
        %v2744 = vunpack.c.l.b16 %v1229
        %v2745 = vunpack.c.h.b16 %v1229
        %v2746 = vunpack.c.l.b16 %v1230
        %v2747 = vunpack.c.h.b16 %v1230
        %v2748 = vunpack.c.l.b16 %v1231
        %v2749 = vunpack.c.h.b16 %v1231
        %v2750 = vunpack.c.l.b16 %v1232
        %v2751 = vunpack.c.h.b16 %v1232
        %v2752 = vunpack.c.l.b16 %v1233
        %v2753 = vunpack.c.h.b16 %v1233
        %v2754 = vunpack.c.l.b16 %v1234
        %v2755 = vunpack.c.h.b16 %v1234
        %v2756 = vunpack.c.l.b16 %v1235
        %v2757 = vunpack.c.h.b16 %v1235
        %v2758 = vunpack.c.l.b16 %v1236
        %v2759 = vunpack.c.h.b16 %v1236
        %v2760 = vunpack.c.l.b16 %v1237
        %v2761 = vunpack.c.h.b16 %v1237
        %v2762 = vunpack.c.l.b16 %v1238
        %v2763 = vunpack.c.h.b16 %v1238
        %v2764 = vunpack.c.l.b16 %v1239
        %v2765 = vunpack.c.h.b16 %v1239
        %v2766 = vunpack.c.l.b16 %v1240
        %v2767 = vunpack.c.h.b16 %v1240
        %v2768 = vunpack.c.l.b16 %v1241
        %v2769 = vunpack.c.h.b16 %v1241
        %v2770 = vunpack.c.l.b16 %v1242
        %v2771 = vunpack.c.h.b16 %v1242
        %v2772 = vunpack.c.l.b16 %v1243
        %v2773 = vunpack.c.h.b16 %v1243
        %v2774 = vunpack.c.l.b16 %v1244
        %v2775 = vunpack.c.h.b16 %v1244
        %v2776 = vunpack.c.l.b16 %v1245
        %v2777 = vunpack.c.h.b16 %v1245
        %v2778 = vunpack.c.l.b16 %v1246
        %v2779 = vunpack.c.h.b16 %v1246
        %v2780 = vunpack.c.l.b16 %v1247
        %v2781 = vunpack.c.h.b16 %v1247
        %v2782 = vunpack.c.l.b16 %v1248
        %v2783 = vunpack.c.h.b16 %v1248
        %v2784 = vunpack.c.l.b16 %v1249
        %v2785 = vunpack.c.h.b16 %v1249
        %v2786 = vunpack.c.l.b16 %v1250
        %v2787 = vunpack.c.h.b16 %v1250
        %v2788 = vunpack.c.l.b16 %v1251
        %v2789 = vunpack.c.h.b16 %v1251
        %v2790 = vunpack.c.l.b16 %v1252
        %v2791 = vunpack.c.h.b16 %v1252
        %v2792 = vunpack.c.l.b16 %v1253
        %v2793 = vunpack.c.h.b16 %v1253
        %v2794 = vunpack.c.l.b16 %v1254
        %v2795 = vunpack.c.h.b16 %v1254
        %v2796 = vunpack.c.l.b16 %v1255
        %v2797 = vunpack.c.h.b16 %v1255
        %v2798 = vunpack.c.l.b16 %v1256
        %v2799 = vunpack.c.h.b16 %v1256
        %v2800 = vunpack.c.l.b16 %v1257
        %v2801 = vunpack.c.h.b16 %v1257
        %v2802 = vunpack.c.l.b16 %v1258
        %v2803 = vunpack.c.h.b16 %v1258
        %v2804 = vunpack.c.l.b16 %v1259
        %v2805 = vunpack.c.h.b16 %v1259
        %v2806 = vunpack.c.l.b16 %v1260
        %v2807 = vunpack.c.h.b16 %v1260
        %v2808 = vunpack.c.l.b16 %v1261
        %v2809 = vunpack.c.h.b16 %v1261
        %v2810 = vunpack.c.l.b16 %v1262
        %v2811 = vunpack.c.h.b16 %v1262
        %v2812 = vunpack.c.l.b16 %v1263
        %v2813 = vunpack.c.h.b16 %v1263
        %v2814 = vunpack.c.l.b16 %v1264
        %v2815 = vunpack.c.h.b16 %v1264
        %v2816 = vunpack.c.l.b16 %v1265
        %v2817 = vunpack.c.h.b16 %v1265
        %v2818 = vunpack.c.l.b16 %v1266
        %v2819 = vunpack.c.h.b16 %v1266
        %v2820 = vunpack.c.l.b16 %v1267
        %v2821 = vunpack.c.h.b16 %v1267
        %v2822 = vunpack.c.l.b16 %v1268
        %v2823 = vunpack.c.h.b16 %v1268
        %v2824 = vunpack.c.l.b16 %v1269
        %v2825 = vunpack.c.h.b16 %v1269
        %v2826 = vunpack.c.l.b16 %v1270
        %v2827 = vunpack.c.h.b16 %v1270
        %v2828 = vunpack.c.l.b16 %v1271
        %v2829 = vunpack.c.h.b16 %v1271
        %v2830 = vunpack.c.l.b16 %v1272
        %v2831 = vunpack.c.h.b16 %v1272
        %v2832 = vunpack.c.l.b16 %v1273
        %v2833 = vunpack.c.h.b16 %v1273
        %v2834 = vunpack.c.l.b16 %v1274
        %v2835 = vunpack.c.h.b16 %v1274
        %v2836 = vunpack.c.l.b16 %v1275
        %v2837 = vunpack.c.h.b16 %v1275
        %v2838 = vunpack.c.l.b16 %v1276
        %v2839 = vunpack.c.h.b16 %v1276
        %v2840 = vunpack.c.l.b16 %v1277
        %v2841 = vunpack.c.h.b16 %v1277
        %v2842 = vunpack.c.l.b16 %v1278
        %v2843 = vunpack.c.h.b16 %v1278
        %v2844 = vunpack.c.l.b16 %v1279
        %v2845 = vunpack.c.h.b16 %v1279
        %v2846 = vunpack.c.l.b16 %v1280
        %v2847 = vunpack.c.h.b16 %v1280
        %v2848 = vunpack.c.l.b16 %v1281
        %v2849 = vunpack.c.h.b16 %v1281
        %v2850 = vunpack.c.l.b16 %v1282
        %v2851 = vunpack.c.h.b16 %v1282
        %v2852 = vunpack.c.l.b16 %v1283
        %v2853 = vunpack.c.h.b16 %v1283
        %v2854 = vunpack.c.l.b16 %v1284
        %v2855 = vunpack.c.h.b16 %v1284
        %v2856 = vunpack.c.l.b16 %v1285
        %v2857 = vunpack.c.h.b16 %v1285
        %v2858 = vunpack.c.l.b16 %v1286
        %v2859 = vunpack.c.h.b16 %v1286
        %v2860 = vunpack.c.l.b16 %v1287
        %v2861 = vunpack.c.h.b16 %v1287
        %v2862 = vunpack.c.l.b16 %v1288
        %v2863 = vunpack.c.h.b16 %v1288
        %v2864 = vunpack.c.l.b16 %v1289
        %v2865 = vunpack.c.h.b16 %v1289
        %v2866 = vunpack.c.l.b16 %v1290
        %v2867 = vunpack.c.h.b16 %v1290
        %v2868 = vunpack.c.l.b16 %v1291
        %v2869 = vunpack.c.h.b16 %v1291
        %v2870 = vunpack.c.l.b16 %v1292
        %v2871 = vunpack.c.h.b16 %v1292
        %v2872 = vunpack.c.l.b16 %v1293
        %v2873 = vunpack.c.h.b16 %v1293
        %v2874 = vunpack.c.l.b16 %v1294
        %v2875 = vunpack.c.h.b16 %v1294
        %v2876 = vunpack.c.l.b16 %v1295
        %v2877 = vunpack.c.h.b16 %v1295
        %v2878 = vunpack.c.l.b16 %v1296
        %v2879 = vunpack.c.h.b16 %v1296
        %v2880 = vunpack.c.l.b16 %v1297
        %v2881 = vunpack.c.h.b16 %v1297
        %v2882 = vunpack.c.l.b16 %v1298
        %v2883 = vunpack.c.h.b16 %v1298
        %v2884 = vunpack.c.l.b16 %v1299
        %v2885 = vunpack.c.h.b16 %v1299
        %v2886 = vunpack.c.l.b16 %v1300
        %v2887 = vunpack.c.h.b16 %v1300
        %v2888 = vunpack.c.l.b16 %v1301
        %v2889 = vunpack.c.h.b16 %v1301
        %v2890 = vunpack.c.l.b16 %v1302
        %v2891 = vunpack.c.h.b16 %v1302
        %v2892 = vunpack.c.l.b16 %v1303
        %v2893 = vunpack.c.h.b16 %v1303
        %v2894 = vunpack.c.l.b16 %v1304
        %v2895 = vunpack.c.h.b16 %v1304
        %v2896 = vunpack.c.l.b16 %v1305
        %v2897 = vunpack.c.h.b16 %v1305
        %v2898 = vunpack.c.l.b16 %v1306
        %v2899 = vunpack.c.h.b16 %v1306
        %v2900 = vunpack.c.l.b16 %v1307
        %v2901 = vunpack.c.h.b16 %v1307
        %v2902 = vunpack.c.l.b16 %v1308
        %v2903 = vunpack.c.h.b16 %v1308
        %v2904 = vunpack.c.l.b16 %v1309
        %v2905 = vunpack.c.h.b16 %v1309
        %v2906 = vunpack.c.l.b16 %v1310
        %v2907 = vunpack.c.h.b16 %v1310
        %v2908 = vunpack.c.l.b16 %v1311
        %v2909 = vunpack.c.h.b16 %v1311
        %v2910 = vunpack.c.l.b16 %v1312
        %v2911 = vunpack.c.h.b16 %v1312
        %v2912 = vunpack.c.l.b16 %v1313
        %v2913 = vunpack.c.h.b16 %v1313
        %v2914 = vunpack.c.l.b16 %v1314
        %v2915 = vunpack.c.h.b16 %v1314
        %v2916 = vunpack.c.l.b16 %v1315
        %v2917 = vunpack.c.h.b16 %v1315
        %v2918 = vunpack.c.l.b16 %v1316
        %v2919 = vunpack.c.h.b16 %v1316
        %v2920 = vunpack.c.l.b16 %v1317
        %v2921 = vunpack.c.h.b16 %v1317
        %v2922 = vunpack.c.l.b16 %v1318
        %v2923 = vunpack.c.h.b16 %v1318
        %v2924 = vunpack.c.l.b16 %v1319
        %v2925 = vunpack.c.h.b16 %v1319
        %v2926 = vunpack.c.l.b16 %v1320
        %v2927 = vunpack.c.h.b16 %v1320
        %v2928 = vunpack.c.l.b16 %v1321
        %v2929 = vunpack.c.h.b16 %v1321
        %v2930 = vunpack.c.l.b16 %v1322
        %v2931 = vunpack.c.h.b16 %v1322
        %v2932 = vunpack.c.l.b16 %v1323
        %v2933 = vunpack.c.h.b16 %v1323
        %v2934 = vunpack.c.l.b16 %v1324
        %v2935 = vunpack.c.h.b16 %v1324
        %v2936 = vunpack.c.l.b16 %v1325
        %v2937 = vunpack.c.h.b16 %v1325
        %v2938 = vunpack.c.l.b16 %v1326
        %v2939 = vunpack.c.h.b16 %v1326
        %v2940 = vunpack.c.l.b16 %v1327
        %v2941 = vunpack.c.h.b16 %v1327
        %v2942 = vunpack.c.l.b16 %v1328
        %v2943 = vunpack.c.h.b16 %v1328
        %v2944 = vunpack.c.l.b16 %v1329
        %v2945 = vunpack.c.h.b16 %v1329
        %v2946 = vunpack.c.l.b16 %v1330
        %v2947 = vunpack.c.h.b16 %v1330
        %v2948 = vunpack.c.l.b16 %v1331
        %v2949 = vunpack.c.h.b16 %v1331
        %v2950 = vunpack.c.l.b16 %v1332
        %v2951 = vunpack.c.h.b16 %v1332
        %v2952 = vunpack.c.l.b16 %v1333
        %v2953 = vunpack.c.h.b16 %v1333
        %v2954 = vunpack.c.l.b16 %v1334
        %v2955 = vunpack.c.h.b16 %v1334
        %v2956 = vunpack.c.l.b16 %v1335
        %v2957 = vunpack.c.h.b16 %v1335
        %v2958 = vunpack.c.l.b16 %v1336
        %v2959 = vunpack.c.h.b16 %v1336
        %v2960 = vunpack.c.l.b16 %v1337
        %v2961 = vunpack.c.h.b16 %v1337
        %v2962 = vunpack.c.l.b16 %v1338
        %v2963 = vunpack.c.h.b16 %v1338
        %v2964 = vunpack.c.l.b16 %v1339
        %v2965 = vunpack.c.h.b16 %v1339
        %v2966 = vunpack.c.l.b16 %v1340
        %v2967 = vunpack.c.h.b16 %v1340
        %v2968 = vunpack.c.l.b16 %v1341
        %v2969 = vunpack.c.h.b16 %v1341
        %v2970 = vunpack.c.l.b16 %v1342
        %v2971 = vunpack.c.h.b16 %v1342
        %v2972 = vunpack.c.l.b16 %v1343
        %v2973 = vunpack.c.h.b16 %v1343
        %v2974 = vunpack.c.l.b16 %v1344
        %v2975 = vunpack.c.h.b16 %v1344
        %v2976 = vunpack.c.l.b16 %v1345
        %v2977 = vunpack.c.h.b16 %v1345
        %v2978 = vunpack.c.l.b16 %v1346
        %v2979 = vunpack.c.h.b16 %v1346
        %v2980 = vunpack.c.l.b16 %v1347
        %v2981 = vunpack.c.h.b16 %v1347
        %v2982 = vunpack.c.l.b16 %v1348
        %v2983 = vunpack.c.h.b16 %v1348
        %v2984 = vunpack.c.l.b16 %v1349
        %v2985 = vunpack.c.h.b16 %v1349
        %v2986 = vunpack.c.l.b16 %v1350
        %v2987 = vunpack.c.h.b16 %v1350
        %v2988 = vunpack.c.l.b16 %v1351
        %v2989 = vunpack.c.h.b16 %v1351
        %v2990 = vunpack.c.l.b16 %v1352
        %v2991 = vunpack.c.h.b16 %v1352
        %v2992 = vunpack.c.l.b16 %v1353
        %v2993 = vunpack.c.h.b16 %v1353
        %v2994 = vunpack.c.l.b16 %v1354
        %v2995 = vunpack.c.h.b16 %v1354
        %v2996 = vunpack.c.l.b16 %v1355
        %v2997 = vunpack.c.h.b16 %v1355
        %v2998 = vunpack.c.l.b16 %v1356
        %v2999 = vunpack.c.h.b16 %v1356
        %v3000 = vunpack.c.l.b16 %v1357
        %v3001 = vunpack.c.h.b16 %v1357
        %v3002 = vunpack.c.l.b16 %v1358
        %v3003 = vunpack.c.h.b16 %v1358
        %v3004 = vunpack.c.l.b16 %v1359
        %v3005 = vunpack.c.h.b16 %v1359
        %v3006 = vunpack.c.l.b16 %v1360
        %v3007 = vunpack.c.h.b16 %v1360
        %v3008 = vunpack.c.l.b16 %v1361
        %v3009 = vunpack.c.h.b16 %v1361
        %v3010 = vpack.c.b16 %v1990, %v1986
        %v3011 = vpack.c.b16 %v1991, %v1987
        %v3012 = vpack.c.b16 %v1992, %v1988
        %v3013 = vpack.c.b16 %v1993, %v1989
        %v3014 = vpack.c.b16 %v1998, %v1994
        %v3015 = vpack.c.b16 %v1999, %v1995
        %v3016 = vpack.c.b16 %v2000, %v1996
        %v3017 = vpack.c.b16 %v2001, %v1997
        %v3018 = vpack.c.b16 %v2006, %v2002
        %v3019 = vpack.c.b16 %v2007, %v2003
        %v3020 = vpack.c.b16 %v2008, %v2004
        %v3021 = vpack.c.b16 %v2009, %v2005
        %v3022 = vpack.c.b16 %v2014, %v2010
        %v3023 = vpack.c.b16 %v2015, %v2011
        %v3024 = vpack.c.b16 %v2016, %v2012
        %v3025 = vpack.c.b16 %v2017, %v2013
        %v3026 = vpack.c.b16 %v2022, %v2018
        %v3027 = vpack.c.b16 %v2023, %v2019
        %v3028 = vpack.c.b16 %v2024, %v2020
        %v3029 = vpack.c.b16 %v2025, %v2021
        %v3030 = vpack.c.b16 %v2030, %v2026
        %v3031 = vpack.c.b16 %v2031, %v2027
        %v3032 = vpack.c.b16 %v2032, %v2028
        %v3033 = vpack.c.b16 %v2033, %v2029
        %v3034 = vpack.c.b16 %v2038, %v2034
        %v3035 = vpack.c.b16 %v2039, %v2035
        %v3036 = vpack.c.b16 %v2040, %v2036
        %v3037 = vpack.c.b16 %v2041, %v2037
        %v3038 = vpack.c.b16 %v2046, %v2042
        %v3039 = vpack.c.b16 %v2047, %v2043
        %v3040 = vpack.c.b16 %v2048, %v2044
        %v3041 = vpack.c.b16 %v2049, %v2045
        %v3042 = vpack.c.b16 %v2054, %v2050
        %v3043 = vpack.c.b16 %v2055, %v2051
        %v3044 = vpack.c.b16 %v2056, %v2052
        %v3045 = vpack.c.b16 %v2057, %v2053
        %v3046 = vpack.c.b16 %v2062, %v2058
        %v3047 = vpack.c.b16 %v2063, %v2059
        %v3048 = vpack.c.b16 %v2064, %v2060
        %v3049 = vpack.c.b16 %v2065, %v2061
        %v3050 = vpack.c.b16 %v2070, %v2066
        %v3051 = vpack.c.b16 %v2071, %v2067
        %v3052 = vpack.c.b16 %v2072, %v2068
        %v3053 = vpack.c.b16 %v2073, %v2069
        %v3054 = vpack.c.b16 %v2078, %v2074
        %v3055 = vpack.c.b16 %v2079, %v2075
        %v3056 = vpack.c.b16 %v2080, %v2076
        %v3057 = vpack.c.b16 %v2081, %v2077
        %v3058 = vpack.c.b16 %v2086, %v2082
        %v3059 = vpack.c.b16 %v2087, %v2083
        %v3060 = vpack.c.b16 %v2088, %v2084
        %v3061 = vpack.c.b16 %v2089, %v2085
        %v3062 = vpack.c.b16 %v2094, %v2090
        %v3063 = vpack.c.b16 %v2095, %v2091
        %v3064 = vpack.c.b16 %v2096, %v2092
        %v3065 = vpack.c.b16 %v2097, %v2093
        %v3066 = vpack.c.b16 %v2102, %v2098
        %v3067 = vpack.c.b16 %v2103, %v2099
        %v3068 = vpack.c.b16 %v2104, %v2100
        %v3069 = vpack.c.b16 %v2105, %v2101
        %v3070 = vpack.c.b16 %v2110, %v2106
        %v3071 = vpack.c.b16 %v2111, %v2107
        %v3072 = vpack.c.b16 %v2112, %v2108
        %v3073 = vpack.c.b16 %v2113, %v2109
        %v3074 = vpack.c.b16 %v2118, %v2114
        %v3075 = vpack.c.b16 %v2119, %v2115
        %v3076 = vpack.c.b16 %v2120, %v2116
        %v3077 = vpack.c.b16 %v2121, %v2117
        %v3078 = vpack.c.b16 %v2126, %v2122
        %v3079 = vpack.c.b16 %v2127, %v2123
        %v3080 = vpack.c.b16 %v2128, %v2124
        %v3081 = vpack.c.b16 %v2129, %v2125
        %v3082 = vpack.c.b16 %v2134, %v2130
        %v3083 = vpack.c.b16 %v2135, %v2131
        %v3084 = vpack.c.b16 %v2136, %v2132
        %v3085 = vpack.c.b16 %v2137, %v2133
        %v3086 = vpack.c.b16 %v2142, %v2138
        %v3087 = vpack.c.b16 %v2143, %v2139
        %v3088 = vpack.c.b16 %v2144, %v2140
        %v3089 = vpack.c.b16 %v2145, %v2141
        %v3090 = vpack.c.b16 %v2150, %v2146
        %v3091 = vpack.c.b16 %v2151, %v2147
        %v3092 = vpack.c.b16 %v2152, %v2148
        %v3093 = vpack.c.b16 %v2153, %v2149
        %v3094 = vpack.c.b16 %v2158, %v2154
        %v3095 = vpack.c.b16 %v2159, %v2155
        %v3096 = vpack.c.b16 %v2160, %v2156
        %v3097 = vpack.c.b16 %v2161, %v2157
        %v3098 = vpack.c.b16 %v2166, %v2162
        %v3099 = vpack.c.b16 %v2167, %v2163
        %v3100 = vpack.c.b16 %v2168, %v2164
        %v3101 = vpack.c.b16 %v2169, %v2165
        %v3102 = vpack.c.b16 %v2174, %v2170
        %v3103 = vpack.c.b16 %v2175, %v2171
        %v3104 = vpack.c.b16 %v2176, %v2172
        %v3105 = vpack.c.b16 %v2177, %v2173
        %v3106 = vpack.c.b16 %v2182, %v2178
        %v3107 = vpack.c.b16 %v2183, %v2179
        %v3108 = vpack.c.b16 %v2184, %v2180
        %v3109 = vpack.c.b16 %v2185, %v2181
        %v3110 = vpack.c.b16 %v2190, %v2186
        %v3111 = vpack.c.b16 %v2191, %v2187
        %v3112 = vpack.c.b16 %v2192, %v2188
        %v3113 = vpack.c.b16 %v2193, %v2189
        %v3114 = vpack.c.b16 %v2198, %v2194
        %v3115 = vpack.c.b16 %v2199, %v2195
        %v3116 = vpack.c.b16 %v2200, %v2196
        %v3117 = vpack.c.b16 %v2201, %v2197
        %v3118 = vpack.c.b16 %v2206, %v2202
        %v3119 = vpack.c.b16 %v2207, %v2203
        %v3120 = vpack.c.b16 %v2208, %v2204
        %v3121 = vpack.c.b16 %v2209, %v2205
        %v3122 = vpack.c.b16 %v2214, %v2210
        %v3123 = vpack.c.b16 %v2215, %v2211
        %v3124 = vpack.c.b16 %v2216, %v2212
        %v3125 = vpack.c.b16 %v2217, %v2213
        %v3126 = vpack.c.b16 %v2222, %v2218
        %v3127 = vpack.c.b16 %v2223, %v2219
        %v3128 = vpack.c.b16 %v2224, %v2220
        %v3129 = vpack.c.b16 %v2225, %v2221
        %v3130 = vpack.c.b16 %v2230, %v2226
        %v3131 = vpack.c.b16 %v2231, %v2227
        %v3132 = vpack.c.b16 %v2232, %v2228
        %v3133 = vpack.c.b16 %v2233, %v2229
        %v3134 = vpack.c.b16 %v2238, %v2234
        %v3135 = vpack.c.b16 %v2239, %v2235
        %v3136 = vpack.c.b16 %v2240, %v2236
        %v3137 = vpack.c.b16 %v2241, %v2237
        %v3138 = vpack.c.b16 %v2246, %v2242
        %v3139 = vpack.c.b16 %v2247, %v2243
        %v3140 = vpack.c.b16 %v2248, %v2244
        %v3141 = vpack.c.b16 %v2249, %v2245
        %v3142 = vpack.c.b16 %v2254, %v2250
        %v3143 = vpack.c.b16 %v2255, %v2251
        %v3144 = vpack.c.b16 %v2256, %v2252
        %v3145 = vpack.c.b16 %v2257, %v2253
        %v3146 = vpack.c.b16 %v2262, %v2258
        %v3147 = vpack.c.b16 %v2263, %v2259
        %v3148 = vpack.c.b16 %v2264, %v2260
        %v3149 = vpack.c.b16 %v2265, %v2261
        %v3150 = vpack.c.b16 %v2270, %v2266
        %v3151 = vpack.c.b16 %v2271, %v2267
        %v3152 = vpack.c.b16 %v2272, %v2268
        %v3153 = vpack.c.b16 %v2273, %v2269
        %v3154 = vpack.c.b16 %v2278, %v2274
        %v3155 = vpack.c.b16 %v2279, %v2275
        %v3156 = vpack.c.b16 %v2280, %v2276
        %v3157 = vpack.c.b16 %v2281, %v2277
        %v3158 = vpack.c.b16 %v2286, %v2282
        %v3159 = vpack.c.b16 %v2287, %v2283
        %v3160 = vpack.c.b16 %v2288, %v2284
        %v3161 = vpack.c.b16 %v2289, %v2285
        %v3162 = vpack.c.b16 %v2294, %v2290
        %v3163 = vpack.c.b16 %v2295, %v2291
        %v3164 = vpack.c.b16 %v2296, %v2292
        %v3165 = vpack.c.b16 %v2297, %v2293
        %v3166 = vpack.c.b16 %v2302, %v2298
        %v3167 = vpack.c.b16 %v2303, %v2299
        %v3168 = vpack.c.b16 %v2304, %v2300
        %v3169 = vpack.c.b16 %v2305, %v2301
        %v3170 = vpack.c.b16 %v2310, %v2306
        %v3171 = vpack.c.b16 %v2311, %v2307
        %v3172 = vpack.c.b16 %v2312, %v2308
        %v3173 = vpack.c.b16 %v2313, %v2309
        %v3174 = vpack.c.b16 %v2318, %v2314
        %v3175 = vpack.c.b16 %v2319, %v2315
        %v3176 = vpack.c.b16 %v2320, %v2316
        %v3177 = vpack.c.b16 %v2321, %v2317
        %v3178 = vpack.c.b16 %v2326, %v2322
        %v3179 = vpack.c.b16 %v2327, %v2323
        %v3180 = vpack.c.b16 %v2328, %v2324
        %v3181 = vpack.c.b16 %v2329, %v2325
        %v3182 = vpack.c.b16 %v2334, %v2330
        %v3183 = vpack.c.b16 %v2335, %v2331
        %v3184 = vpack.c.b16 %v2336, %v2332
        %v3185 = vpack.c.b16 %v2337, %v2333
        %v3186 = vpack.c.b16 %v2342, %v2338
        %v3187 = vpack.c.b16 %v2343, %v2339
        %v3188 = vpack.c.b16 %v2344, %v2340
        %v3189 = vpack.c.b16 %v2345, %v2341
        %v3190 = vpack.c.b16 %v2350, %v2346
        %v3191 = vpack.c.b16 %v2351, %v2347
        %v3192 = vpack.c.b16 %v2352, %v2348
        %v3193 = vpack.c.b16 %v2353, %v2349
        %v3194 = vpack.c.b16 %v2358, %v2354
        %v3195 = vpack.c.b16 %v2359, %v2355
        %v3196 = vpack.c.b16 %v2360, %v2356
        %v3197 = vpack.c.b16 %v2361, %v2357
        %v3198 = vpack.c.b16 %v2366, %v2362
        %v3199 = vpack.c.b16 %v2367, %v2363
        %v3200 = vpack.c.b16 %v2368, %v2364
        %v3201 = vpack.c.b16 %v2369, %v2365
        %v3202 = vpack.c.b16 %v2374, %v2370
        %v3203 = vpack.c.b16 %v2375, %v2371
        %v3204 = vpack.c.b16 %v2376, %v2372
        %v3205 = vpack.c.b16 %v2377, %v2373
        %v3206 = vpack.c.b16 %v2382, %v2378
        %v3207 = vpack.c.b16 %v2383, %v2379
        %v3208 = vpack.c.b16 %v2384, %v2380
        %v3209 = vpack.c.b16 %v2385, %v2381
        %v3210 = vpack.c.b16 %v2390, %v2386
        %v3211 = vpack.c.b16 %v2391, %v2387
        %v3212 = vpack.c.b16 %v2392, %v2388
        %v3213 = vpack.c.b16 %v2393, %v2389
        %v3214 = vpack.c.b16 %v2398, %v2394
        %v3215 = vpack.c.b16 %v2399, %v2395
        %v3216 = vpack.c.b16 %v2400, %v2396
        %v3217 = vpack.c.b16 %v2401, %v2397
        %v3218 = vpack.c.b16 %v2406, %v2402
        %v3219 = vpack.c.b16 %v2407, %v2403
        %v3220 = vpack.c.b16 %v2408, %v2404
        %v3221 = vpack.c.b16 %v2409, %v2405
        %v3222 = vpack.c.b16 %v2414, %v2410
        %v3223 = vpack.c.b16 %v2415, %v2411
        %v3224 = vpack.c.b16 %v2416, %v2412
        %v3225 = vpack.c.b16 %v2417, %v2413
        %v3226 = vpack.c.b16 %v2422, %v2418
        %v3227 = vpack.c.b16 %v2423, %v2419
        %v3228 = vpack.c.b16 %v2424, %v2420
        %v3229 = vpack.c.b16 %v2425, %v2421
        %v3230 = vpack.c.b16 %v2430, %v2426
        %v3231 = vpack.c.b16 %v2431, %v2427
        %v3232 = vpack.c.b16 %v2432, %v2428
        %v3233 = vpack.c.b16 %v2433, %v2429
        %v3234 = vpack.c.b16 %v2438, %v2434
        %v3235 = vpack.c.b16 %v2439, %v2435
        %v3236 = vpack.c.b16 %v2440, %v2436
        %v3237 = vpack.c.b16 %v2441, %v2437
        %v3238 = vpack.c.b16 %v2446, %v2442
        %v3239 = vpack.c.b16 %v2447, %v2443
        %v3240 = vpack.c.b16 %v2448, %v2444
        %v3241 = vpack.c.b16 %v2449, %v2445
        %v3242 = vpack.c.b16 %v2454, %v2450
        %v3243 = vpack.c.b16 %v2455, %v2451
        %v3244 = vpack.c.b16 %v2456, %v2452
        %v3245 = vpack.c.b16 %v2457, %v2453
        %v3246 = vpack.c.b16 %v2462, %v2458
        %v3247 = vpack.c.b16 %v2463, %v2459
        %v3248 = vpack.c.b16 %v2464, %v2460
        %v3249 = vpack.c.b16 %v2465, %v2461
        %v3250 = vpack.c.b16 %v2470, %v2466
        %v3251 = vpack.c.b16 %v2471, %v2467
        %v3252 = vpack.c.b16 %v2472, %v2468
        %v3253 = vpack.c.b16 %v2473, %v2469
        %v3254 = vpack.c.b16 %v2478, %v2474
        %v3255 = vpack.c.b16 %v2479, %v2475
        %v3256 = vpack.c.b16 %v2480, %v2476
        %v3257 = vpack.c.b16 %v2481, %v2477
        %v3258 = vpack.c.b16 %v2486, %v2482
        %v3259 = vpack.c.b16 %v2487, %v2483
        %v3260 = vpack.c.b16 %v2488, %v2484
        %v3261 = vpack.c.b16 %v2489, %v2485
        %v3262 = vpack.c.b16 %v2494, %v2490
        %v3263 = vpack.c.b16 %v2495, %v2491
        %v3264 = vpack.c.b16 %v2496, %v2492
        %v3265 = vpack.c.b16 %v2497, %v2493
        %v3266 = vpack.c.b16 %v2502, %v2498
        %v3267 = vpack.c.b16 %v2503, %v2499
        %v3268 = vpack.c.b16 %v2504, %v2500
        %v3269 = vpack.c.b16 %v2505, %v2501
        %v3270 = vpack.c.b16 %v2510, %v2506
        %v3271 = vpack.c.b16 %v2511, %v2507
        %v3272 = vpack.c.b16 %v2512, %v2508
        %v3273 = vpack.c.b16 %v2513, %v2509
        %v3274 = vpack.c.b16 %v2518, %v2514
        %v3275 = vpack.c.b16 %v2519, %v2515
        %v3276 = vpack.c.b16 %v2520, %v2516
        %v3277 = vpack.c.b16 %v2521, %v2517
        %v3278 = vpack.c.b16 %v2526, %v2522
        %v3279 = vpack.c.b16 %v2527, %v2523
        %v3280 = vpack.c.b16 %v2528, %v2524
        %v3281 = vpack.c.b16 %v2529, %v2525
        %v3282 = vpack.c.b16 %v2534, %v2530
        %v3283 = vpack.c.b16 %v2535, %v2531
        %v3284 = vpack.c.b16 %v2536, %v2532
        %v3285 = vpack.c.b16 %v2537, %v2533
        %v3286 = vpack.c.b16 %v2542, %v2538
        %v3287 = vpack.c.b16 %v2543, %v2539
        %v3288 = vpack.c.b16 %v2544, %v2540
        %v3289 = vpack.c.b16 %v2545, %v2541
        %v3290 = vpack.c.b16 %v2550, %v2546
        %v3291 = vpack.c.b16 %v2551, %v2547
        %v3292 = vpack.c.b16 %v2552, %v2548
        %v3293 = vpack.c.b16 %v2553, %v2549
        %v3294 = vpack.c.b16 %v2558, %v2554
        %v3295 = vpack.c.b16 %v2559, %v2555
        %v3296 = vpack.c.b16 %v2560, %v2556
        %v3297 = vpack.c.b16 %v2561, %v2557
        %v3298 = vpack.c.b16 %v2566, %v2562
        %v3299 = vpack.c.b16 %v2567, %v2563
        %v3300 = vpack.c.b16 %v2568, %v2564
        %v3301 = vpack.c.b16 %v2569, %v2565
        %v3302 = vpack.c.b16 %v2574, %v2570
        %v3303 = vpack.c.b16 %v2575, %v2571
        %v3304 = vpack.c.b16 %v2576, %v2572
        %v3305 = vpack.c.b16 %v2577, %v2573
        %v3306 = vpack.c.b16 %v2582, %v2578
        %v3307 = vpack.c.b16 %v2583, %v2579
        %v3308 = vpack.c.b16 %v2584, %v2580
        %v3309 = vpack.c.b16 %v2585, %v2581
        %v3310 = vpack.c.b16 %v2590, %v2586
        %v3311 = vpack.c.b16 %v2591, %v2587
        %v3312 = vpack.c.b16 %v2592, %v2588
        %v3313 = vpack.c.b16 %v2593, %v2589
        %v3314 = vpack.c.b16 %v2598, %v2594
        %v3315 = vpack.c.b16 %v2599, %v2595
        %v3316 = vpack.c.b16 %v2600, %v2596
        %v3317 = vpack.c.b16 %v2601, %v2597
        %v3318 = vpack.c.b16 %v2606, %v2602
        %v3319 = vpack.c.b16 %v2607, %v2603
        %v3320 = vpack.c.b16 %v2608, %v2604
        %v3321 = vpack.c.b16 %v2609, %v2605
        %v3322 = vpack.c.b16 %v2614, %v2610
        %v3323 = vpack.c.b16 %v2615, %v2611
        %v3324 = vpack.c.b16 %v2616, %v2612
        %v3325 = vpack.c.b16 %v2617, %v2613
        %v3326 = vpack.c.b16 %v2622, %v2618
        %v3327 = vpack.c.b16 %v2623, %v2619
        %v3328 = vpack.c.b16 %v2624, %v2620
        %v3329 = vpack.c.b16 %v2625, %v2621
        %v3330 = vpack.c.b16 %v2630, %v2626
        %v3331 = vpack.c.b16 %v2631, %v2627
        %v3332 = vpack.c.b16 %v2632, %v2628
        %v3333 = vpack.c.b16 %v2633, %v2629
        %v3334 = vpack.c.b16 %v2638, %v2634
        %v3335 = vpack.c.b16 %v2639, %v2635
        %v3336 = vpack.c.b16 %v2640, %v2636
        %v3337 = vpack.c.b16 %v2641, %v2637
        %v3338 = vpack.c.b16 %v2646, %v2642
        %v3339 = vpack.c.b16 %v2647, %v2643
        %v3340 = vpack.c.b16 %v2648, %v2644
        %v3341 = vpack.c.b16 %v2649, %v2645
        %v3342 = vpack.c.b16 %v2654, %v2650
        %v3343 = vpack.c.b16 %v2655, %v2651
        %v3344 = vpack.c.b16 %v2656, %v2652
        %v3345 = vpack.c.b16 %v2657, %v2653
        %v3346 = vpack.c.b16 %v2662, %v2658
        %v3347 = vpack.c.b16 %v2663, %v2659
        %v3348 = vpack.c.b16 %v2664, %v2660
        %v3349 = vpack.c.b16 %v2665, %v2661
        %v3350 = vpack.c.b16 %v2670, %v2666
        %v3351 = vpack.c.b16 %v2671, %v2667
        %v3352 = vpack.c.b16 %v2672, %v2668
        %v3353 = vpack.c.b16 %v2673, %v2669
        %v3354 = vpack.c.b16 %v2678, %v2674
        %v3355 = vpack.c.b16 %v2679, %v2675
        %v3356 = vpack.c.b16 %v2680, %v2676
        %v3357 = vpack.c.b16 %v2681, %v2677
        %v3358 = vpack.c.b16 %v2686, %v2682
        %v3359 = vpack.c.b16 %v2687, %v2683
        %v3360 = vpack.c.b16 %v2688, %v2684
        %v3361 = vpack.c.b16 %v2689, %v2685
        %v3362 = vpack.c.b16 %v2694, %v2690
        %v3363 = vpack.c.b16 %v2695, %v2691
        %v3364 = vpack.c.b16 %v2696, %v2692
        %v3365 = vpack.c.b16 %v2697, %v2693
        %v3366 = vpack.c.b16 %v2702, %v2698
        %v3367 = vpack.c.b16 %v2703, %v2699
        %v3368 = vpack.c.b16 %v2704, %v2700
        %v3369 = vpack.c.b16 %v2705, %v2701
        %v3370 = vpack.c.b16 %v2710, %v2706
        %v3371 = vpack.c.b16 %v2711, %v2707
        %v3372 = vpack.c.b16 %v2712, %v2708
        %v3373 = vpack.c.b16 %v2713, %v2709
        %v3374 = vpack.c.b16 %v2718, %v2714
        %v3375 = vpack.c.b16 %v2719, %v2715
        %v3376 = vpack.c.b16 %v2720, %v2716
        %v3377 = vpack.c.b16 %v2721, %v2717
        %v3378 = vpack.c.b16 %v2726, %v2722
        %v3379 = vpack.c.b16 %v2727, %v2723
        %v3380 = vpack.c.b16 %v2728, %v2724
        %v3381 = vpack.c.b16 %v2729, %v2725
        %v3382 = vpack.c.b16 %v2734, %v2730
        %v3383 = vpack.c.b16 %v2735, %v2731
        %v3384 = vpack.c.b16 %v2736, %v2732
        %v3385 = vpack.c.b16 %v2737, %v2733
        %v3386 = vpack.c.b16 %v2742, %v2738
        %v3387 = vpack.c.b16 %v2743, %v2739
        %v3388 = vpack.c.b16 %v2744, %v2740
        %v3389 = vpack.c.b16 %v2745, %v2741
        %v3390 = vpack.c.b16 %v2750, %v2746
        %v3391 = vpack.c.b16 %v2751, %v2747
        %v3392 = vpack.c.b16 %v2752, %v2748
        %v3393 = vpack.c.b16 %v2753, %v2749
        %v3394 = vpack.c.b16 %v2758, %v2754
        %v3395 = vpack.c.b16 %v2759, %v2755
        %v3396 = vpack.c.b16 %v2760, %v2756
        %v3397 = vpack.c.b16 %v2761, %v2757
        %v3398 = vpack.c.b16 %v2766, %v2762
        %v3399 = vpack.c.b16 %v2767, %v2763
        %v3400 = vpack.c.b16 %v2768, %v2764
        %v3401 = vpack.c.b16 %v2769, %v2765
        %v3402 = vpack.c.b16 %v2774, %v2770
        %v3403 = vpack.c.b16 %v2775, %v2771
        %v3404 = vpack.c.b16 %v2776, %v2772
        %v3405 = vpack.c.b16 %v2777, %v2773
        %v3406 = vpack.c.b16 %v2782, %v2778
        %v3407 = vpack.c.b16 %v2783, %v2779
        %v3408 = vpack.c.b16 %v2784, %v2780
        %v3409 = vpack.c.b16 %v2785, %v2781
        %v3410 = vpack.c.b16 %v2790, %v2786
        %v3411 = vpack.c.b16 %v2791, %v2787
        %v3412 = vpack.c.b16 %v2792, %v2788
        %v3413 = vpack.c.b16 %v2793, %v2789
        %v3414 = vpack.c.b16 %v2798, %v2794
        %v3415 = vpack.c.b16 %v2799, %v2795
        %v3416 = vpack.c.b16 %v2800, %v2796
        %v3417 = vpack.c.b16 %v2801, %v2797
        %v3418 = vpack.c.b16 %v2806, %v2802
        %v3419 = vpack.c.b16 %v2807, %v2803
        %v3420 = vpack.c.b16 %v2808, %v2804
        %v3421 = vpack.c.b16 %v2809, %v2805
        %v3422 = vpack.c.b16 %v2814, %v2810
        %v3423 = vpack.c.b16 %v2815, %v2811
        %v3424 = vpack.c.b16 %v2816, %v2812
        %v3425 = vpack.c.b16 %v2817, %v2813
        %v3426 = vpack.c.b16 %v2822, %v2818
        %v3427 = vpack.c.b16 %v2823, %v2819
        %v3428 = vpack.c.b16 %v2824, %v2820
        %v3429 = vpack.c.b16 %v2825, %v2821
        %v3430 = vpack.c.b16 %v2830, %v2826
        %v3431 = vpack.c.b16 %v2831, %v2827
        %v3432 = vpack.c.b16 %v2832, %v2828
        %v3433 = vpack.c.b16 %v2833, %v2829
        %v3434 = vpack.c.b16 %v2838, %v2834
        %v3435 = vpack.c.b16 %v2839, %v2835
        %v3436 = vpack.c.b16 %v2840, %v2836
        %v3437 = vpack.c.b16 %v2841, %v2837
        %v3438 = vpack.c.b16 %v2846, %v2842
        %v3439 = vpack.c.b16 %v2847, %v2843
        %v3440 = vpack.c.b16 %v2848, %v2844
        %v3441 = vpack.c.b16 %v2849, %v2845
        %v3442 = vpack.c.b16 %v2854, %v2850
        %v3443 = vpack.c.b16 %v2855, %v2851
        %v3444 = vpack.c.b16 %v2856, %v2852
        %v3445 = vpack.c.b16 %v2857, %v2853
        %v3446 = vpack.c.b16 %v2862, %v2858
        %v3447 = vpack.c.b16 %v2863, %v2859
        %v3448 = vpack.c.b16 %v2864, %v2860
        %v3449 = vpack.c.b16 %v2865, %v2861
        %v3450 = vpack.c.b16 %v2870, %v2866
        %v3451 = vpack.c.b16 %v2871, %v2867
        %v3452 = vpack.c.b16 %v2872, %v2868
        %v3453 = vpack.c.b16 %v2873, %v2869
        %v3454 = vpack.c.b16 %v2878, %v2874
        %v3455 = vpack.c.b16 %v2879, %v2875
        %v3456 = vpack.c.b16 %v2880, %v2876
        %v3457 = vpack.c.b16 %v2881, %v2877
        %v3458 = vpack.c.b16 %v2886, %v2882
        %v3459 = vpack.c.b16 %v2887, %v2883
        %v3460 = vpack.c.b16 %v2888, %v2884
        %v3461 = vpack.c.b16 %v2889, %v2885
        %v3462 = vpack.c.b16 %v2894, %v2890
        %v3463 = vpack.c.b16 %v2895, %v2891
        %v3464 = vpack.c.b16 %v2896, %v2892
        %v3465 = vpack.c.b16 %v2897, %v2893
        %v3466 = vpack.c.b16 %v2902, %v2898
        %v3467 = vpack.c.b16 %v2903, %v2899
        %v3468 = vpack.c.b16 %v2904, %v2900
        %v3469 = vpack.c.b16 %v2905, %v2901
        %v3470 = vpack.c.b16 %v2910, %v2906
        %v3471 = vpack.c.b16 %v2911, %v2907
        %v3472 = vpack.c.b16 %v2912, %v2908
        %v3473 = vpack.c.b16 %v2913, %v2909
        %v3474 = vpack.c.b16 %v2918, %v2914
        %v3475 = vpack.c.b16 %v2919, %v2915
        %v3476 = vpack.c.b16 %v2920, %v2916
        %v3477 = vpack.c.b16 %v2921, %v2917
        %v3478 = vpack.c.b16 %v2926, %v2922
        %v3479 = vpack.c.b16 %v2927, %v2923
        %v3480 = vpack.c.b16 %v2928, %v2924
        %v3481 = vpack.c.b16 %v2929, %v2925
        %v3482 = vpack.c.b16 %v2934, %v2930
        %v3483 = vpack.c.b16 %v2935, %v2931
        %v3484 = vpack.c.b16 %v2936, %v2932
        %v3485 = vpack.c.b16 %v2937, %v2933
        %v3486 = vpack.c.b16 %v2942, %v2938
        %v3487 = vpack.c.b16 %v2943, %v2939
        %v3488 = vpack.c.b16 %v2944, %v2940
        %v3489 = vpack.c.b16 %v2945, %v2941
        %v3490 = vpack.c.b16 %v2950, %v2946
        %v3491 = vpack.c.b16 %v2951, %v2947
        %v3492 = vpack.c.b16 %v2952, %v2948
        %v3493 = vpack.c.b16 %v2953, %v2949
        %v3494 = vpack.c.b16 %v2958, %v2954
        %v3495 = vpack.c.b16 %v2959, %v2955
        %v3496 = vpack.c.b16 %v2960, %v2956
        %v3497 = vpack.c.b16 %v2961, %v2957
        %v3498 = vpack.c.b16 %v2966, %v2962
        %v3499 = vpack.c.b16 %v2967, %v2963
        %v3500 = vpack.c.b16 %v2968, %v2964
        %v3501 = vpack.c.b16 %v2969, %v2965
        %v3502 = vpack.c.b16 %v2974, %v2970
        %v3503 = vpack.c.b16 %v2975, %v2971
        %v3504 = vpack.c.b16 %v2976, %v2972
        %v3505 = vpack.c.b16 %v2977, %v2973
        %v3506 = vpack.c.b16 %v2982, %v2978
        %v3507 = vpack.c.b16 %v2983, %v2979
        %v3508 = vpack.c.b16 %v2984, %v2980
        %v3509 = vpack.c.b16 %v2985, %v2981
        %v3510 = vpack.c.b16 %v2990, %v2986
        %v3511 = vpack.c.b16 %v2991, %v2987
        %v3512 = vpack.c.b16 %v2992, %v2988
        %v3513 = vpack.c.b16 %v2993, %v2989
        %v3514 = vpack.c.b16 %v2998, %v2994
        %v3515 = vpack.c.b16 %v2999, %v2995
        %v3516 = vpack.c.b16 %v3000, %v2996
        %v3517 = vpack.c.b16 %v3001, %v2997
        %v3518 = vpack.c.b16 %v3006, %v3002
        %v3519 = vpack.c.b16 %v3007, %v3003
        %v3520 = vpack.c.b16 %v3008, %v3004
        %v3521 = vpack.c.b16 %v3009, %v3005
        %4034 = vmatprep.subr.bf16.mxu0 %v3011
        %4035 = vmatpush1.bf16.msra.mxu0 %v3010
        %4036 = vmatprep.subr.bf16.mxu0 %v3015
        %4037 = vmatpush1.bf16.msra.mxu0 %v3014
        %4038 = vmatprep.subr.bf16.mxu0 %v3019
        %4039 = vmatpush1.bf16.msra.mxu0 %v3018
        %4040 = vmatprep.subr.bf16.mxu0 %v3023
        %4041 = vmatpush1.bf16.msra.mxu0 %v3022
        %4042 = vmatprep.subr.bf16.mxu0 %v3027
        %4043 = vmatpush1.bf16.msra.mxu0 %v3026
        %4044 = vmatprep.subr.bf16.mxu0 %v3031
        %4045 = vmatpush1.bf16.msra.mxu0 %v3030
        %4046 = vmatprep.subr.bf16.mxu0 %v3035
        %4047 = vmatpush1.bf16.msra.mxu0 %v3034
        %4048 = vmatprep.subr.bf16.mxu0 %v3039
        %4049 = vmatpush1.bf16.msra.mxu0 %v3038
        %4050 = vmatprep.subr.bf16.mxu0 %v3043
        %4051 = vmatpush1.bf16.msra.mxu0 %v3042
        %4052 = vmatprep.subr.bf16.mxu0 %v3047
        %4053 = vmatpush1.bf16.msra.mxu0 %v3046
        %4054 = vmatprep.subr.bf16.mxu0 %v3051
        %4055 = vmatpush1.bf16.msra.mxu0 %v3050
        %4056 = vmatprep.subr.bf16.mxu0 %v3055
        %4057 = vmatpush1.bf16.msra.mxu0 %v3054
        %4058 = vmatprep.subr.bf16.mxu0 %v3059
        %4059 = vmatpush1.bf16.msra.mxu0 %v3058
        %4060 = vmatprep.subr.bf16.mxu0 %v3063
        %4061 = vmatpush1.bf16.msra.mxu0 %v3062
        %4062 = vmatprep.subr.bf16.mxu0 %v3067
        %4063 = vmatpush1.bf16.msra.mxu0 %v3066
        %4064 = vmatprep.subr.bf16.mxu0 %v3071
        %4065 = vmatpush1.bf16.msra.mxu0 %v3070
        %4066 = vmatprep.mubr.bf16.mxu0 %v1443
        %4067 = vmatmul.mubr.bf16.gmra.mrb[0].mxu0 %v1442
        %v4068 = vpop.f32.mrb[0].mxu0
        %v4069 = vadd.f32 0.0, %v4068
        %v4070 = vpop.f32.mrb[0].mxu0
        %v4071 = vadd.f32 0.0, %v4070
        %v4072 = vpop.f32.mrb[0].mxu0
        %v4073 = vpop.f32.mrb[0].mxu0
        %4074 = vdwg.mxu0
        %4075 = vmatprep.subr.bf16.mxu0 %v3075
        %4076 = vmatpush1.bf16.msra.mxu0 %v3074
        %4077 = vmatprep.subr.bf16.mxu0 %v3079
        %4078 = vmatpush1.bf16.msra.mxu0 %v3078
        %4079 = vmatprep.subr.bf16.mxu0 %v3083
        %4080 = vmatpush1.bf16.msra.mxu0 %v3082
        %4081 = vmatprep.subr.bf16.mxu0 %v3087
        %4082 = vmatpush1.bf16.msra.mxu0 %v3086
        %4083 = vmatprep.subr.bf16.mxu0 %v3091
        %4084 = vmatpush1.bf16.msra.mxu0 %v3090
        %4085 = vmatprep.subr.bf16.mxu0 %v3095
        %4086 = vmatpush1.bf16.msra.mxu0 %v3094
        %4087 = vmatprep.subr.bf16.mxu0 %v3099
        %4088 = vmatpush1.bf16.msra.mxu0 %v3098
        %4089 = vmatprep.subr.bf16.mxu0 %v3103
        %4090 = vmatpush1.bf16.msra.mxu0 %v3102
        %4091 = vmatprep.subr.bf16.mxu0 %v3107
        %4092 = vmatpush1.bf16.msra.mxu0 %v3106
        %4093 = vmatprep.subr.bf16.mxu0 %v3111
        %4094 = vmatpush1.bf16.msra.mxu0 %v3110
        %4095 = vmatprep.subr.bf16.mxu0 %v3115
        %4096 = vmatpush1.bf16.msra.mxu0 %v3114
        %4097 = vmatprep.subr.bf16.mxu0 %v3119
        %4098 = vmatpush1.bf16.msra.mxu0 %v3118
        %4099 = vmatprep.subr.bf16.mxu0 %v3123
        %4100 = vmatpush1.bf16.msra.mxu0 %v3122
        %4101 = vmatprep.subr.bf16.mxu0 %v3127
        %4102 = vmatpush1.bf16.msra.mxu0 %v3126
        %4103 = vmatprep.subr.bf16.mxu0 %v3131
        %4104 = vmatpush1.bf16.msra.mxu0 %v3130
        %4105 = vmatprep.subr.bf16.mxu0 %v3135
        %4106 = vmatpush1.bf16.msra.mxu0 %v3134
        %4107 = vmatprep.mubr.bf16.mxu0 %v1445
        %4108 = vmatmul.mubr.bf16.gmra.mrb[0].mxu0 %v1444
        %v4109 = vpop.f32.mrb[0].mxu0
        %v4110 = vadd.f32 %v4069, %v4109
        %v4111 = vpop.f32.mrb[0].mxu0
        %v4112 = vadd.f32 %v4071, %v4111
        %v4113 = vpop.f32.mrb[0].mxu0
        %v4114 = vpop.f32.mrb[0].mxu0
        %4115 = vdwg.mxu0
        %4116 = vmatprep.subr.bf16.mxu0 %v3139
        %4117 = vmatpush1.bf16.msra.mxu0 %v3138
        %4118 = vmatprep.subr.bf16.mxu0 %v3143
        %4119 = vmatpush1.bf16.msra.mxu0 %v3142
        %4120 = vmatprep.subr.bf16.mxu0 %v3147
        %4121 = vmatpush1.bf16.msra.mxu0 %v3146
        %4122 = vmatprep.subr.bf16.mxu0 %v3151
        %4123 = vmatpush1.bf16.msra.mxu0 %v3150
        %4124 = vmatprep.subr.bf16.mxu0 %v3155
        %4125 = vmatpush1.bf16.msra.mxu0 %v3154
        %4126 = vmatprep.subr.bf16.mxu0 %v3159
        %4127 = vmatpush1.bf16.msra.mxu0 %v3158
        %4128 = vmatprep.subr.bf16.mxu0 %v3163
        %4129 = vmatpush1.bf16.msra.mxu0 %v3162
        %4130 = vmatprep.subr.bf16.mxu0 %v3167
        %4131 = vmatpush1.bf16.msra.mxu0 %v3166
        %4132 = vmatprep.subr.bf16.mxu0 %v3171
        %4133 = vmatpush1.bf16.msra.mxu0 %v3170
        %4134 = vmatprep.subr.bf16.mxu0 %v3175
        %4135 = vmatpush1.bf16.msra.mxu0 %v3174
        %4136 = vmatprep.subr.bf16.mxu0 %v3179
        %4137 = vmatpush1.bf16.msra.mxu0 %v3178
        %4138 = vmatprep.subr.bf16.mxu0 %v3183
        %4139 = vmatpush1.bf16.msra.mxu0 %v3182
        %4140 = vmatprep.subr.bf16.mxu0 %v3187
        %4141 = vmatpush1.bf16.msra.mxu0 %v3186
        %4142 = vmatprep.subr.bf16.mxu0 %v3191
        %4143 = vmatpush1.bf16.msra.mxu0 %v3190
        %4144 = vmatprep.subr.bf16.mxu0 %v3195
        %4145 = vmatpush1.bf16.msra.mxu0 %v3194
        %4146 = vmatprep.subr.bf16.mxu0 %v3199
        %4147 = vmatpush1.bf16.msra.mxu0 %v3198
        %4148 = vmatprep.mubr.bf16.mxu0 %v1447
        %4149 = vmatmul.mubr.bf16.gmra.mrb[0].mxu0 %v1446
        %v4150 = vpop.f32.mrb[0].mxu0
        %v4151 = vadd.f32 %v4110, %v4150
        %v4152 = vpop.f32.mrb[0].mxu0
        %v4153 = vadd.f32 %v4112, %v4152
        %v4154 = vpop.f32.mrb[0].mxu0
        %v4155 = vpop.f32.mrb[0].mxu0
        %4156 = vdwg.mxu0
        %4157 = vmatprep.subr.bf16.mxu0 %v3203
        %4158 = vmatpush1.bf16.msra.mxu0 %v3202
        %4159 = vmatprep.subr.bf16.mxu0 %v3207
        %4160 = vmatpush1.bf16.msra.mxu0 %v3206
        %4161 = vmatprep.subr.bf16.mxu0 %v3211
        %4162 = vmatpush1.bf16.msra.mxu0 %v3210
        %4163 = vmatprep.subr.bf16.mxu0 %v3215
        %4164 = vmatpush1.bf16.msra.mxu0 %v3214
        %4165 = vmatprep.subr.bf16.mxu0 %v3219
        %4166 = vmatpush1.bf16.msra.mxu0 %v3218
        %4167 = vmatprep.subr.bf16.mxu0 %v3223
        %4168 = vmatpush1.bf16.msra.mxu0 %v3222
        %4169 = vmatprep.subr.bf16.mxu0 %v3227
        %4170 = vmatpush1.bf16.msra.mxu0 %v3226
        %4171 = vmatprep.subr.bf16.mxu0 %v3231
        %4172 = vmatpush1.bf16.msra.mxu0 %v3230
        %4173 = vmatprep.subr.bf16.mxu0 %v3235
        %4174 = vmatpush1.bf16.msra.mxu0 %v3234
        %4175 = vmatprep.subr.bf16.mxu0 %v3239
        %4176 = vmatpush1.bf16.msra.mxu0 %v3238
        %4177 = vmatprep.subr.bf16.mxu0 %v3243
        %4178 = vmatpush1.bf16.msra.mxu0 %v3242
        %4179 = vmatprep.subr.bf16.mxu0 %v3247
        %4180 = vmatpush1.bf16.msra.mxu0 %v3246
        %4181 = vmatprep.subr.bf16.mxu0 %v3251
        %4182 = vmatpush1.bf16.msra.mxu0 %v3250
        %4183 = vmatprep.subr.bf16.mxu0 %v3255
        %4184 = vmatpush1.bf16.msra.mxu0 %v3254
        %4185 = vmatprep.subr.bf16.mxu0 %v3259
        %4186 = vmatpush1.bf16.msra.mxu0 %v3258
        %4187 = vmatprep.subr.bf16.mxu0 %v3263
        %4188 = vmatpush1.bf16.msra.mxu0 %v3262
        %4189 = vmatprep.mubr.bf16.mxu0 %v1449
        %4190 = vmatmul.mubr.bf16.gmra.mrb[0].mxu0 %v1448
        %v4191 = vpop.f32.mrb[0].mxu0
        %v4192 = vadd.f32 %v4151, %v4191
        %v4193 = vpop.f32.mrb[0].mxu0
        %v4194 = vadd.f32 %v4153, %v4193
        %v4195 = vpop.f32.mrb[0].mxu0
        %v4196 = vpop.f32.mrb[0].mxu0
        %4197 = vdwg.mxu0
        %4198 = vmatprep.subr.bf16.mxu0 %v3267
        %4199 = vmatpush1.bf16.msra.mxu0 %v3266
        %4200 = vmatprep.subr.bf16.mxu0 %v3271
        %4201 = vmatpush1.bf16.msra.mxu0 %v3270
        %4202 = vmatprep.subr.bf16.mxu0 %v3275
        %4203 = vmatpush1.bf16.msra.mxu0 %v3274
        %4204 = vmatprep.subr.bf16.mxu0 %v3279
        %4205 = vmatpush1.bf16.msra.mxu0 %v3278
        %4206 = vmatprep.subr.bf16.mxu0 %v3283
        %4207 = vmatpush1.bf16.msra.mxu0 %v3282
        %4208 = vmatprep.subr.bf16.mxu0 %v3287
        %4209 = vmatpush1.bf16.msra.mxu0 %v3286
        %4210 = vmatprep.subr.bf16.mxu0 %v3291
        %4211 = vmatpush1.bf16.msra.mxu0 %v3290
        %4212 = vmatprep.subr.bf16.mxu0 %v3295
        %4213 = vmatpush1.bf16.msra.mxu0 %v3294
        %4214 = vmatprep.subr.bf16.mxu0 %v3299
        %4215 = vmatpush1.bf16.msra.mxu0 %v3298
        %4216 = vmatprep.subr.bf16.mxu0 %v3303
        %4217 = vmatpush1.bf16.msra.mxu0 %v3302
        %4218 = vmatprep.subr.bf16.mxu0 %v3307
        %4219 = vmatpush1.bf16.msra.mxu0 %v3306
        %4220 = vmatprep.subr.bf16.mxu0 %v3311
        %4221 = vmatpush1.bf16.msra.mxu0 %v3310
        %4222 = vmatprep.subr.bf16.mxu0 %v3315
        %4223 = vmatpush1.bf16.msra.mxu0 %v3314
        %4224 = vmatprep.subr.bf16.mxu0 %v3319
        %4225 = vmatpush1.bf16.msra.mxu0 %v3318
        %4226 = vmatprep.subr.bf16.mxu0 %v3323
        %4227 = vmatpush1.bf16.msra.mxu0 %v3322
        %4228 = vmatprep.subr.bf16.mxu0 %v3327
        %4229 = vmatpush1.bf16.msra.mxu0 %v3326
        %4230 = vmatprep.mubr.bf16.mxu0 %v1451
        %4231 = vmatmul.mubr.bf16.gmra.mrb[0].mxu0 %v1450
        %v4232 = vpop.f32.mrb[0].mxu0
        %v4233 = vadd.f32 %v4192, %v4232
        %v4234 = vpop.f32.mrb[0].mxu0
        %v4235 = vadd.f32 %v4194, %v4234
        %v4236 = vpop.f32.mrb[0].mxu0
        %v4237 = vpop.f32.mrb[0].mxu0
        %4238 = vdwg.mxu0
        %4239 = vmatprep.subr.bf16.mxu0 %v3331
        %4240 = vmatpush1.bf16.msra.mxu0 %v3330
        %4241 = vmatprep.subr.bf16.mxu0 %v3335
        %4242 = vmatpush1.bf16.msra.mxu0 %v3334
        %4243 = vmatprep.subr.bf16.mxu0 %v3339
        %4244 = vmatpush1.bf16.msra.mxu0 %v3338
        %4245 = vmatprep.subr.bf16.mxu0 %v3343
        %4246 = vmatpush1.bf16.msra.mxu0 %v3342
        %4247 = vmatprep.subr.bf16.mxu0 %v3347
        %4248 = vmatpush1.bf16.msra.mxu0 %v3346
        %4249 = vmatprep.subr.bf16.mxu0 %v3351
        %4250 = vmatpush1.bf16.msra.mxu0 %v3350
        %4251 = vmatprep.subr.bf16.mxu0 %v3355
        %4252 = vmatpush1.bf16.msra.mxu0 %v3354
        %4253 = vmatprep.subr.bf16.mxu0 %v3359
        %4254 = vmatpush1.bf16.msra.mxu0 %v3358
        %4255 = vmatprep.subr.bf16.mxu0 %v3363
        %4256 = vmatpush1.bf16.msra.mxu0 %v3362
        %4257 = vmatprep.subr.bf16.mxu0 %v3367
        %4258 = vmatpush1.bf16.msra.mxu0 %v3366
        %4259 = vmatprep.subr.bf16.mxu0 %v3371
        %4260 = vmatpush1.bf16.msra.mxu0 %v3370
        %4261 = vmatprep.subr.bf16.mxu0 %v3375
        %4262 = vmatpush1.bf16.msra.mxu0 %v3374
        %4263 = vmatprep.subr.bf16.mxu0 %v3379
        %4264 = vmatpush1.bf16.msra.mxu0 %v3378
        %4265 = vmatprep.subr.bf16.mxu0 %v3383
        %4266 = vmatpush1.bf16.msra.mxu0 %v3382
        %4267 = vmatprep.subr.bf16.mxu0 %v3387
        %4268 = vmatpush1.bf16.msra.mxu0 %v3386
        %4269 = vmatprep.subr.bf16.mxu0 %v3391
        %4270 = vmatpush1.bf16.msra.mxu0 %v3390
        %4271 = vmatprep.mubr.bf16.mxu0 %v1453
        %4272 = vmatmul.mubr.bf16.gmra.mrb[0].mxu0 %v1452
        %v4273 = vpop.f32.mrb[0].mxu0
        %v4274 = vadd.f32 %v4233, %v4273
        %v4275 = vpop.f32.mrb[0].mxu0
        %v4276 = vadd.f32 %v4235, %v4275
        %v4277 = vpop.f32.mrb[0].mxu0
        %v4278 = vpop.f32.mrb[0].mxu0
        %4279 = vdwg.mxu0
        %4280 = vmatprep.subr.bf16.mxu0 %v3395
        %4281 = vmatpush1.bf16.msra.mxu0 %v3394
        %4282 = vmatprep.subr.bf16.mxu0 %v3399
        %4283 = vmatpush1.bf16.msra.mxu0 %v3398
        %4284 = vmatprep.subr.bf16.mxu0 %v3403
        %4285 = vmatpush1.bf16.msra.mxu0 %v3402
        %4286 = vmatprep.subr.bf16.mxu0 %v3407
        %4287 = vmatpush1.bf16.msra.mxu0 %v3406
        %4288 = vmatprep.subr.bf16.mxu0 %v3411
        %4289 = vmatpush1.bf16.msra.mxu0 %v3410
        %4290 = vmatprep.subr.bf16.mxu0 %v3415
        %4291 = vmatpush1.bf16.msra.mxu0 %v3414
        %4292 = vmatprep.subr.bf16.mxu0 %v3419
        %4293 = vmatpush1.bf16.msra.mxu0 %v3418
        %4294 = vmatprep.subr.bf16.mxu0 %v3423
        %4295 = vmatpush1.bf16.msra.mxu0 %v3422
        %4296 = vmatprep.subr.bf16.mxu0 %v3427
        %4297 = vmatpush1.bf16.msra.mxu0 %v3426
        %4298 = vmatprep.subr.bf16.mxu0 %v3431
        %4299 = vmatpush1.bf16.msra.mxu0 %v3430
        %4300 = vmatprep.subr.bf16.mxu0 %v3435
        %4301 = vmatpush1.bf16.msra.mxu0 %v3434
        %4302 = vmatprep.subr.bf16.mxu0 %v3439
        %4303 = vmatpush1.bf16.msra.mxu0 %v3438
        %4304 = vmatprep.subr.bf16.mxu0 %v3443
        %4305 = vmatpush1.bf16.msra.mxu0 %v3442
        %4306 = vmatprep.subr.bf16.mxu0 %v3447
        %4307 = vmatpush1.bf16.msra.mxu0 %v3446
        %4308 = vmatprep.subr.bf16.mxu0 %v3451
        %4309 = vmatpush1.bf16.msra.mxu0 %v3450
        %4310 = vmatprep.subr.bf16.mxu0 %v3455
        %4311 = vmatpush1.bf16.msra.mxu0 %v3454
        %4312 = vmatprep.mubr.bf16.mxu0 %v1455
        %4313 = vmatmul.mubr.bf16.gmra.mrb[0].mxu0 %v1454
        %v4314 = vpop.f32.mrb[0].mxu0
        %v4315 = vadd.f32 %v4274, %v4314
        %v4316 = vpop.f32.mrb[0].mxu0
        %v4317 = vadd.f32 %v4276, %v4316
        %v4318 = vpop.f32.mrb[0].mxu0
        %v4319 = vpop.f32.mrb[0].mxu0
        %4320 = vdwg.mxu0
        %4321 = vmatprep.subr.bf16.mxu0 %v3459
        %4322 = vmatpush1.bf16.msra.mxu0 %v3458
        %4323 = vmatprep.subr.bf16.mxu0 %v3463
        %4324 = vmatpush1.bf16.msra.mxu0 %v3462
        %4325 = vmatprep.subr.bf16.mxu0 %v3467
        %4326 = vmatpush1.bf16.msra.mxu0 %v3466
        %4327 = vmatprep.subr.bf16.mxu0 %v3471
        %4328 = vmatpush1.bf16.msra.mxu0 %v3470
        %4329 = vmatprep.subr.bf16.mxu0 %v3475
        %4330 = vmatpush1.bf16.msra.mxu0 %v3474
        %4331 = vmatprep.subr.bf16.mxu0 %v3479
        %4332 = vmatpush1.bf16.msra.mxu0 %v3478
        %4333 = vmatprep.subr.bf16.mxu0 %v3483
        %4334 = vmatpush1.bf16.msra.mxu0 %v3482
        %4335 = vmatprep.subr.bf16.mxu0 %v3487
        %4336 = vmatpush1.bf16.msra.mxu0 %v3486
        %4337 = vmatprep.subr.bf16.mxu0 %v3491
        %4338 = vmatpush1.bf16.msra.mxu0 %v3490
        %4339 = vmatprep.subr.bf16.mxu0 %v3495
        %4340 = vmatpush1.bf16.msra.mxu0 %v3494
        %4341 = vmatprep.subr.bf16.mxu0 %v3499
        %4342 = vmatpush1.bf16.msra.mxu0 %v3498
        %4343 = vmatprep.subr.bf16.mxu0 %v3503
        %4344 = vmatpush1.bf16.msra.mxu0 %v3502
        %4345 = vmatprep.subr.bf16.mxu0 %v3507
        %4346 = vmatpush1.bf16.msra.mxu0 %v3506
        %4347 = vmatprep.subr.bf16.mxu0 %v3511
        %4348 = vmatpush1.bf16.msra.mxu0 %v3510
        %4349 = vmatprep.subr.bf16.mxu0 %v3515
        %4350 = vmatpush1.bf16.msra.mxu0 %v3514
        %4351 = vmatprep.subr.bf16.mxu0 %v3519
        %4352 = vmatpush1.bf16.msra.mxu0 %v3518
        %4353 = vmatprep.mubr.bf16.mxu0 %v1457
        %4354 = vmatmul.mubr.bf16.gmra.mrb[0].mxu0 %v1456
        %v4355 = vpop.f32.mrb[0].mxu0
        %v4356 = vadd.f32 %v4315, %v4355
        %v4357 = vpop.f32.mrb[0].mxu0
        %v4358 = vadd.f32 %v4317, %v4357
        %v4359 = vpop.f32.mrb[0].mxu0
        %v4360 = vpop.f32.mrb[0].mxu0
        %4361 = vdwg.mxu0
        %4362 = vmatprep.subr.bf16.mxu0 %v3013
        %4363 = vmatpush1.bf16.msra.mxu0 %v3012
        %4364 = vmatprep.subr.bf16.mxu0 %v3017
        %4365 = vmatpush1.bf16.msra.mxu0 %v3016
        %4366 = vmatprep.subr.bf16.mxu0 %v3021
        %4367 = vmatpush1.bf16.msra.mxu0 %v3020
        %4368 = vmatprep.subr.bf16.mxu0 %v3025
        %4369 = vmatpush1.bf16.msra.mxu0 %v3024
        %4370 = vmatprep.subr.bf16.mxu0 %v3029
        %4371 = vmatpush1.bf16.msra.mxu0 %v3028
        %4372 = vmatprep.subr.bf16.mxu0 %v3033
        %4373 = vmatpush1.bf16.msra.mxu0 %v3032
        %4374 = vmatprep.subr.bf16.mxu0 %v3037
        %4375 = vmatpush1.bf16.msra.mxu0 %v3036
        %4376 = vmatprep.subr.bf16.mxu0 %v3041
        %4377 = vmatpush1.bf16.msra.mxu0 %v3040
        %4378 = vmatprep.subr.bf16.mxu0 %v3045
        %4379 = vmatpush1.bf16.msra.mxu0 %v3044
        %4380 = vmatprep.subr.bf16.mxu0 %v3049
        %4381 = vmatpush1.bf16.msra.mxu0 %v3048
        %4382 = vmatprep.subr.bf16.mxu0 %v3053
        %4383 = vmatpush1.bf16.msra.mxu0 %v3052
        %4384 = vmatprep.subr.bf16.mxu0 %v3057
        %4385 = vmatpush1.bf16.msra.mxu0 %v3056
        %4386 = vmatprep.subr.bf16.mxu0 %v3061
        %4387 = vmatpush1.bf16.msra.mxu0 %v3060
        %4388 = vmatprep.subr.bf16.mxu0 %v3065
        %4389 = vmatpush1.bf16.msra.mxu0 %v3064
        %4390 = vmatprep.subr.bf16.mxu0 %v3069
        %4391 = vmatpush1.bf16.msra.mxu0 %v3068
        %4392 = vmatprep.subr.bf16.mxu0 %v3073
        %4393 = vmatpush1.bf16.msra.mxu0 %v3072
        %4394 = vmatprep.mubr.bf16.mxu0 %v1443
        %4395 = vmatmul.mubr.bf16.gmra.mrb[0].mxu0 %v1442
        %v4396 = vpop.f32.mrb[0].mxu0
        %v4397 = vadd.f32 0.0, %v4396
        %v4398 = vpop.f32.mrb[0].mxu0
        %v4399 = vadd.f32 0.0, %v4398
        %v4400 = vpop.f32.mrb[0].mxu0
        %v4401 = vpop.f32.mrb[0].mxu0
        %4402 = vdwg.mxu0
        %4403 = vmatprep.subr.bf16.mxu0 %v3077
        %4404 = vmatpush1.bf16.msra.mxu0 %v3076
        %4405 = vmatprep.subr.bf16.mxu0 %v3081
        %4406 = vmatpush1.bf16.msra.mxu0 %v3080
        %4407 = vmatprep.subr.bf16.mxu0 %v3085
        %4408 = vmatpush1.bf16.msra.mxu0 %v3084
        %4409 = vmatprep.subr.bf16.mxu0 %v3089
        %4410 = vmatpush1.bf16.msra.mxu0 %v3088
        %4411 = vmatprep.subr.bf16.mxu0 %v3093
        %4412 = vmatpush1.bf16.msra.mxu0 %v3092
        %4413 = vmatprep.subr.bf16.mxu0 %v3097
        %4414 = vmatpush1.bf16.msra.mxu0 %v3096
        %4415 = vmatprep.subr.bf16.mxu0 %v3101
        %4416 = vmatpush1.bf16.msra.mxu0 %v3100
        %4417 = vmatprep.subr.bf16.mxu0 %v3105
        %4418 = vmatpush1.bf16.msra.mxu0 %v3104
        %4419 = vmatprep.subr.bf16.mxu0 %v3109
        %4420 = vmatpush1.bf16.msra.mxu0 %v3108
        %4421 = vmatprep.subr.bf16.mxu0 %v3113
        %4422 = vmatpush1.bf16.msra.mxu0 %v3112
        %4423 = vmatprep.subr.bf16.mxu0 %v3117
        %4424 = vmatpush1.bf16.msra.mxu0 %v3116
        %4425 = vmatprep.subr.bf16.mxu0 %v3121
        %4426 = vmatpush1.bf16.msra.mxu0 %v3120
        %4427 = vmatprep.subr.bf16.mxu0 %v3125
        %4428 = vmatpush1.bf16.msra.mxu0 %v3124
        %4429 = vmatprep.subr.bf16.mxu0 %v3129
        %4430 = vmatpush1.bf16.msra.mxu0 %v3128
        %4431 = vmatprep.subr.bf16.mxu0 %v3133
        %4432 = vmatpush1.bf16.msra.mxu0 %v3132
        %4433 = vmatprep.subr.bf16.mxu0 %v3137
        %4434 = vmatpush1.bf16.msra.mxu0 %v3136
        %4435 = vmatprep.mubr.bf16.mxu0 %v1445
        %4436 = vmatmul.mubr.bf16.gmra.mrb[0].mxu0 %v1444
        %v4437 = vpop.f32.mrb[0].mxu0
        %v4438 = vadd.f32 %v4397, %v4437
        %v4439 = vpop.f32.mrb[0].mxu0
        %v4440 = vadd.f32 %v4399, %v4439
        %v4441 = vpop.f32.mrb[0].mxu0
        %v4442 = vpop.f32.mrb[0].mxu0
        %4443 = vdwg.mxu0
        %4444 = vmatprep.subr.bf16.mxu0 %v3141
        %4445 = vmatpush1.bf16.msra.mxu0 %v3140
        %4446 = vmatprep.subr.bf16.mxu0 %v3145
        %4447 = vmatpush1.bf16.msra.mxu0 %v3144
        %4448 = vmatprep.subr.bf16.mxu0 %v3149
        %4449 = vmatpush1.bf16.msra.mxu0 %v3148
        %4450 = vmatprep.subr.bf16.mxu0 %v3153
        %4451 = vmatpush1.bf16.msra.mxu0 %v3152
        %4452 = vmatprep.subr.bf16.mxu0 %v3157
        %4453 = vmatpush1.bf16.msra.mxu0 %v3156
        %4454 = vmatprep.subr.bf16.mxu0 %v3161
        %4455 = vmatpush1.bf16.msra.mxu0 %v3160
        %4456 = vmatprep.subr.bf16.mxu0 %v3165
        %4457 = vmatpush1.bf16.msra.mxu0 %v3164
        %4458 = vmatprep.subr.bf16.mxu0 %v3169
        %4459 = vmatpush1.bf16.msra.mxu0 %v3168
        %4460 = vmatprep.subr.bf16.mxu0 %v3173
        %4461 = vmatpush1.bf16.msra.mxu0 %v3172
        %4462 = vmatprep.subr.bf16.mxu0 %v3177
        %4463 = vmatpush1.bf16.msra.mxu0 %v3176
        %4464 = vmatprep.subr.bf16.mxu0 %v3181
        %4465 = vmatpush1.bf16.msra.mxu0 %v3180
        %4466 = vmatprep.subr.bf16.mxu0 %v3185
        %4467 = vmatpush1.bf16.msra.mxu0 %v3184
        %4468 = vmatprep.subr.bf16.mxu0 %v3189
        %4469 = vmatpush1.bf16.msra.mxu0 %v3188
        %4470 = vmatprep.subr.bf16.mxu0 %v3193
        %4471 = vmatpush1.bf16.msra.mxu0 %v3192
        %4472 = vmatprep.subr.bf16.mxu0 %v3197
        %4473 = vmatpush1.bf16.msra.mxu0 %v3196
        %4474 = vmatprep.subr.bf16.mxu0 %v3201
        %4475 = vmatpush1.bf16.msra.mxu0 %v3200
        %4476 = vmatprep.mubr.bf16.mxu0 %v1447
        %4477 = vmatmul.mubr.bf16.gmra.mrb[0].mxu0 %v1446
        %v4478 = vpop.f32.mrb[0].mxu0
        %v4479 = vadd.f32 %v4438, %v4478
        %v4480 = vpop.f32.mrb[0].mxu0
        %v4481 = vadd.f32 %v4440, %v4480
        %v4482 = vpop.f32.mrb[0].mxu0
        %v4483 = vpop.f32.mrb[0].mxu0
        %4484 = vdwg.mxu0
        %4485 = vmatprep.subr.bf16.mxu0 %v3205
        %4486 = vmatpush1.bf16.msra.mxu0 %v3204
        %4487 = vmatprep.subr.bf16.mxu0 %v3209
        %4488 = vmatpush1.bf16.msra.mxu0 %v3208
        %4489 = vmatprep.subr.bf16.mxu0 %v3213
        %4490 = vmatpush1.bf16.msra.mxu0 %v3212
        %4491 = vmatprep.subr.bf16.mxu0 %v3217
        %4492 = vmatpush1.bf16.msra.mxu0 %v3216
        %4493 = vmatprep.subr.bf16.mxu0 %v3221
        %4494 = vmatpush1.bf16.msra.mxu0 %v3220
        %4495 = vmatprep.subr.bf16.mxu0 %v3225
        %4496 = vmatpush1.bf16.msra.mxu0 %v3224
        %4497 = vmatprep.subr.bf16.mxu0 %v3229
        %4498 = vmatpush1.bf16.msra.mxu0 %v3228
        %4499 = vmatprep.subr.bf16.mxu0 %v3233
        %4500 = vmatpush1.bf16.msra.mxu0 %v3232
        %4501 = vmatprep.subr.bf16.mxu0 %v3237
        %4502 = vmatpush1.bf16.msra.mxu0 %v3236
        %4503 = vmatprep.subr.bf16.mxu0 %v3241
        %4504 = vmatpush1.bf16.msra.mxu0 %v3240
        %4505 = vmatprep.subr.bf16.mxu0 %v3245
        %4506 = vmatpush1.bf16.msra.mxu0 %v3244
        %4507 = vmatprep.subr.bf16.mxu0 %v3249
        %4508 = vmatpush1.bf16.msra.mxu0 %v3248
        %4509 = vmatprep.subr.bf16.mxu0 %v3253
        %4510 = vmatpush1.bf16.msra.mxu0 %v3252
        %4511 = vmatprep.subr.bf16.mxu0 %v3257
        %4512 = vmatpush1.bf16.msra.mxu0 %v3256
        %4513 = vmatprep.subr.bf16.mxu0 %v3261
        %4514 = vmatpush1.bf16.msra.mxu0 %v3260
        %4515 = vmatprep.subr.bf16.mxu0 %v3265
        %4516 = vmatpush1.bf16.msra.mxu0 %v3264
        %4517 = vmatprep.mubr.bf16.mxu0 %v1449
        %4518 = vmatmul.mubr.bf16.gmra.mrb[0].mxu0 %v1448
        %v4519 = vpop.f32.mrb[0].mxu0
        %v4520 = vadd.f32 %v4479, %v4519
        %v4521 = vpop.f32.mrb[0].mxu0
        %v4522 = vadd.f32 %v4481, %v4521
        %v4523 = vpop.f32.mrb[0].mxu0
        %v4524 = vpop.f32.mrb[0].mxu0
        %4525 = vdwg.mxu0
        %4526 = vmatprep.subr.bf16.mxu0 %v3269
        %4527 = vmatpush1.bf16.msra.mxu0 %v3268
        %4528 = vmatprep.subr.bf16.mxu0 %v3273
        %4529 = vmatpush1.bf16.msra.mxu0 %v3272
        %4530 = vmatprep.subr.bf16.mxu0 %v3277
        %4531 = vmatpush1.bf16.msra.mxu0 %v3276
        %4532 = vmatprep.subr.bf16.mxu0 %v3281
        %4533 = vmatpush1.bf16.msra.mxu0 %v3280
        %4534 = vmatprep.subr.bf16.mxu0 %v3285
        %4535 = vmatpush1.bf16.msra.mxu0 %v3284
        %4536 = vmatprep.subr.bf16.mxu0 %v3289
        %4537 = vmatpush1.bf16.msra.mxu0 %v3288
        %4538 = vmatprep.subr.bf16.mxu0 %v3293
        %4539 = vmatpush1.bf16.msra.mxu0 %v3292
        %4540 = vmatprep.subr.bf16.mxu0 %v3297
        %4541 = vmatpush1.bf16.msra.mxu0 %v3296
        %4542 = vmatprep.subr.bf16.mxu0 %v3301
        %4543 = vmatpush1.bf16.msra.mxu0 %v3300
        %4544 = vmatprep.subr.bf16.mxu0 %v3305
        %4545 = vmatpush1.bf16.msra.mxu0 %v3304
        %4546 = vmatprep.subr.bf16.mxu0 %v3309
        %4547 = vmatpush1.bf16.msra.mxu0 %v3308
        %4548 = vmatprep.subr.bf16.mxu0 %v3313
        %4549 = vmatpush1.bf16.msra.mxu0 %v3312
        %4550 = vmatprep.subr.bf16.mxu0 %v3317
        %4551 = vmatpush1.bf16.msra.mxu0 %v3316
        %4552 = vmatprep.subr.bf16.mxu0 %v3321
        %4553 = vmatpush1.bf16.msra.mxu0 %v3320
        %4554 = vmatprep.subr.bf16.mxu0 %v3325
        %4555 = vmatpush1.bf16.msra.mxu0 %v3324
        %4556 = vmatprep.subr.bf16.mxu0 %v3329
        %4557 = vmatpush1.bf16.msra.mxu0 %v3328
        %4558 = vmatprep.mubr.bf16.mxu0 %v1451
        %4559 = vmatmul.mubr.bf16.gmra.mrb[0].mxu0 %v1450
        %v4560 = vpop.f32.mrb[0].mxu0
        %v4561 = vadd.f32 %v4520, %v4560
        %v4562 = vpop.f32.mrb[0].mxu0
        %v4563 = vadd.f32 %v4522, %v4562
        %v4564 = vpop.f32.mrb[0].mxu0
        %v4565 = vpop.f32.mrb[0].mxu0
        %4566 = vdwg.mxu0
        %4567 = vmatprep.subr.bf16.mxu0 %v3333
        %4568 = vmatpush1.bf16.msra.mxu0 %v3332
        %4569 = vmatprep.subr.bf16.mxu0 %v3337
        %4570 = vmatpush1.bf16.msra.mxu0 %v3336
        %4571 = vmatprep.subr.bf16.mxu0 %v3341
        %4572 = vmatpush1.bf16.msra.mxu0 %v3340
        %4573 = vmatprep.subr.bf16.mxu0 %v3345
        %4574 = vmatpush1.bf16.msra.mxu0 %v3344
        %4575 = vmatprep.subr.bf16.mxu0 %v3349
        %4576 = vmatpush1.bf16.msra.mxu0 %v3348
        %4577 = vmatprep.subr.bf16.mxu0 %v3353
        %4578 = vmatpush1.bf16.msra.mxu0 %v3352
        %4579 = vmatprep.subr.bf16.mxu0 %v3357
        %4580 = vmatpush1.bf16.msra.mxu0 %v3356
        %4581 = vmatprep.subr.bf16.mxu0 %v3361
        %4582 = vmatpush1.bf16.msra.mxu0 %v3360
        %4583 = vmatprep.subr.bf16.mxu0 %v3365
        %4584 = vmatpush1.bf16.msra.mxu0 %v3364
        %4585 = vmatprep.subr.bf16.mxu0 %v3369
        %4586 = vmatpush1.bf16.msra.mxu0 %v3368
        %4587 = vmatprep.subr.bf16.mxu0 %v3373
        %4588 = vmatpush1.bf16.msra.mxu0 %v3372
        %4589 = vmatprep.subr.bf16.mxu0 %v3377
        %4590 = vmatpush1.bf16.msra.mxu0 %v3376
        %4591 = vmatprep.subr.bf16.mxu0 %v3381
        %4592 = vmatpush1.bf16.msra.mxu0 %v3380
        %4593 = vmatprep.subr.bf16.mxu0 %v3385
        %4594 = vmatpush1.bf16.msra.mxu0 %v3384
        %4595 = vmatprep.subr.bf16.mxu0 %v3389
        %4596 = vmatpush1.bf16.msra.mxu0 %v3388
        %4597 = vmatprep.subr.bf16.mxu0 %v3393
        %4598 = vmatpush1.bf16.msra.mxu0 %v3392
        %4599 = vmatprep.mubr.bf16.mxu0 %v1453
        %4600 = vmatmul.mubr.bf16.gmra.mrb[0].mxu0 %v1452
        %v4601 = vpop.f32.mrb[0].mxu0
        %v4602 = vadd.f32 %v4561, %v4601
        %v4603 = vpop.f32.mrb[0].mxu0
        %v4604 = vadd.f32 %v4563, %v4603
        %v4605 = vpop.f32.mrb[0].mxu0
        %v4606 = vpop.f32.mrb[0].mxu0
        %4607 = vdwg.mxu0
        %4608 = vmatprep.subr.bf16.mxu0 %v3397
        %4609 = vmatpush1.bf16.msra.mxu0 %v3396
        %4610 = vmatprep.subr.bf16.mxu0 %v3401
        %4611 = vmatpush1.bf16.msra.mxu0 %v3400
        %4612 = vmatprep.subr.bf16.mxu0 %v3405
        %4613 = vmatpush1.bf16.msra.mxu0 %v3404
        %4614 = vmatprep.subr.bf16.mxu0 %v3409
        %4615 = vmatpush1.bf16.msra.mxu0 %v3408
        %4616 = vmatprep.subr.bf16.mxu0 %v3413
        %4617 = vmatpush1.bf16.msra.mxu0 %v3412
        %4618 = vmatprep.subr.bf16.mxu0 %v3417
        %4619 = vmatpush1.bf16.msra.mxu0 %v3416
        %4620 = vmatprep.subr.bf16.mxu0 %v3421
        %4621 = vmatpush1.bf16.msra.mxu0 %v3420
        %4622 = vmatprep.subr.bf16.mxu0 %v3425
        %4623 = vmatpush1.bf16.msra.mxu0 %v3424
        %4624 = vmatprep.subr.bf16.mxu0 %v3429
        %4625 = vmatpush1.bf16.msra.mxu0 %v3428
        %4626 = vmatprep.subr.bf16.mxu0 %v3433
        %4627 = vmatpush1.bf16.msra.mxu0 %v3432
        %4628 = vmatprep.subr.bf16.mxu0 %v3437
        %4629 = vmatpush1.bf16.msra.mxu0 %v3436
        %4630 = vmatprep.subr.bf16.mxu0 %v3441
        %4631 = vmatpush1.bf16.msra.mxu0 %v3440
        %4632 = vmatprep.subr.bf16.mxu0 %v3445
        %4633 = vmatpush1.bf16.msra.mxu0 %v3444
        %4634 = vmatprep.subr.bf16.mxu0 %v3449
        %4635 = vmatpush1.bf16.msra.mxu0 %v3448
        %4636 = vmatprep.subr.bf16.mxu0 %v3453
        %4637 = vmatpush1.bf16.msra.mxu0 %v3452
        %4638 = vmatprep.subr.bf16.mxu0 %v3457
        %4639 = vmatpush1.bf16.msra.mxu0 %v3456
        %4640 = vmatprep.mubr.bf16.mxu0 %v1455
        %4641 = vmatmul.mubr.bf16.gmra.mrb[0].mxu0 %v1454
        %v4642 = vpop.f32.mrb[0].mxu0
        %v4643 = vadd.f32 %v4602, %v4642
        %v4644 = vpop.f32.mrb[0].mxu0
        %v4645 = vadd.f32 %v4604, %v4644
        %v4646 = vpop.f32.mrb[0].mxu0
        %v4647 = vpop.f32.mrb[0].mxu0
        %4648 = vdwg.mxu0
        %4649 = vmatprep.subr.bf16.mxu0 %v3461
        %4650 = vmatpush1.bf16.msra.mxu0 %v3460
        %4651 = vmatprep.subr.bf16.mxu0 %v3465
        %4652 = vmatpush1.bf16.msra.mxu0 %v3464
        %4653 = vmatprep.subr.bf16.mxu0 %v3469
        %4654 = vmatpush1.bf16.msra.mxu0 %v3468
        %4655 = vmatprep.subr.bf16.mxu0 %v3473
        %4656 = vmatpush1.bf16.msra.mxu0 %v3472
        %4657 = vmatprep.subr.bf16.mxu0 %v3477
        %4658 = vmatpush1.bf16.msra.mxu0 %v3476
        %4659 = vmatprep.subr.bf16.mxu0 %v3481
        %4660 = vmatpush1.bf16.msra.mxu0 %v3480
        %4661 = vmatprep.subr.bf16.mxu0 %v3485
        %4662 = vmatpush1.bf16.msra.mxu0 %v3484
        %4663 = vmatprep.subr.bf16.mxu0 %v3489
        %4664 = vmatpush1.bf16.msra.mxu0 %v3488
        %4665 = vmatprep.subr.bf16.mxu0 %v3493
        %4666 = vmatpush1.bf16.msra.mxu0 %v3492
        %4667 = vmatprep.subr.bf16.mxu0 %v3497
        %4668 = vmatpush1.bf16.msra.mxu0 %v3496
        %4669 = vmatprep.subr.bf16.mxu0 %v3501
        %4670 = vmatpush1.bf16.msra.mxu0 %v3500
        %4671 = vmatprep.subr.bf16.mxu0 %v3505
        %4672 = vmatpush1.bf16.msra.mxu0 %v3504
        %4673 = vmatprep.subr.bf16.mxu0 %v3509
        %4674 = vmatpush1.bf16.msra.mxu0 %v3508
        %4675 = vmatprep.subr.bf16.mxu0 %v3513
        %4676 = vmatpush1.bf16.msra.mxu0 %v3512
        %4677 = vmatprep.subr.bf16.mxu0 %v3517
        %4678 = vmatpush1.bf16.msra.mxu0 %v3516
        %4679 = vmatprep.subr.bf16.mxu0 %v3521
        %4680 = vmatpush1.bf16.msra.mxu0 %v3520
        %4681 = vmatprep.mubr.bf16.mxu0 %v1457
        %4682 = vmatmul.mubr.bf16.gmra.mrb[0].mxu0 %v1456
        %v4683 = vpop.f32.mrb[0].mxu0
        %v4684 = vadd.f32 %v4643, %v4683
        %v4685 = vpop.f32.mrb[0].mxu0
        %v4686 = vadd.f32 %v4645, %v4685
        %v4687 = vpop.f32.mrb[0].mxu0
        %v4688 = vpop.f32.mrb[0].mxu0
        %4689 = vdwg.mxu0
        %v4690 = vld [vmem:[%s345] ss:$2 sm:$0xf]
        %s4691 = scalar_lea.vmem %s345, 1
        %v4692 = vld [vmem:[%s4691] ss:$2 sm:$0xf]
        %v4694 = vlaneseq
        %v4695 = vshrl.u32 %v4694, 7
        %v4696 = vsub.s32 0, %v4695
        %v4697 = vrot.slane %v4690, %v4696
        %v4698 = vlaneseq
        %v4699 = vshrl.u32 %v4698, 7
        %v4700 = vsub.s32 1, %v4699
        %v4701 = vrot.slane %v4690, %v4700
        %v4702 = vlaneseq
        %v4703 = vshrl.u32 %v4702, 7
        %v4704 = vsub.s32 2, %v4703
        %v4705 = vrot.slane %v4690, %v4704
        %v4706 = vlaneseq
        %v4707 = vshrl.u32 %v4706, 7
        %v4708 = vsub.s32 3, %v4707
        %v4709 = vrot.slane %v4690, %v4708
        %v4714 = vmul.f32 %v4356, %v4697
        %v4715 = vmul.f32 %v4358, %v4701
        %v4716 = vmul.f32 %v4684, %v4705
        %v4717 = vmul.f32 %v4686, %v4709
        %v4719 = vlaneseq
        %v4720 = vshrl.u32 %v4719, 7
        %v4721 = vsub.s32 0, %v4720
        %v4722 = vrot.slane %v4692, %v4721
        %v4723 = vlaneseq
        %v4724 = vshrl.u32 %v4723, 7
        %v4725 = vsub.s32 1, %v4724
        %v4726 = vrot.slane %v4692, %v4725
        %v4727 = vlaneseq
        %v4728 = vshrl.u32 %v4727, 7
        %v4729 = vsub.s32 2, %v4728
        %v4730 = vrot.slane %v4692, %v4729
        %v4731 = vlaneseq
        %v4732 = vshrl.u32 %v4731, 7
        %v4733 = vsub.s32 3, %v4732
        %v4734 = vrot.slane %v4692, %v4733
        %v4739 = vadd.f32 %v4714, %v4722
        %v4740 = vadd.f32 %v4715, %v4726
        %v4741 = vadd.f32 %v4716, %v4730
        %v4742 = vadd.f32 %v4717, %v4734
        %v4747 = vcombine.low %v4739, %v4740
        %v4748 = vcombine.low %v4741, %v4742
        %v4750 = vunpack.c.l.s4 1983009808
        %v4751 = vunpack.c.0.s8 %v4750
        %v4752 = vlaneseq
        %v4753 = vshrl.u32 %v4752, 7
        %v4754 = vsub.s32 %v4751, %v4753
        %v4755 = vrot.slane %v4747, %v4754
        %v4757 = vunpack.c.l.s4 1983009808
        %v4758 = vunpack.c.0.s8 %v4757
        %v4759 = vlaneseq
        %v4760 = vshrl.u32 %v4759, 7
        %v4761 = vsub.s32 %v4758, %v4760
        %v4762 = vrot.slane %v4748, %v4761
        %v4763 = vcombine.low %v4755, %v4762
        %4765 = vst [vmem:[%s333] sm:$0xff] %v4763
        %s4766 = sand.u32 %s108, 1
        %s4767 = scalar_lea.sflag [#allocation5], %s4766
        %s4768 = sand.u32 %s108, 1
        %s4769 = smul.addr %s4768, 8
        %s4770 = scalar_lea.vmem [#allocation6], %s4769
        %p4771 = scmp.lt.s32.totalorder %s22, 5
        %s4772 = scalar_select %p4771, %s22, 5
        %s4773 = smul.addr %s4772, 16
        %s4774 = smul.addr %s4773, 2
        %s4775 = scalar_lea.vmem %s4, %s4774
        // Predicated region
        $region60: #{pcb_ibn_head.1} parent=50 // pred_check
          %p4776 = pneg %p118
        $region61: #{pcb_ibn_head.1} parent=50 // pred_check_branch
          %4778 = sbr.rel (%p4776) target = $region63
        $region62: #{pcb_ibn_head.1} parent=50 // pred_region
          %s4780 = ssub.s32 128, 128
          %4781 = vsyncadd %s4767, %s4780
          %s4782 = smul.addr %s22, 4
          %s4783 = smul.addr %s4782, 32
          %s4784 = scalar_lea.hbm %s3, %s4783
          %s4786 = sshll.u32 %s4770, 4
          %s4787 = int_to_ptr.vmem [resolvable:$true] %s4786
          %4789 = dma.vmem_to_hbm [thread:$0]  %s4787, 128, %s4784, %s4767
        $region63: #{pcb_ibn_head.1} parent=50 // pred_fallthru
          _
        // Predicated region
        $region64: #{pcb_ibn_head.1} parent=50 // pred_check
          %p4790 = pneg %p144
        $region65: #{pcb_ibn_head.1} parent=50 // pred_check_branch
          %4792 = sbr.rel (%p4790) target = $region67
        $region66: #{pcb_ibn_head.1} parent=50 // pred_region
          _
        $region67: #{pcb_ibn_head.1} parent=50 // pred_fallthru
          _
      $region51: #{pcb_ibn_head.1} parent=5 // pred_fallthru
        _
      %p4793 = scmp.le.s32.totalorder 2, %s17
      // Predicated region
      $region68: #{pcb_ibn_head.1} parent=5 // pred_check
        %p4794 = pneg %p4793
      $region69: #{pcb_ibn_head.1} parent=5 // pred_check_branch
        %4796 = sbr.rel (%p4794) target = $region71
      $region70: #{pcb_ibn_head.1} parent=5 // pred_region
        %s4797 = ssub.s32 %s17, 2
        // Predicated region
        $region72: #{pcb_ibn_head.1} parent=70 // pred_check
          %p4798 = pneg %p124
        $region73: #{pcb_ibn_head.1} parent=70 // pred_check_branch
          %4800 = sbr.rel (%p4798) target = $region75
        $region74: #{pcb_ibn_head.1} parent=70 // pred_region
          %s4801 = sand.u32 %s109, 1
          %s4802 = scalar_lea.sflag [#allocation5], %s4801
          %s4803 = sand.u32 %s109, 1
          %s4804 = smul.addr %s4803, 8
          %s4805 = scalar_lea.vmem [#allocation6], %s4804
          %4806 = dma.done %s4802, 128
        $region75: #{pcb_ibn_head.1} parent=70 // pred_fallthru
          _
        // Predicated region
        $region76: #{pcb_ibn_head.1} parent=70 // pred_check
          %p4807 = pneg %p150
        $region77: #{pcb_ibn_head.1} parent=70 // pred_check_branch
          %4809 = sbr.rel (%p4807) target = $region79
        $region78: #{pcb_ibn_head.1} parent=70 // pred_region
          %p4810 = scmp.lt.s32.totalorder %s23, 5
          %s4811 = scalar_select %p4810, %s23, 5
          %s4812 = smul.addr %s4811, 16
          %s4813 = smul.addr %s4812, 2
          %s4814 = scalar_lea.vmem %s4, %s4813
        $region79: #{pcb_ibn_head.1} parent=70 // pred_fallthru
          _
      $region71: #{pcb_ibn_head.1} parent=5 // pred_fallthru
        _
    $region6: #{pcb_ibn_head.1} parent=1 // loop_footer
      %s21 = sadd.s32 1, %s17
    $region7: #{pcb_ibn_head.1} parent=1 // loop_footer_branch
      %16 = sbr.rel target = $region3
    $region8: #{pcb_ibn_head.1} parent=1 // loop_exit
      _
    %4815 = vsyncpa [#allocation4], 1
    %s4816 = scalar_lea.sflag [#allocation4], 1
    %4817 = vsyncpa %s4816, 1
    %4818 = vsyncpa [#allocation5], 1
    %s4819 = scalar_lea.sflag [#allocation5], 1
    %4820 = vsyncpa %s4819, 1

</llo_original>
